<compile_context>
chip_gen: v6e
topology: v6e:2x2x1
jax: 0.10.0
libtpu: 0.0.40
codegen_flags: <defaults>
</compile_context>

<pallas_src>
import numpy as np
import jax
import jax.numpy as jnp
from jax.experimental import pallas as pl
from jax.experimental.pallas import tpu as pltpu

# ----------------------------- config (small) --------------------------------
FEATURE_VECTOR_SIZE = 32
D_IN = 3
PTS_ROWS = 8                     # D_IN zero-padded to a full sublane group
D_OUT = 1
HIDDEN_DIMS = [64, 64, 64, 64]
SKIP_IN = (2,)
MULTIRES = 6
GEO_BIAS = 1.0
SDF_BOUNDING_SPHERE = 0.0        # forward() does not use it; get_outputs would.


def network_dims():
    dims = [D_IN] + HIDDEN_DIMS + [D_OUT + FEATURE_VECTOR_SIZE]
    input_ch = D_IN
    if MULTIRES > 0:
        input_ch = D_IN * (1 + 2 * MULTIRES)   # identity + sin/cos per frequency
        dims[0] = input_ch
    return dims, input_ch


# --------------------- embedding constants (fused in kernel) -------------------
def embedding_tables():
    """Constants for the in-kernel NeRF embedding in feature-major layout.

    scale_t (C, PTS_ROWS): s = scale_t @ pts   (one MXU matmul, pts is (8, tile))
    kind    (C, 1) int32 : 0 -> identity row (emb = s), 1 -> trig row
    phase   (C, 1) f32   : 0 for sin rows, pi/2 for cos rows (cos x == sin(x+pi/2))

    Row order matches the reference embedder:
      [x, sin(2^0 x), cos(2^0 x), sin(2^1 x), cos(2^1 x), ...]
    """
    _, input_ch = network_dims()
    scale_t = np.zeros((input_ch, PTS_ROWS), np.float32)
    kind = np.zeros((input_ch, 1), np.int32)
    phase = np.zeros((input_ch, 1), np.float32)
    for d in range(D_IN):
        scale_t[d, d] = 1.0                     # identity rows
    row = D_IN
    for k in range(MULTIRES):
        f = float(2.0 ** k)
        for d in range(D_IN):
            scale_t[row + d, d] = f             # sin(2^k x_d)
            scale_t[row + D_IN + d, d] = f      # cos(2^k x_d)
        kind[row:row + 2 * D_IN, 0] = 1
        phase[row:row + D_IN, 0] = 0.0
        phase[row + D_IN:row + 2 * D_IN, 0] = np.pi / 2.0
        row += 2 * D_IN
    return jnp.asarray(scale_t), jnp.asarray(kind), jnp.asarray(phase)


def embed_fn(x):
    """Reference NeRF embedder: [x, sin(2^k x), cos(2^k x)] for k = 0..multires-1."""
    if MULTIRES <= 0:
        return x
    outs = [x]
    for k in range(MULTIRES):
        f = float(2.0 ** k)
        outs.append(jnp.sin(x * f))
        outs.append(jnp.cos(x * f))
    return jnp.concatenate(outs, axis=-1)


# ------------------------- deterministic geometric init -----------------------
def init_params(key):
    """Replicates ImplicitNetwork.__init__ geometric init.  Returns a list of
    (W, b) with W stored as (in_dim, out_dim) so the reference does x @ W + b."""
    dims, _ = network_dims()
    num_layers = len(dims)
    params = []
    for l in range(num_layers - 1):
        if l + 1 in SKIP_IN:
            out_dim = dims[l + 1] - dims[0]
        else:
            out_dim = dims[l + 1]
        in_dim = dims[l]
        key, kw = jax.random.split(key)
        # PyTorch Linear weight layout is (out, in); build it that way, then transpose.
        if l == num_layers - 2:
            w = (np.sqrt(np.pi) / np.sqrt(dims[l])
                 + 0.0001 * jax.random.normal(kw, (out_dim, in_dim), jnp.float32))
            b = jnp.full((1, out_dim), -GEO_BIAS, jnp.float32)
        elif MULTIRES > 0 and l == 0:
            std = np.sqrt(2.0) / np.sqrt(out_dim)
            w_xyz = std * jax.random.normal(kw, (out_dim, 3), jnp.float32)
            w = jnp.concatenate(
                [w_xyz, jnp.zeros((out_dim, in_dim - 3), jnp.float32)], axis=1)
            b = jnp.zeros((1, out_dim), jnp.float32)
        elif MULTIRES > 0 and l in SKIP_IN:
            std = np.sqrt(2.0) / np.sqrt(out_dim)
            w = std * jax.random.normal(kw, (out_dim, in_dim), jnp.float32)
            w = w.at[:, -(dims[0] - 3):].set(0.0)
            b = jnp.zeros((1, out_dim), jnp.float32)
        else:
            std = np.sqrt(2.0) / np.sqrt(out_dim)
            w = std * jax.random.normal(kw, (out_dim, in_dim), jnp.float32)
            b = jnp.zeros((1, out_dim), jnp.float32)
        params.append((jnp.asarray(w).T, b))  # (in_dim, out_dim)
    return params


# --------------------------- host-side layout prep -----------------------------
def preprocess_params(params):
    """Transposes every weight into the (out, in) layout the feature-major kernel
    wants (y_t = W @ x_t + b_t), pre-splits each skip-layer weight into an x-part
    and an embedding-part (so no in-kernel feature-axis concat is needed) and
    constant-folds the 1/sqrt(2) skip scaling into those two weights.

    Returns (plan, flat): plan[l] = ("dense" | "skip", base index into flat)."""
    dims, _ = network_dims()
    nl = len(dims)
    inv_sqrt2 = float(1.0 / np.sqrt(2.0))
    flat, plan = [], []
    for l in range(nl - 1):
        w, b = params[l]
        wt = jnp.asarray(w, jnp.float32).T          # (out, in)  == torch layout
        bt = jnp.asarray(b, jnp.float32).T          # (out, 1)
        if l in SKIP_IN:                            # torch: cat([x, emb], 1) / sqrt(2)
            cur = dims[l] - dims[0]                 # width of the x-part (25)
            w_x = wt[:, :cur] * inv_sqrt2           # (out, 25)  — 1/sqrt2 folded in
            w_e = wt[:, cur:] * inv_sqrt2           # (out, 39)
            plan.append(("skip", len(flat)))
            flat += [w_x, w_e, bt]
        else:
            plan.append(("dense", len(flat)))
            flat += [wt, bt]
    return plan, flat


# ------------------------------- Pallas kernel ---------------------------------
def _softplus_beta100(x):
    # PyTorch Softplus(beta=100, threshold=20): linear when beta*x > threshold.
    bx = 100.0 * x
    return jnp.where(bx > 20.0, x, jnp.log1p(jnp.exp(jnp.minimum(bx, 20.0))) * 0.01)


def _make_kernel(plan, n_flat, num_layers):
    def kernel(*refs):
        pts_ref, scale_ref, kind_ref, phase_ref = refs[0], refs[1], refs[2], refs[3]
        prefs = refs[4:4 + n_flat]
        out_ref = refs[4 + n_flat]
        emb_scr = refs[4 + n_flat + 1]

        # ---- fused positional embedding, feature-major ----
        # s[c, n] = sum_d scale_t[c, d] * pts[d, n]  -> one small MXU matmul.
        pts = pts_ref[...]                                       # (8, tile)
        s = jnp.dot(scale_ref[...], pts,
                    preferred_element_type=jnp.float32)          # (C, tile)
        kind = kind_ref[...]                                     # (C, 1) int32
        phase = phase_ref[...]                                   # (C, 1) f32
        # One transcendental per row: cos rows use sin(s + pi/2).
        emb = jnp.where(kind == 0, s, jnp.sin(s + phase))        # (C, tile)
        emb_scr[...] = emb                # park in VMEM; re-read at the skip layer

        # ------------------------------- MLP -----------------------------------
        x = emb
        for li, (ltype, base) in enumerate(plan):
            if ltype == "skip":
                # torch: x = cat([x, input], 1) / sqrt(2); then Linear.
                # Two matmuls; the 1/sqrt(2) is already folded into w_x / w_e.
                w_x = prefs[base][...]                           # (out, 25)
                w_e = prefs[base + 1][...]                       # (out, 39)
                b = prefs[base + 2][...]                         # (out, 1)
                e = emb_scr[...]
                x = (jnp.dot(w_x, x, preferred_element_type=jnp.float32)
                     + jnp.dot(w_e, e, preferred_element_type=jnp.float32)
                     + b)
            else:
                w = prefs[base][...]                             # (out, in)
                b = prefs[base + 1][...]                         # (out, 1)
                x = jnp.dot(w, x, preferred_element_type=jnp.float32) + b
            if li < num_layers - 2:
                x = _softplus_beta100(x)
        out_ref[...] = x.astype(out_ref.dtype)                   # (33, tile), lane-dense

    return kernel


def _choose_tiling(n, tile_default):
    """Pick (tile, padded_n) with tile a multiple of 128 and padded_n a multiple
    of tile.  For large N the step count is made even so the 'parallel' grid
    axis balances across v7x's two TensorCores; padding waste stays bounded by
    ~128 lanes per step."""
    n128 = ((n + 127) // 128) * 128
    if n128 <= tile_default:
        return n128, n128                       # single big tile (small N)
    steps = -(-n // tile_default)               # cdiv
    if steps % 2 == 1:
        steps += 1                              # even step count for v7x megacore
    tile = ((-(-n // steps) + 127) // 128) * 128
    return tile, tile * steps


def implicit_network_forward(points, params, *, tile_n=8192):
    """points: (N, D_IN) float32.  Returns (N, D_OUT + FEATURE_VECTOR_SIZE)."""
    dims, input_ch = network_dims()
    out_ch = dims[-1]
    n = points.shape[0]

    tile, padded_n = _choose_tiling(n, tile_n)

    # Feature-major input: (3, N) -> zero-pad to (8, padded_n).  Padded rows are
    # zero and the scale table's padded columns are zero, so they contribute 0.
    pts_t = jnp.pad(points.astype(jnp.float32).T,
                    ((0, PTS_ROWS - D_IN), (0, padded_n - n)))

    scale_t, kind, phase = embedding_tables()
    plan, flat = preprocess_params(params)
    kernel = _make_kernel(plan, len(flat), len(dims))

    in_specs = [pl.BlockSpec((PTS_ROWS, tile), lambda i: (0, i)),
                pl.BlockSpec(scale_t.shape, lambda i: (0, 0)),
                pl.BlockSpec(kind.shape, lambda i: (0, 0)),
                pl.BlockSpec(phase.shape, lambda i: (0, 0))]
    for p in flat:
        in_specs.append(pl.BlockSpec(p.shape, lambda i: (0, 0)))

    out_t = pl.pallas_call(
        kernel,
        out_shape=jax.ShapeDtypeStruct((out_ch, padded_n), jnp.float32),
        grid_spec=pltpu.PrefetchScalarGridSpec(
            num_scalar_prefetch=0,
            grid=(padded_n // tile,),
            in_specs=in_specs,
            out_specs=pl.BlockSpec((out_ch, tile), lambda i: (0, i)),
            scratch_shapes=[pltpu.VMEM((input_ch, tile), jnp.float32)],
        ),
        compiler_params=pltpu.CompilerParams(
            dimension_semantics=("parallel",),
            vmem_limit_bytes=48 * 1024 * 1024),
    )(pts_t, scale_t, kind, phase, *flat)

    # Back to the module's (N, 33) contract (consumers wanting the feature-major
    # layout can take out_t directly and skip this transpose).
    return out_t[:, :n].T


# ------------------------------ pure-JAX reference ------------------------------
def reference_forward(points, params):
    dims, _ = network_dims()
    num_layers = len(dims)
    inp = embed_fn(points.astype(jnp.float32))
    x = inp
    for l in range(num_layers - 1):
        w, b = params[l]
        if l in SKIP_IN:
            x = jnp.concatenate([x, inp], axis=1) / np.sqrt(2.0)
        x = x @ w + b
        if l < num_layers - 2:
            x = _softplus_beta100(x)
    return x


# ------------------------------------ main --------------------------------------
if __name__ == "__main__":
    key = jax.random.PRNGKey(0)
    kp, kx = jax.random.split(key)
    params = init_params(kp)

    N = 256
    points = jax.random.normal(kx, (N, D_IN), jnp.float32)  # (N, 3) sample points

    out = jax.block_until_ready(implicit_network_forward(points, params))

    ref = reference_forward(points, params)
    np.testing.assert_allclose(np.asarray(out), np.asarray(ref), rtol=1e-4, atol=1e-4)

    # TODO(synk): gradient()/get_outputs() need autodiff through the kernel
    # (custom VJP / separate backward kernel); only forward() is implemented here.
    print("KERNEL_OK")
</pallas_src>

<mosaic_0001>
module attributes {stable_mosaic.version = 11 : i64} {
  func.func @kernel(%arg0: i32, %arg1: memref<8x256xf32, #tpu.memory_space<vmem>>, %arg2: memref<39x8xf32, #tpu.memory_space<vmem>>, %arg3: memref<39x1xi32, #tpu.memory_space<vmem>>, %arg4: memref<39x1xf32, #tpu.memory_space<vmem>>, %arg5: memref<64x39xf32, #tpu.memory_space<vmem>>, %arg6: memref<64x1xf32, #tpu.memory_space<vmem>>, %arg7: memref<25x64xf32, #tpu.memory_space<vmem>>, %arg8: memref<25x1xf32, #tpu.memory_space<vmem>>, %arg9: memref<64x25xf32, #tpu.memory_space<vmem>>, %arg10: memref<64x39xf32, #tpu.memory_space<vmem>>, %arg11: memref<64x1xf32, #tpu.memory_space<vmem>>, %arg12: memref<64x64xf32, #tpu.memory_space<vmem>>, %arg13: memref<64x1xf32, #tpu.memory_space<vmem>>, %arg14: memref<33x64xf32, #tpu.memory_space<vmem>>, %arg15: memref<33x1xf32, #tpu.memory_space<vmem>>, %arg16: memref<33x256xf32, #tpu.memory_space<vmem>>, %arg17: memref<39x256xf32, #tpu.memory_space<vmem>>) attributes {dimension_semantics = [#tpu.dimension_semantics<parallel>], iteration_bounds = array<i64: 1>, scalar_prefetch = 0 : i64, scratch_operands = 1 : i64, tpu.core_type = #tpu.core_type<tc>, window_params = [{transform_indices = @transform_0, window_bounds = array<i64: 8, 256>}, {pipeline_mode = #tpu.pipeline_mode<synchronous>, transform_indices = @transform_1, window_bounds = array<i64: 39, 8>}, {pipeline_mode = #tpu.pipeline_mode<synchronous>, transform_indices = @transform_2, window_bounds = array<i64: 39, 1>}, {pipeline_mode = #tpu.pipeline_mode<synchronous>, transform_indices = @transform_3, window_bounds = array<i64: 39, 1>}, {pipeline_mode = #tpu.pipeline_mode<synchronous>, transform_indices = @transform_4, window_bounds = array<i64: 64, 39>}, {pipeline_mode = #tpu.pipeline_mode<synchronous>, transform_indices = @transform_5, window_bounds = array<i64: 64, 1>}, {pipeline_mode = #tpu.pipeline_mode<synchronous>, transform_indices = @transform_6, window_bounds = array<i64: 25, 64>}, {pipeline_mode = #tpu.pipeline_mode<synchronous>, transform_indices = @transform_7, window_bounds = array<i64: 25, 1>}, {pipeline_mode = #tpu.pipeline_mode<synchronous>, transform_indices = @transform_8, window_bounds = array<i64: 64, 25>}, {pipeline_mode = #tpu.pipeline_mode<synchronous>, transform_indices = @transform_9, window_bounds = array<i64: 64, 39>}, {pipeline_mode = #tpu.pipeline_mode<synchronous>, transform_indices = @transform_10, window_bounds = array<i64: 64, 1>}, {pipeline_mode = #tpu.pipeline_mode<synchronous>, transform_indices = @transform_11, window_bounds = array<i64: 64, 64>}, {pipeline_mode = #tpu.pipeline_mode<synchronous>, transform_indices = @transform_12, window_bounds = array<i64: 64, 1>}, {pipeline_mode = #tpu.pipeline_mode<synchronous>, transform_indices = @transform_13, window_bounds = array<i64: 33, 64>}, {pipeline_mode = #tpu.pipeline_mode<synchronous>, transform_indices = @transform_14, window_bounds = array<i64: 33, 1>}, {transform_indices = @transform_15, window_bounds = array<i64: 33, 256>}]} {
    %c0 = arith.constant 0 : index
    %c0_0 = arith.constant 0 : index
    %0 = vector.load %arg1[%c0, %c0_0] : memref<8x256xf32, #tpu.memory_space<vmem>>, vector<8x256xf32>
    %c0_1 = arith.constant 0 : index
    %c0_2 = arith.constant 0 : index
    %1 = vector.load %arg2[%c0_1, %c0_2] : memref<39x8xf32, #tpu.memory_space<vmem>>, vector<39x8xf32>
    %cst = arith.constant dense<0.000000e+00> : vector<39x256xf32>
    %2 = tpu.matmul %1, %0, %cst {dimension_numbers = #tpu.dot_dimension_numbers<[1], [0], [0], [1], [0, 0, 1, 1], [], []>} : vector<39x8xf32>, vector<8x256xf32>, vector<39x256xf32> -> vector<39x256xf32>
    %c0_3 = arith.constant 0 : index
    %c0_4 = arith.constant 0 : index
    %3 = vector.load %arg3[%c0_3, %c0_4] : memref<39x1xi32, #tpu.memory_space<vmem>>, vector<39x1xi32>
    %c0_5 = arith.constant 0 : index
    %c0_6 = arith.constant 0 : index
    %4 = vector.load %arg4[%c0_5, %c0_6] : memref<39x1xf32, #tpu.memory_space<vmem>>, vector<39x1xf32>
    %c0_i32 = arith.constant 0 : i32
    %5 = vector.broadcast %c0_i32 : i32 to vector<39x1xi32>
    %6 = arith.cmpi eq, %3, %5 : vector<39x1xi32>
    %7 = vector.broadcast %4 : vector<39x1xf32> to vector<39x256xf32>
    %8 = arith.addf %2, %7 : vector<39x256xf32>
    %9 = math.sin %8 : vector<39x256xf32>
    %10 = vector.shape_cast %6 : vector<39x1xi1> to vector<39x1xi1>
    %11 = vector.broadcast %10 : vector<39x1xi1> to vector<39x256xi1>
    %12 = arith.select %11, %2, %9 : vector<39x256xi1>, vector<39x256xf32>
    %c0_7 = arith.constant 0 : index
    %c0_8 = arith.constant 0 : index
    %13 = vector.load %arg17[%c0_7, %c0_8] : memref<39x256xf32, #tpu.memory_space<vmem>>, vector<39x256xf32>
    tpu.vector_store %arg17[%c0_7, %c0_8], %12 {strides = array<i32>} : memref<39x256xf32, #tpu.memory_space<vmem>>, vector<39x256xf32>,
    %c0_9 = arith.constant 0 : index
    %c0_10 = arith.constant 0 : index
    %14 = vector.load %arg5[%c0_9, %c0_10] : memref<64x39xf32, #tpu.memory_space<vmem>>, vector<64x39xf32>
    %c0_11 = arith.constant 0 : index
    %c0_12 = arith.constant 0 : index
    %15 = vector.load %arg6[%c0_11, %c0_12] : memref<64x1xf32, #tpu.memory_space<vmem>>, vector<64x1xf32>
    %cst_13 = arith.constant dense<0.000000e+00> : vector<64x256xf32>
    %16 = tpu.matmul %14, %12, %cst_13 {dimension_numbers = #tpu.dot_dimension_numbers<[1], [0], [0], [1], [0, 0, 1, 1], [], []>} : vector<64x39xf32>, vector<39x256xf32>, vector<64x256xf32> -> vector<64x256xf32>
    %17 = vector.broadcast %15 : vector<64x1xf32> to vector<64x256xf32>
    %18 = arith.addf %16, %17 : vector<64x256xf32>
    %cst_14 = arith.constant 1.000000e+02 : f32
    %19 = vector.broadcast %cst_14 : f32 to vector<64x256xf32>
    %20 = arith.mulf %19, %18 : vector<64x256xf32>
    %cst_15 = arith.constant 2.000000e+01 : f32
    %21 = vector.broadcast %cst_15 : f32 to vector<64x256xf32>
    %22 = arith.cmpf ogt, %20, %21 : vector<64x256xf32>
    %cst_16 = arith.constant 2.000000e+01 : f32
    %23 = vector.broadcast %cst_16 : f32 to vector<64x256xf32>
    %24 = arith.minimumf %20, %23 : vector<64x256xf32>
    %25 = math.exp %24 : vector<64x256xf32>
    %26 = math.log1p %25 : vector<64x256xf32>
    %cst_17 = arith.constant 0.00999999977 : f32
    %27 = vector.broadcast %cst_17 : f32 to vector<64x256xf32>
    %28 = arith.mulf %26, %27 : vector<64x256xf32>
    %29 = arith.select %22, %18, %28 : vector<64x256xi1>, vector<64x256xf32>
    %c0_18 = arith.constant 0 : index
    %c0_19 = arith.constant 0 : index
    %30 = vector.load %arg7[%c0_18, %c0_19] : memref<25x64xf32, #tpu.memory_space<vmem>>, vector<25x64xf32>
    %c0_20 = arith.constant 0 : index
    %c0_21 = arith.constant 0 : index
    %31 = vector.load %arg8[%c0_20, %c0_21] : memref<25x1xf32, #tpu.memory_space<vmem>>, vector<25x1xf32>
    %cst_22 = arith.constant dense<0.000000e+00> : vector<25x256xf32>
    %32 = tpu.matmul %30, %29, %cst_22 {dimension_numbers = #tpu.dot_dimension_numbers<[1], [0], [0], [1], [0, 0, 1, 1], [], []>} : vector<25x64xf32>, vector<64x256xf32>, vector<25x256xf32> -> vector<25x256xf32>
    %33 = vector.broadcast %31 : vector<25x1xf32> to vector<25x256xf32>
    %34 = arith.addf %32, %33 : vector<25x256xf32>
    %cst_23 = arith.constant 1.000000e+02 : f32
    %35 = vector.broadcast %cst_23 : f32 to vector<25x256xf32>
    %36 = arith.mulf %35, %34 : vector<25x256xf32>
    %cst_24 = arith.constant 2.000000e+01 : f32
    %37 = vector.broadcast %cst_24 : f32 to vector<25x256xf32>
    %38 = arith.cmpf ogt, %36, %37 : vector<25x256xf32>
    %cst_25 = arith.constant 2.000000e+01 : f32
    %39 = vector.broadcast %cst_25 : f32 to vector<25x256xf32>
    %40 = arith.minimumf %36, %39 : vector<25x256xf32>
    %41 = math.exp %40 : vector<25x256xf32>
    %42 = math.log1p %41 : vector<25x256xf32>
    %cst_26 = arith.constant 0.00999999977 : f32
    %43 = vector.broadcast %cst_26 : f32 to vector<25x256xf32>
    %44 = arith.mulf %42, %43 : vector<25x256xf32>
    %45 = arith.select %38, %34, %44 : vector<25x256xi1>, vector<25x256xf32>
    %c0_27 = arith.constant 0 : index
    %c0_28 = arith.constant 0 : index
    %46 = vector.load %arg9[%c0_27, %c0_28] : memref<64x25xf32, #tpu.memory_space<vmem>>, vector<64x25xf32>
    %c0_29 = arith.constant 0 : index
    %c0_30 = arith.constant 0 : index
    %47 = vector.load %arg10[%c0_29, %c0_30] : memref<64x39xf32, #tpu.memory_space<vmem>>, vector<64x39xf32>
    %c0_31 = arith.constant 0 : index
    %c0_32 = arith.constant 0 : index
    %48 = vector.load %arg11[%c0_31, %c0_32] : memref<64x1xf32, #tpu.memory_space<vmem>>, vector<64x1xf32>
    %c0_33 = arith.constant 0 : index
    %c0_34 = arith.constant 0 : index
    %49 = vector.load %arg17[%c0_33, %c0_34] : memref<39x256xf32, #tpu.memory_space<vmem>>, vector<39x256xf32>
    %cst_35 = arith.constant dense<0.000000e+00> : vector<64x256xf32>
    %50 = tpu.matmul %46, %45, %cst_35 {dimension_numbers = #tpu.dot_dimension_numbers<[1], [0], [0], [1], [0, 0, 1, 1], [], []>} : vector<64x25xf32>, vector<25x256xf32>, vector<64x256xf32> -> vector<64x256xf32>
    %cst_36 = arith.constant dense<0.000000e+00> : vector<64x256xf32>
    %51 = tpu.matmul %47, %49, %cst_36 {dimension_numbers = #tpu.dot_dimension_numbers<[1], [0], [0], [1], [0, 0, 1, 1], [], []>} : vector<64x39xf32>, vector<39x256xf32>, vector<64x256xf32> -> vector<64x256xf32>
    %52 = arith.addf %50, %51 : vector<64x256xf32>
    %53 = vector.broadcast %48 : vector<64x1xf32> to vector<64x256xf32>
    %54 = arith.addf %52, %53 : vector<64x256xf32>
    %cst_37 = arith.constant 1.000000e+02 : f32
    %55 = vector.broadcast %cst_37 : f32 to vector<64x256xf32>
    %56 = arith.mulf %55, %54 : vector<64x256xf32>
    %cst_38 = arith.constant 2.000000e+01 : f32
    %57 = vector.broadcast %cst_38 : f32 to vector<64x256xf32>
    %58 = arith.cmpf ogt, %56, %57 : vector<64x256xf32>
    %cst_39 = arith.constant 2.000000e+01 : f32
    %59 = vector.broadcast %cst_39 : f32 to vector<64x256xf32>
    %60 = arith.minimumf %56, %59 : vector<64x256xf32>
    %61 = math.exp %60 : vector<64x256xf32>
    %62 = math.log1p %61 : vector<64x256xf32>
    %cst_40 = arith.constant 0.00999999977 : f32
    %63 = vector.broadcast %cst_40 : f32 to vector<64x256xf32>
    %64 = arith.mulf %62, %63 : vector<64x256xf32>
    %65 = arith.select %58, %54, %64 : vector<64x256xi1>, vector<64x256xf32>
    %c0_41 = arith.constant 0 : index
    %c0_42 = arith.constant 0 : index
    %66 = vector.load %arg12[%c0_41, %c0_42] : memref<64x64xf32, #tpu.memory_space<vmem>>, vector<64x64xf32>
    %c0_43 = arith.constant 0 : index
    %c0_44 = arith.constant 0 : index
    %67 = vector.load %arg13[%c0_43, %c0_44] : memref<64x1xf32, #tpu.memory_space<vmem>>, vector<64x1xf32>
    %cst_45 = arith.constant dense<0.000000e+00> : vector<64x256xf32>
    %68 = tpu.matmul %66, %65, %cst_45 {dimension_numbers = #tpu.dot_dimension_numbers<[1], [0], [0], [1], [0, 0, 1, 1], [], []>} : vector<64x64xf32>, vector<64x256xf32>, vector<64x256xf32> -> vector<64x256xf32>
    %69 = vector.broadcast %67 : vector<64x1xf32> to vector<64x256xf32>
    %70 = arith.addf %68, %69 : vector<64x256xf32>
    %cst_46 = arith.constant 1.000000e+02 : f32
    %71 = vector.broadcast %cst_46 : f32 to vector<64x256xf32>
    %72 = arith.mulf %71, %70 : vector<64x256xf32>
    %cst_47 = arith.constant 2.000000e+01 : f32
    %73 = vector.broadcast %cst_47 : f32 to vector<64x256xf32>
    %74 = arith.cmpf ogt, %72, %73 : vector<64x256xf32>
    %cst_48 = arith.constant 2.000000e+01 : f32
    %75 = vector.broadcast %cst_48 : f32 to vector<64x256xf32>
    %76 = arith.minimumf %72, %75 : vector<64x256xf32>
    %77 = math.exp %76 : vector<64x256xf32>
    %78 = math.log1p %77 : vector<64x256xf32>
    %cst_49 = arith.constant 0.00999999977 : f32
    %79 = vector.broadcast %cst_49 : f32 to vector<64x256xf32>
    %80 = arith.mulf %78, %79 : vector<64x256xf32>
    %81 = arith.select %74, %70, %80 : vector<64x256xi1>, vector<64x256xf32>
    %c0_50 = arith.constant 0 : index
    %c0_51 = arith.constant 0 : index
    %82 = vector.load %arg14[%c0_50, %c0_51] : memref<33x64xf32, #tpu.memory_space<vmem>>, vector<33x64xf32>
    %c0_52 = arith.constant 0 : index
    %c0_53 = arith.constant 0 : index
    %83 = vector.load %arg15[%c0_52, %c0_53] : memref<33x1xf32, #tpu.memory_space<vmem>>, vector<33x1xf32>
    %cst_54 = arith.constant dense<0.000000e+00> : vector<33x256xf32>
    %84 = tpu.matmul %82, %81, %cst_54 {dimension_numbers = #tpu.dot_dimension_numbers<[1], [0], [0], [1], [0, 0, 1, 1], [], []>} : vector<33x64xf32>, vector<64x256xf32>, vector<33x256xf32> -> vector<33x256xf32>
    %85 = vector.broadcast %83 : vector<33x1xf32> to vector<33x256xf32>
    %86 = arith.addf %84, %85 : vector<33x256xf32>
    %c0_55 = arith.constant 0 : index
    %c0_56 = arith.constant 0 : index
    %87 = vector.load %arg16[%c0_55, %c0_56] : memref<33x256xf32, #tpu.memory_space<vmem>>, vector<33x256xf32>
    tpu.vector_store %arg16[%c0_55, %c0_56], %86 {strides = array<i32>} : memref<33x256xf32, #tpu.memory_space<vmem>>, vector<33x256xf32>,
    return
  }
  func.func @transform_0(%arg0: i32) -> (i32, i32) {
    %c0_i32 = arith.constant 0 : i32
    %c0_i32_0 = arith.constant 0 : i32
    return %c0_i32, %arg0 : i32, i32
  }
  func.func @transform_1(%arg0: i32) -> (i32, i32) {
    %c0_i32 = arith.constant 0 : i32
    %c0_i32_0 = arith.constant 0 : i32
    %c0_i32_1 = arith.constant 0 : i32
    return %c0_i32, %c0_i32_0 : i32, i32
  }
  func.func @transform_2(%arg0: i32) -> (i32, i32) {
    %c0_i32 = arith.constant 0 : i32
    %c0_i32_0 = arith.constant 0 : i32
    %c0_i32_1 = arith.constant 0 : i32
    return %c0_i32, %c0_i32_0 : i32, i32
  }
  func.func @transform_3(%arg0: i32) -> (i32, i32) {
    %c0_i32 = arith.constant 0 : i32
    %c0_i32_0 = arith.constant 0 : i32
    %c0_i32_1 = arith.constant 0 : i32
    return %c0_i32, %c0_i32_0 : i32, i32
  }
  func.func @transform_4(%arg0: i32) -> (i32, i32) {
    %c0_i32 = arith.constant 0 : i32
    %c0_i32_0 = arith.constant 0 : i32
    %c0_i32_1 = arith.constant 0 : i32
    return %c0_i32, %c0_i32_0 : i32, i32
  }
  func.func @transform_5(%arg0: i32) -> (i32, i32) {
    %c0_i32 = arith.constant 0 : i32
    %c0_i32_0 = arith.constant 0 : i32
    %c0_i32_1 = arith.constant 0 : i32
    return %c0_i32, %c0_i32_0 : i32, i32
  }
  func.func @transform_6(%arg0: i32) -> (i32, i32) {
    %c0_i32 = arith.constant 0 : i32
    %c0_i32_0 = arith.constant 0 : i32
    %c0_i32_1 = arith.constant 0 : i32
    return %c0_i32, %c0_i32_0 : i32, i32
  }
  func.func @transform_7(%arg0: i32) -> (i32, i32) {
    %c0_i32 = arith.constant 0 : i32
    %c0_i32_0 = arith.constant 0 : i32
    %c0_i32_1 = arith.constant 0 : i32
    return %c0_i32, %c0_i32_0 : i32, i32
  }
  func.func @transform_8(%arg0: i32) -> (i32, i32) {
    %c0_i32 = arith.constant 0 : i32
    %c0_i32_0 = arith.constant 0 : i32
    %c0_i32_1 = arith.constant 0 : i32
    return %c0_i32, %c0_i32_0 : i32, i32
  }
  func.func @transform_9(%arg0: i32) -> (i32, i32) {
    %c0_i32 = arith.constant 0 : i32
    %c0_i32_0 = arith.constant 0 : i32
    %c0_i32_1 = arith.constant 0 : i32
    return %c0_i32, %c0_i32_0 : i32, i32
  }
  func.func @transform_10(%arg0: i32) -> (i32, i32) {
    %c0_i32 = arith.constant 0 : i32
    %c0_i32_0 = arith.constant 0 : i32
    %c0_i32_1 = arith.constant 0 : i32
    return %c0_i32, %c0_i32_0 : i32, i32
  }
  func.func @transform_11(%arg0: i32) -> (i32, i32) {
    %c0_i32 = arith.constant 0 : i32
    %c0_i32_0 = arith.constant 0 : i32
    %c0_i32_1 = arith.constant 0 : i32
    return %c0_i32, %c0_i32_0 : i32, i32
  }
  func.func @transform_12(%arg0: i32) -> (i32, i32) {
    %c0_i32 = arith.constant 0 : i32
    %c0_i32_0 = arith.constant 0 : i32
    %c0_i32_1 = arith.constant 0 : i32
    return %c0_i32, %c0_i32_0 : i32, i32
  }
  func.func @transform_13(%arg0: i32) -> (i32, i32) {
    %c0_i32 = arith.constant 0 : i32
    %c0_i32_0 = arith.constant 0 : i32
    %c0_i32_1 = arith.constant 0 : i32
    return %c0_i32, %c0_i32_0 : i32, i32
  }
  func.func @transform_14(%arg0: i32) -> (i32, i32) {
    %c0_i32 = arith.constant 0 : i32
    %c0_i32_0 = arith.constant 0 : i32
    %c0_i32_1 = arith.constant 0 : i32
    return %c0_i32, %c0_i32_0 : i32, i32
  }
  func.func @transform_15(%arg0: i32) -> (i32, i32) {
    %c0_i32 = arith.constant 0 : i32
    %c0_i32_0 = arith.constant 0 : i32
    return %c0_i32, %arg0 : i32, i32
  }
}

</mosaic_0001>

<llo_original>
// kernel: tpu_custom_call.1
$region0: #{tpu_custom_call.1}
  #allocation0 [shape = 'u32[]', space=smem, size = 0x4, offset = 0x4, fixed_abs, tag = 'smem constant byte address 0x4 - core index']
  #allocation1 [shape = 'u32[144,128]{1,0:T(1,128)}', space=vmem, size = 0x12000, scoped, tag = 'internal scratch']
  #allocation2 [shape = 'f32[39,256]{1,0:T(8,128)}', space=vmem, size = 0xa000, scoped, tag = 'scratch operand']
  %s0 = inlined_call_operand.vmem [shape: f32[8,256], index: 0, kind: input, shape index: {}]
  %s1 = inlined_call_operand.vmem [shape: f32[39,8], index: 1, kind: input, shape index: {}]
  %s2 = inlined_call_operand.vmem [shape: s32[39,1], index: 2, kind: input, shape index: {}]
  %s3 = inlined_call_operand.vmem [shape: f32[39,1], index: 3, kind: input, shape index: {}]
  %s4 = inlined_call_operand.vmem [shape: f32[64,39], index: 4, kind: input, shape index: {}]
  %s5 = inlined_call_operand.vmem [shape: f32[64,1], index: 5, kind: input, shape index: {}]
  %s6 = inlined_call_operand.vmem [shape: f32[25,64], index: 6, kind: input, shape index: {}]
  %s7 = inlined_call_operand.vmem [shape: f32[25,1], index: 7, kind: input, shape index: {}]
  %s8 = inlined_call_operand.vmem [shape: f32[64,25], index: 8, kind: input, shape index: {}]
  %s9 = inlined_call_operand.vmem [shape: f32[64,39], index: 9, kind: input, shape index: {}]
  %s10 = inlined_call_operand.vmem [shape: f32[64,1], index: 10, kind: input, shape index: {}]
  %s11 = inlined_call_operand.vmem [shape: f32[64,64], index: 11, kind: input, shape index: {}]
  %s12 = inlined_call_operand.vmem [shape: f32[64,1], index: 12, kind: input, shape index: {}]
  %s13 = inlined_call_operand.vmem [shape: f32[33,64], index: 13, kind: input, shape index: {}]
  %s14 = inlined_call_operand.vmem [shape: f32[33,1], index: 14, kind: input, shape index: {}]
  %s15 = inlined_call_operand.hbm [shape: f32[33,256], index: 15, kind: output, shape index: {}]
  %s16 = sld [smem:[#allocation0]]
  $region70: #{tpu_custom_call.1} parent=0
    _
  %s18 = ssub.s32 1, %s16
  %s19 = scalar_select 0, %s18, %s16
  $region1: #{tpu_custom_call.1} parent=0
    #allocation3 [shape = 'u8[40960]{0}', space=vmem, size = 0xa000, scoped, tag = 'output window, operand 0, single buffered']
    #allocation4 [shape = 's32[1]{0}', space=sflag, size = 0x4, scoped, tag = 'scoped memory for tpu_custom_call.1']
    %20 = vsyncpa [#allocation4], 0
    // Predicated region
    $region2: #{tpu_custom_call.1} parent=1 // pred_check
      _
    $region3: #{tpu_custom_call.1} parent=1 // pred_check_branch
      %22 = sbr.rel (0) target = $region5
    $region4: #{tpu_custom_call.1} parent=1 // pred_region
      _
    $region5: #{tpu_custom_call.1} parent=1 // pred_fallthru
      _
    // Predicated region
    $region6: #{tpu_custom_call.1} parent=1 // pred_check
      _
    $region7: #{tpu_custom_call.1} parent=1 // pred_check_branch
      %24 = sbr.rel (0) target = $region9
    $region8: #{tpu_custom_call.1} parent=1 // pred_region
      _
    $region9: #{tpu_custom_call.1} parent=1 // pred_fallthru
      _
    // Predicated region
    $region10: #{tpu_custom_call.1} parent=1 // pred_check
      _
    $region11: #{tpu_custom_call.1} parent=1 // pred_check_branch
      %26 = sbr.rel (0) target = $region13
    $region12: #{tpu_custom_call.1} parent=1 // pred_region
      _
    $region13: #{tpu_custom_call.1} parent=1 // pred_fallthru
      _
    // Predicated region
    $region14: #{tpu_custom_call.1} parent=1 // pred_check
      _
    $region15: #{tpu_custom_call.1} parent=1 // pred_check_branch
      %28 = sbr.rel (0) target = $region17
    $region16: #{tpu_custom_call.1} parent=1 // pred_region
      _
    $region17: #{tpu_custom_call.1} parent=1 // pred_fallthru
      _
    // Predicated region
    $region18: #{tpu_custom_call.1} parent=1 // pred_check
      _
    $region19: #{tpu_custom_call.1} parent=1 // pred_check_branch
      %30 = sbr.rel (0) target = $region21
    $region20: #{tpu_custom_call.1} parent=1 // pred_region
      _
    $region21: #{tpu_custom_call.1} parent=1 // pred_fallthru
      _
    // Predicated region
    $region22: #{tpu_custom_call.1} parent=1 // pred_check
      _
    $region23: #{tpu_custom_call.1} parent=1 // pred_check_branch
      %32 = sbr.rel (0) target = $region25
    $region24: #{tpu_custom_call.1} parent=1 // pred_region
      _
    $region25: #{tpu_custom_call.1} parent=1 // pred_fallthru
      _
    // Predicated region
    $region26: #{tpu_custom_call.1} parent=1 // pred_check
      _
    $region27: #{tpu_custom_call.1} parent=1 // pred_check_branch
      %34 = sbr.rel (0) target = $region29
    $region28: #{tpu_custom_call.1} parent=1 // pred_region
      _
    $region29: #{tpu_custom_call.1} parent=1 // pred_fallthru
      _
    // Predicated region
    $region30: #{tpu_custom_call.1} parent=1 // pred_check
      _
    $region31: #{tpu_custom_call.1} parent=1 // pred_check_branch
      %36 = sbr.rel (0) target = $region33
    $region32: #{tpu_custom_call.1} parent=1 // pred_region
      _
    $region33: #{tpu_custom_call.1} parent=1 // pred_fallthru
      _
    // Predicated region
    $region34: #{tpu_custom_call.1} parent=1 // pred_check
      _
    $region35: #{tpu_custom_call.1} parent=1 // pred_check_branch
      %38 = sbr.rel (0) target = $region37
    $region36: #{tpu_custom_call.1} parent=1 // pred_region
      _
    $region37: #{tpu_custom_call.1} parent=1 // pred_fallthru
      _
    // Predicated region
    $region38: #{tpu_custom_call.1} parent=1 // pred_check
      _
    $region39: #{tpu_custom_call.1} parent=1 // pred_check_branch
      %40 = sbr.rel (0) target = $region41
    $region40: #{tpu_custom_call.1} parent=1 // pred_region
      _
    $region41: #{tpu_custom_call.1} parent=1 // pred_fallthru
      _
    // Predicated region
    $region42: #{tpu_custom_call.1} parent=1 // pred_check
      _
    $region43: #{tpu_custom_call.1} parent=1 // pred_check_branch
      %42 = sbr.rel (0) target = $region45
    $region44: #{tpu_custom_call.1} parent=1 // pred_region
      _
    $region45: #{tpu_custom_call.1} parent=1 // pred_fallthru
      _
    // Predicated region
    $region46: #{tpu_custom_call.1} parent=1 // pred_check
      _
    $region47: #{tpu_custom_call.1} parent=1 // pred_check_branch
      %44 = sbr.rel (0) target = $region49
    $region48: #{tpu_custom_call.1} parent=1 // pred_region
      _
    $region49: #{tpu_custom_call.1} parent=1 // pred_fallthru
      _
    // Predicated region
    $region50: #{tpu_custom_call.1} parent=1 // pred_check
      _
    $region51: #{tpu_custom_call.1} parent=1 // pred_check_branch
      %46 = sbr.rel (0) target = $region53
    $region52: #{tpu_custom_call.1} parent=1 // pred_region
      _
    $region53: #{tpu_custom_call.1} parent=1 // pred_fallthru
      _
    // Predicated region
    $region54: #{tpu_custom_call.1} parent=1 // pred_check
      _
    $region55: #{tpu_custom_call.1} parent=1 // pred_check_branch
      %48 = sbr.rel (0) target = $region57
    $region56: #{tpu_custom_call.1} parent=1 // pred_region
      _
    $region57: #{tpu_custom_call.1} parent=1 // pred_fallthru
      _
    // Predicated region
    $region58: #{tpu_custom_call.1} parent=1 // pred_check
      _
    $region59: #{tpu_custom_call.1} parent=1 // pred_check_branch
      %50 = sbr.rel (0) target = $region61
    $region60: #{tpu_custom_call.1} parent=1 // pred_region
      _
    $region61: #{tpu_custom_call.1} parent=1 // pred_fallthru
      _
    %v51 = vld [vmem:[%s0] sm:$0xff]
    %v52 = vld [vmem:[%s0 + $0x8] sm:$0xff]
    %v53 = vld [vmem:[%s1] sm:$0xff]
    %v54 = vld [vmem:[%s1 + $0x8] sm:$0xff]
    %v55 = vld [vmem:[%s1 + $0x10] sm:$0xff]
    %v56 = vld [vmem:[%s1 + $0x18] sm:$0xff]
    %v57 = vld [vmem:[%s1 + $0x20] sm:$0x7f]
    %vm58 = vcmask 64512
    %v60 = vsel %vm58, %v53, 0
    %v63 = vsel %vm58, %v54, 0
    %v66 = vsel %vm58, %v55, 0
    %v69 = vsel %vm58, %v56, 0
    %v72 = vsel %vm58, %v57, 0
    %74 = vmatprep.subr.mxu0 0.0
    %75 = vmatpush1.msra.mxu0 0.0
    %76 = vmatprep.subr.mxu0 0.0
    %77 = vmatpush1.msra.mxu0 0.0
    %78 = vmatprep.subr.mxu0 0.0
    %79 = vmatpush1.msra.mxu0 0.0
    %80 = vmatprep.subr.mxu0 0.0
    %81 = vmatpush1.msra.mxu0 0.0
    %82 = vmatprep.subr.mxu0 0.0
    %83 = vmatpush1.msra.mxu0 0.0
    %84 = vmatprep.subr.mxu0 0.0
    %85 = vmatpush1.msra.mxu0 0.0
    %86 = vmatprep.subr.mxu0 0.0
    %87 = vmatpush1.msra.mxu0 0.0
    %88 = vmatprep.subr.mxu0 0.0
    %89 = vmatpush1.msra.mxu0 0.0
    %90 = vmatprep.subr.mxu0 0.0
    %91 = vmatpush1.msra.mxu0 0.0
    %92 = vmatprep.subr.mxu0 0.0
    %93 = vmatpush1.msra.mxu0 0.0
    %94 = vmatprep.subr.mxu0 0.0
    %95 = vmatpush1.msra.mxu0 0.0
    %96 = vmatprep.subr.mxu0 0.0
    %97 = vmatpush1.msra.mxu0 0.0
    %98 = vmatprep.subr.mxu0 0.0
    %99 = vmatpush1.msra.mxu0 0.0
    %100 = vmatprep.subr.mxu0 0.0
    %101 = vmatpush1.msra.mxu0 0.0
    %102 = vmatprep.subr.mxu0 0.0
    %103 = vmatpush1.msra.mxu0 0.0
    %104 = vmatprep.subr.mxu0 %v52
    %105 = vmatpush1.msra.mxu0 %v51
    %106 = vmatprep.subr.mxu0 0.0
    %107 = vmatpush2.msra.mxu0 0.0
    %108 = vmatprep.subr.mxu0 0.0
    %109 = vmatpush2.msra.mxu0 0.0
    %110 = vmatprep.subr.mxu0 0.0
    %111 = vmatpush2.msra.mxu0 0.0
    %112 = vmatprep.subr.mxu0 0.0
    %113 = vmatpush2.msra.mxu0 0.0
    %114 = vmatprep.subr.mxu0 0.0
    %115 = vmatpush2.msra.mxu0 0.0
    %116 = vmatprep.subr.mxu0 0.0
    %117 = vmatpush2.msra.mxu0 0.0
    %118 = vmatprep.subr.mxu0 0.0
    %119 = vmatpush2.msra.mxu0 0.0
    %120 = vmatprep.subr.mxu0 0.0
    %121 = vmatpush2.msra.mxu0 0.0
    %122 = vmatprep.subr.mxu0 0.0
    %123 = vmatpush2.msra.mxu0 0.0
    %124 = vmatprep.subr.mxu0 0.0
    %125 = vmatpush2.msra.mxu0 0.0
    %126 = vmatprep.subr.mxu0 0.0
    %127 = vmatpush2.msra.mxu0 0.0
    %128 = vmatprep.subr.mxu0 0.0
    %129 = vmatpush2.msra.mxu0 0.0
    %130 = vmatprep.subr.mxu0 0.0
    %131 = vmatpush2.msra.mxu0 0.0
    %132 = vmatprep.subr.mxu0 0.0
    %133 = vmatpush2.msra.mxu0 0.0
    %134 = vmatprep.subr.mxu0 0.0
    %135 = vmatpush2.msra.mxu0 0.0
    %136 = vmatprep.subr.mxu0 0.0
    %137 = vmatpush2.msra.mxu0 0.0
    %138 = vmatprep.mubr.f32.mxu0 0.0
    %139 = vmatmul.mubr.f32.gmra.mxu0 %v60
    %v140 = vpop.f32.mrf.mxu0
    %v141 = vadd.f32 0.0, %v140
    %v142 = vpop.f32.mrf.mxu0
    %v143 = vadd.f32 0.0, %v142
    %144 = vmatprep.mubr.f32.mxu0 0.0
    %145 = vmatmul.mubr.f32.gmra.mxu0 %v63
    %v146 = vpop.f32.mrf.mxu0
    %v147 = vadd.f32 0.0, %v146
    %v148 = vpop.f32.mrf.mxu0
    %v149 = vadd.f32 0.0, %v148
    %150 = vmatprep.mubr.f32.mxu0 0.0
    %151 = vmatmul.mubr.f32.gmra.mxu0 %v66
    %v152 = vpop.f32.mrf.mxu0
    %v153 = vadd.f32 0.0, %v152
    %v154 = vpop.f32.mrf.mxu0
    %v155 = vadd.f32 0.0, %v154
    %156 = vmatprep.mubr.f32.mxu0 0.0
    %157 = vmatmul.mubr.f32.gmra.mxu0 %v69
    %v158 = vpop.f32.mrf.mxu0
    %v159 = vadd.f32 0.0, %v158
    %v160 = vpop.f32.mrf.mxu0
    %v161 = vadd.f32 0.0, %v160
    %162 = vmatprep.mubr.f32.mxu0 0.0
    %163 = vmatmul.mubr.f32.gmra.mxu0 %v72
    %v164 = vpop.f32.mrf.mxu0
    %v165 = vadd.f32 0.0, %v164
    %v166 = vpop.f32.mrf.mxu0
    %v167 = vadd.f32 0.0, %v166
    %168 = vdwg.mxu0
    %v169 = vld [vmem:[%s2] sm:$0xff]
    %v170 = vld [vmem:[%s2 + $0x8] sm:$0xff]
    %v171 = vld [vmem:[%s2 + $0x10] sm:$0xff]
    %v172 = vld [vmem:[%s2 + $0x18] sm:$0xff]
    %v173 = vld [vmem:[%s2 + $0x20] sm:$0x7f]
    %v174 = vld [vmem:[%s3] sm:$0xff]
    %v175 = vld [vmem:[%s3 + $0x8] sm:$0xff]
    %v176 = vld [vmem:[%s3 + $0x10] sm:$0xff]
    %v177 = vld [vmem:[%s3 + $0x18] sm:$0xff]
    %v178 = vld [vmem:[%s3 + $0x20] sm:$0x7f]
    %vm179 = vcmp.eq.s32.totalorder %v169, 0
    %vm180 = vcmp.eq.s32.totalorder %v170, 0
    %vm181 = vcmp.eq.s32.totalorder %v171, 0
    %vm182 = vcmp.eq.s32.totalorder %v172, 0
    %vm183 = vcmp.eq.s32.totalorder %v173, 0
    %185 = vset.pattern.permute.xlu0 0
    %186 = vperm.xlu0 %185, %v174
    %v187 = vpop.permute.xlu0 %186
    %190 = vset.pattern.permute.xlu0 0
    %191 = vperm.xlu0 %190, %v175
    %v192 = vpop.permute.xlu0 %191
    %195 = vset.pattern.permute.xlu0 0
    %196 = vperm.xlu0 %195, %v176
    %v197 = vpop.permute.xlu0 %196
    %200 = vset.pattern.permute.xlu0 0
    %201 = vperm.xlu0 %200, %v177
    %v202 = vpop.permute.xlu0 %201
    %205 = vset.pattern.permute.xlu0 0
    %206 = vperm.xlu0 %205, %v178
    %v207 = vpop.permute.xlu0 %206
    %v209 = vadd.f32 %v141, %v187
    %v210 = vadd.f32 %v143, %v187
    %v211 = vadd.f32 %v147, %v192
    %v212 = vadd.f32 %v149, %v192
    %v213 = vadd.f32 %v153, %v197
    %v214 = vadd.f32 %v155, %v197
    %v215 = vadd.f32 %v159, %v202
    %v216 = vadd.f32 %v161, %v202
    %v217 = vadd.f32 %v165, %v207
    %v218 = vadd.f32 %v167, %v207
    %v219 = vand.u32 2147483647, %v209
    %vm220 = vcmp.le.f32.partialorder %v219, 0.7853982
    %vm221 = vcmp.lt.s32.totalorder %v209, 0
    %v222 = vand.u32 %v209, 2139095040
    %v223 = vshrl.u32 %v222, 23
    %v224 = vsub.s32 %v223, 127
    %v225 = vand.u32 2147483647, %v209
    %v226 = vand.u32 %v225, 8388607
    %v227 = vor.u32 %v226, 8388608
    %v228 = vsub.s32 0, %v227
    %v229 = vadd.s32 %v224, 1
    %vm230 = vcmp.gt.s32.totalorder %v229, 0
    %v231 = vsel %vm230, %v229, 0
    %v232 = vshrl.u32 %v231, 5
    %v233 = vand.u32 %v231, 31
    %v234 = vsub.s32 32, %v233
    %v235 = vshrl.u32 683565275, %v234
    %v236 = vshll.u32 683565275, %v233
    %v237 = vshrl.u32 2475754826, %v234
    %v238 = vor.u32 %v236, %v237
    %v239 = vshll.u32 2475754826, %v233
    %v240 = vshrl.u32 2131351028, %v234
    %v241 = vor.u32 %v239, %v240
    %v242 = vshll.u32 2131351028, %v233
    %v243 = vshrl.u32 2102212464, %v234
    %v244 = vor.u32 %v242, %v243
    %v245 = vshll.u32 2102212464, %v233
    %v246 = vshrl.u32 920167782, %v234
    %v247 = vor.u32 %v245, %v246
    %v248 = vshll.u32 920167782, %v233
    %v249 = vshrl.u32 1326507024, %v234
    %v250 = vor.u32 %v248, %v249
    %vm251 = vcmp.lt.s32.totalorder %v232, 1
    %vm252 = vcmp.lt.s32.totalorder %v232, 2
    %vm253 = vcmp.lt.s32.totalorder %v232, 3
    %vm254 = vcmp.lt.s32.totalorder %v232, 4
    %v255 = vsel %vm251, %v235, %v238
    %v256 = vsel %vm254, %v244, 2102212464
    %v257 = vsel %vm253, %v241, %v256
    %v258 = vsel %vm252, %v255, %v257
    %v259 = vsel %vm251, %v238, %v241
    %v260 = vsel %vm254, %v247, 920167782
    %v261 = vsel %vm253, %v244, %v260
    %v262 = vsel %vm252, %v259, %v261
    %v263 = vsel %vm251, %v241, %v244
    %v264 = vsel %vm254, %v250, 1326507024
    %v265 = vsel %vm253, %v247, %v264
    %v266 = vsel %vm252, %v263, %v265
    %v267 = vshll.u32 %v227, 8
    %v268 = vmul.u32.u64.compose %v267, %v266
    %v269 = vextract.low.u32 %v268
    %v270 = vextract.high.u32 %v268
    %v271 = vmul.u32.u64.compose %v267, %v262
    %v272 = vextract.low.u32 %v271
    %v273 = vextract.high.u32 %v271
    %v274 = vmul.u32 %v267, %v258
    %v275 = vadd.s32 %v270, %v272
    %vm276 = vc.u32 %v270, %v272
    %v277 = vadd.s32 %v273, 1
    %v278 = vsel %vm276, %v277, %v273
    %v279 = vadd.s32 %v274, %v278
    %v280 = vadd.s32 %v279, 536870912
    %v281 = vshrl.u32 %v280, 30
    %v282 = vshll.u32 %v281, 30
    %v283 = vsub.s32 %v279, %v282
    %vm284 = vcmp.lt.s32.totalorder %v283, 0
    %v285 = vsub.s32 0, %v283
    %v286 = vsel %vm284, %v285, %v283
    %v287 = vclz %v286
    %v288 = vsub.s32 %v287, 2
    %vm289 = vcmp.gt.s32.totalorder 0, %v288
    %v290 = vsel %vm289, 0, %v288
    %v291 = vsub.s32 32, %v290
    %v292 = vshll.u32 %v283, %v290
    %v293 = vshrl.u32 %v275, %v291
    %v294 = vor.u32 %v292, %v293
    %v295 = vsub.s32 4294967266, %v290
    %v296 = vadd.s32 %v295, 127
    %v297 = vshll.u32 %v296, 23
    %v298 = vor.u32 4788187, %v297
    %v299 = vand.u32 2147483647, %v298
    %v301 = vcvt.s32.f32 %v294
    %v302 = vmul.f32 %v301, %v299
    %v303 = vxor.u32 %v302, 2147483648
    %v304 = vsel %vm221, %v303, %v302
    %v305 = vsub.s32 4, %v281
    %v306 = vsel %vm221, %v305, %v281
    %v307 = vsel %vm220, %v209, %v304
    %v308 = vsel %vm220, 0, %v306
    %v309 = vcosq.f32.pop %v307
    %v310 = vsinq.f32.pop %v307
    %vm311 = vweird.f32 %v209
    %v312 = vadd.s32 %v308, 3
    %v313 = vand.u32 %v312, 3
    %vm314 = vcmp.lt.s32.totalorder %v313, 2
    %vm315 = vcmp.eq.s32.totalorder %v313, 0
    %v316 = vxor.u32 %v310, 2147483648
    %v317 = vsel %vm315, %v309, %v316
    %vm318 = vcmp.eq.s32.totalorder %v313, 2
    %v319 = vxor.u32 %v309, 2147483648
    %v320 = vsel %vm318, %v319, %v310
    %v321 = vsel %vm314, %v317, %v320
    %v322 = vsel %vm311, nan, %v321
    %v323 = vand.u32 2147483647, %v210
    %vm324 = vcmp.le.f32.partialorder %v323, 0.7853982
    %vm325 = vcmp.lt.s32.totalorder %v210, 0
    %v326 = vand.u32 %v210, 2139095040
    %v327 = vshrl.u32 %v326, 23
    %v328 = vsub.s32 %v327, 127
    %v329 = vand.u32 2147483647, %v210
    %v330 = vand.u32 %v329, 8388607
    %v331 = vor.u32 %v330, 8388608
    %v332 = vsub.s32 0, %v331
    %v333 = vadd.s32 %v328, 1
    %vm334 = vcmp.gt.s32.totalorder %v333, 0
    %v335 = vsel %vm334, %v333, 0
    %v336 = vshrl.u32 %v335, 5
    %v337 = vand.u32 %v335, 31
    %v338 = vsub.s32 32, %v337
    %v339 = vshrl.u32 683565275, %v338
    %v340 = vshll.u32 683565275, %v337
    %v341 = vshrl.u32 2475754826, %v338
    %v342 = vor.u32 %v340, %v341
    %v343 = vshll.u32 2475754826, %v337
    %v344 = vshrl.u32 2131351028, %v338
    %v345 = vor.u32 %v343, %v344
    %v346 = vshll.u32 2131351028, %v337
    %v347 = vshrl.u32 2102212464, %v338
    %v348 = vor.u32 %v346, %v347
    %v349 = vshll.u32 2102212464, %v337
    %v350 = vshrl.u32 920167782, %v338
    %v351 = vor.u32 %v349, %v350
    %v352 = vshll.u32 920167782, %v337
    %v353 = vshrl.u32 1326507024, %v338
    %v354 = vor.u32 %v352, %v353
    %vm355 = vcmp.lt.s32.totalorder %v336, 1
    %vm356 = vcmp.lt.s32.totalorder %v336, 2
    %vm357 = vcmp.lt.s32.totalorder %v336, 3
    %vm358 = vcmp.lt.s32.totalorder %v336, 4
    %v359 = vsel %vm355, %v339, %v342
    %v360 = vsel %vm358, %v348, 2102212464
    %v361 = vsel %vm357, %v345, %v360
    %v362 = vsel %vm356, %v359, %v361
    %v363 = vsel %vm355, %v342, %v345
    %v364 = vsel %vm358, %v351, 920167782
    %v365 = vsel %vm357, %v348, %v364
    %v366 = vsel %vm356, %v363, %v365
    %v367 = vsel %vm355, %v345, %v348
    %v368 = vsel %vm358, %v354, 1326507024
    %v369 = vsel %vm357, %v351, %v368
    %v370 = vsel %vm356, %v367, %v369
    %v371 = vshll.u32 %v331, 8
    %v372 = vmul.u32.u64.compose %v371, %v370
    %v373 = vextract.low.u32 %v372
    %v374 = vextract.high.u32 %v372
    %v375 = vmul.u32.u64.compose %v371, %v366
    %v376 = vextract.low.u32 %v375
    %v377 = vextract.high.u32 %v375
    %v378 = vmul.u32 %v371, %v362
    %v379 = vadd.s32 %v374, %v376
    %vm380 = vc.u32 %v374, %v376
    %v381 = vadd.s32 %v377, 1
    %v382 = vsel %vm380, %v381, %v377
    %v383 = vadd.s32 %v378, %v382
    %v384 = vadd.s32 %v383, 536870912
    %v385 = vshrl.u32 %v384, 30
    %v386 = vshll.u32 %v385, 30
    %v387 = vsub.s32 %v383, %v386
    %vm388 = vcmp.lt.s32.totalorder %v387, 0
    %v389 = vsub.s32 0, %v387
    %v390 = vsel %vm388, %v389, %v387
    %v391 = vclz %v390
    %v392 = vsub.s32 %v391, 2
    %vm393 = vcmp.gt.s32.totalorder 0, %v392
    %v394 = vsel %vm393, 0, %v392
    %v395 = vsub.s32 32, %v394
    %v396 = vshll.u32 %v387, %v394
    %v397 = vshrl.u32 %v379, %v395
    %v398 = vor.u32 %v396, %v397
    %v399 = vsub.s32 4294967266, %v394
    %v400 = vadd.s32 %v399, 127
    %v401 = vshll.u32 %v400, 23
    %v402 = vor.u32 4788187, %v401
    %v403 = vand.u32 2147483647, %v402
    %v405 = vcvt.s32.f32 %v398
    %v406 = vmul.f32 %v405, %v403
    %v407 = vxor.u32 %v406, 2147483648
    %v408 = vsel %vm325, %v407, %v406
    %v409 = vsub.s32 4, %v385
    %v410 = vsel %vm325, %v409, %v385
    %v411 = vsel %vm324, %v210, %v408
    %v412 = vsel %vm324, 0, %v410
    %v413 = vcosq.f32.pop %v411
    %v414 = vsinq.f32.pop %v411
    %vm415 = vweird.f32 %v210
    %v416 = vadd.s32 %v412, 3
    %v417 = vand.u32 %v416, 3
    %vm418 = vcmp.lt.s32.totalorder %v417, 2
    %vm419 = vcmp.eq.s32.totalorder %v417, 0
    %v420 = vxor.u32 %v414, 2147483648
    %v421 = vsel %vm419, %v413, %v420
    %vm422 = vcmp.eq.s32.totalorder %v417, 2
    %v423 = vxor.u32 %v413, 2147483648
    %v424 = vsel %vm422, %v423, %v414
    %v425 = vsel %vm418, %v421, %v424
    %v426 = vsel %vm415, nan, %v425
    %v427 = vand.u32 2147483647, %v211
    %vm428 = vcmp.le.f32.partialorder %v427, 0.7853982
    %vm429 = vcmp.lt.s32.totalorder %v211, 0
    %v430 = vand.u32 %v211, 2139095040
    %v431 = vshrl.u32 %v430, 23
    %v432 = vsub.s32 %v431, 127
    %v433 = vand.u32 2147483647, %v211
    %v434 = vand.u32 %v433, 8388607
    %v435 = vor.u32 %v434, 8388608
    %v436 = vsub.s32 0, %v435
    %v437 = vadd.s32 %v432, 1
    %vm438 = vcmp.gt.s32.totalorder %v437, 0
    %v439 = vsel %vm438, %v437, 0
    %v440 = vshrl.u32 %v439, 5
    %v441 = vand.u32 %v439, 31
    %v442 = vsub.s32 32, %v441
    %v443 = vshrl.u32 683565275, %v442
    %v444 = vshll.u32 683565275, %v441
    %v445 = vshrl.u32 2475754826, %v442
    %v446 = vor.u32 %v444, %v445
    %v447 = vshll.u32 2475754826, %v441
    %v448 = vshrl.u32 2131351028, %v442
    %v449 = vor.u32 %v447, %v448
    %v450 = vshll.u32 2131351028, %v441
    %v451 = vshrl.u32 2102212464, %v442
    %v452 = vor.u32 %v450, %v451
    %v453 = vshll.u32 2102212464, %v441
    %v454 = vshrl.u32 920167782, %v442
    %v455 = vor.u32 %v453, %v454
    %v456 = vshll.u32 920167782, %v441
    %v457 = vshrl.u32 1326507024, %v442
    %v458 = vor.u32 %v456, %v457
    %vm459 = vcmp.lt.s32.totalorder %v440, 1
    %vm460 = vcmp.lt.s32.totalorder %v440, 2
    %vm461 = vcmp.lt.s32.totalorder %v440, 3
    %vm462 = vcmp.lt.s32.totalorder %v440, 4
    %v463 = vsel %vm459, %v443, %v446
    %v464 = vsel %vm462, %v452, 2102212464
    %v465 = vsel %vm461, %v449, %v464
    %v466 = vsel %vm460, %v463, %v465
    %v467 = vsel %vm459, %v446, %v449
    %v468 = vsel %vm462, %v455, 920167782
    %v469 = vsel %vm461, %v452, %v468
    %v470 = vsel %vm460, %v467, %v469
    %v471 = vsel %vm459, %v449, %v452
    %v472 = vsel %vm462, %v458, 1326507024
    %v473 = vsel %vm461, %v455, %v472
    %v474 = vsel %vm460, %v471, %v473
    %v475 = vshll.u32 %v435, 8
    %v476 = vmul.u32.u64.compose %v475, %v474
    %v477 = vextract.low.u32 %v476
    %v478 = vextract.high.u32 %v476
    %v479 = vmul.u32.u64.compose %v475, %v470
    %v480 = vextract.low.u32 %v479
    %v481 = vextract.high.u32 %v479
    %v482 = vmul.u32 %v475, %v466
    %v483 = vadd.s32 %v478, %v480
    %vm484 = vc.u32 %v478, %v480
    %v485 = vadd.s32 %v481, 1
    %v486 = vsel %vm484, %v485, %v481
    %v487 = vadd.s32 %v482, %v486
    %v488 = vadd.s32 %v487, 536870912
    %v489 = vshrl.u32 %v488, 30
    %v490 = vshll.u32 %v489, 30
    %v491 = vsub.s32 %v487, %v490
    %vm492 = vcmp.lt.s32.totalorder %v491, 0
    %v493 = vsub.s32 0, %v491
    %v494 = vsel %vm492, %v493, %v491
    %v495 = vclz %v494
    %v496 = vsub.s32 %v495, 2
    %vm497 = vcmp.gt.s32.totalorder 0, %v496
    %v498 = vsel %vm497, 0, %v496
    %v499 = vsub.s32 32, %v498
    %v500 = vshll.u32 %v491, %v498
    %v501 = vshrl.u32 %v483, %v499
    %v502 = vor.u32 %v500, %v501
    %v503 = vsub.s32 4294967266, %v498
    %v504 = vadd.s32 %v503, 127
    %v505 = vshll.u32 %v504, 23
    %v506 = vor.u32 4788187, %v505
    %v507 = vand.u32 2147483647, %v506
    %v509 = vcvt.s32.f32 %v502
    %v510 = vmul.f32 %v509, %v507
    %v511 = vxor.u32 %v510, 2147483648
    %v512 = vsel %vm429, %v511, %v510
    %v513 = vsub.s32 4, %v489
    %v514 = vsel %vm429, %v513, %v489
    %v515 = vsel %vm428, %v211, %v512
    %v516 = vsel %vm428, 0, %v514
    %v517 = vcosq.f32.pop %v515
    %v518 = vsinq.f32.pop %v515
    %vm519 = vweird.f32 %v211
    %v520 = vadd.s32 %v516, 3
    %v521 = vand.u32 %v520, 3
    %vm522 = vcmp.lt.s32.totalorder %v521, 2
    %vm523 = vcmp.eq.s32.totalorder %v521, 0
    %v524 = vxor.u32 %v518, 2147483648
    %v525 = vsel %vm523, %v517, %v524
    %vm526 = vcmp.eq.s32.totalorder %v521, 2
    %v527 = vxor.u32 %v517, 2147483648
    %v528 = vsel %vm526, %v527, %v518
    %v529 = vsel %vm522, %v525, %v528
    %v530 = vsel %vm519, nan, %v529
    %v531 = vand.u32 2147483647, %v212
    %vm532 = vcmp.le.f32.partialorder %v531, 0.7853982
    %vm533 = vcmp.lt.s32.totalorder %v212, 0
    %v534 = vand.u32 %v212, 2139095040
    %v535 = vshrl.u32 %v534, 23
    %v536 = vsub.s32 %v535, 127
    %v537 = vand.u32 2147483647, %v212
    %v538 = vand.u32 %v537, 8388607
    %v539 = vor.u32 %v538, 8388608
    %v540 = vsub.s32 0, %v539
    %v541 = vadd.s32 %v536, 1
    %vm542 = vcmp.gt.s32.totalorder %v541, 0
    %v543 = vsel %vm542, %v541, 0
    %v544 = vshrl.u32 %v543, 5
    %v545 = vand.u32 %v543, 31
    %v546 = vsub.s32 32, %v545
    %v547 = vshrl.u32 683565275, %v546
    %v548 = vshll.u32 683565275, %v545
    %v549 = vshrl.u32 2475754826, %v546
    %v550 = vor.u32 %v548, %v549
    %v551 = vshll.u32 2475754826, %v545
    %v552 = vshrl.u32 2131351028, %v546
    %v553 = vor.u32 %v551, %v552
    %v554 = vshll.u32 2131351028, %v545
    %v555 = vshrl.u32 2102212464, %v546
    %v556 = vor.u32 %v554, %v555
    %v557 = vshll.u32 2102212464, %v545
    %v558 = vshrl.u32 920167782, %v546
    %v559 = vor.u32 %v557, %v558
    %v560 = vshll.u32 920167782, %v545
    %v561 = vshrl.u32 1326507024, %v546
    %v562 = vor.u32 %v560, %v561
    %vm563 = vcmp.lt.s32.totalorder %v544, 1
    %vm564 = vcmp.lt.s32.totalorder %v544, 2
    %vm565 = vcmp.lt.s32.totalorder %v544, 3
    %vm566 = vcmp.lt.s32.totalorder %v544, 4
    %v567 = vsel %vm563, %v547, %v550
    %v568 = vsel %vm566, %v556, 2102212464
    %v569 = vsel %vm565, %v553, %v568
    %v570 = vsel %vm564, %v567, %v569
    %v571 = vsel %vm563, %v550, %v553
    %v572 = vsel %vm566, %v559, 920167782
    %v573 = vsel %vm565, %v556, %v572
    %v574 = vsel %vm564, %v571, %v573
    %v575 = vsel %vm563, %v553, %v556
    %v576 = vsel %vm566, %v562, 1326507024
    %v577 = vsel %vm565, %v559, %v576
    %v578 = vsel %vm564, %v575, %v577
    %v579 = vshll.u32 %v539, 8
    %v580 = vmul.u32.u64.compose %v579, %v578
    %v581 = vextract.low.u32 %v580
    %v582 = vextract.high.u32 %v580
    %v583 = vmul.u32.u64.compose %v579, %v574
    %v584 = vextract.low.u32 %v583
    %v585 = vextract.high.u32 %v583
    %v586 = vmul.u32 %v579, %v570
    %v587 = vadd.s32 %v582, %v584
    %vm588 = vc.u32 %v582, %v584
    %v589 = vadd.s32 %v585, 1
    %v590 = vsel %vm588, %v589, %v585
    %v591 = vadd.s32 %v586, %v590
    %v592 = vadd.s32 %v591, 536870912
    %v593 = vshrl.u32 %v592, 30
    %v594 = vshll.u32 %v593, 30
    %v595 = vsub.s32 %v591, %v594
    %vm596 = vcmp.lt.s32.totalorder %v595, 0
    %v597 = vsub.s32 0, %v595
    %v598 = vsel %vm596, %v597, %v595
    %v599 = vclz %v598
    %v600 = vsub.s32 %v599, 2
    %vm601 = vcmp.gt.s32.totalorder 0, %v600
    %v602 = vsel %vm601, 0, %v600
    %v603 = vsub.s32 32, %v602
    %v604 = vshll.u32 %v595, %v602
    %v605 = vshrl.u32 %v587, %v603
    %v606 = vor.u32 %v604, %v605
    %v607 = vsub.s32 4294967266, %v602
    %v608 = vadd.s32 %v607, 127
    %v609 = vshll.u32 %v608, 23
    %v610 = vor.u32 4788187, %v609
    %v611 = vand.u32 2147483647, %v610
    %v613 = vcvt.s32.f32 %v606
    %v614 = vmul.f32 %v613, %v611
    %v615 = vxor.u32 %v614, 2147483648
    %v616 = vsel %vm533, %v615, %v614
    %v617 = vsub.s32 4, %v593
    %v618 = vsel %vm533, %v617, %v593
    %v619 = vsel %vm532, %v212, %v616
    %v620 = vsel %vm532, 0, %v618
    %v621 = vcosq.f32.pop %v619
    %v622 = vsinq.f32.pop %v619
    %vm623 = vweird.f32 %v212
    %v624 = vadd.s32 %v620, 3
    %v625 = vand.u32 %v624, 3
    %vm626 = vcmp.lt.s32.totalorder %v625, 2
    %vm627 = vcmp.eq.s32.totalorder %v625, 0
    %v628 = vxor.u32 %v622, 2147483648
    %v629 = vsel %vm627, %v621, %v628
    %vm630 = vcmp.eq.s32.totalorder %v625, 2
    %v631 = vxor.u32 %v621, 2147483648
    %v632 = vsel %vm630, %v631, %v622
    %v633 = vsel %vm626, %v629, %v632
    %v634 = vsel %vm623, nan, %v633
    %v635 = vand.u32 2147483647, %v213
    %vm636 = vcmp.le.f32.partialorder %v635, 0.7853982
    %vm637 = vcmp.lt.s32.totalorder %v213, 0
    %v638 = vand.u32 %v213, 2139095040
    %v639 = vshrl.u32 %v638, 23
    %v640 = vsub.s32 %v639, 127
    %v641 = vand.u32 2147483647, %v213
    %v642 = vand.u32 %v641, 8388607
    %v643 = vor.u32 %v642, 8388608
    %v644 = vsub.s32 0, %v643
    %v645 = vadd.s32 %v640, 1
    %vm646 = vcmp.gt.s32.totalorder %v645, 0
    %v647 = vsel %vm646, %v645, 0
    %v648 = vshrl.u32 %v647, 5
    %v649 = vand.u32 %v647, 31
    %v650 = vsub.s32 32, %v649
    %v651 = vshrl.u32 683565275, %v650
    %v652 = vshll.u32 683565275, %v649
    %v653 = vshrl.u32 2475754826, %v650
    %v654 = vor.u32 %v652, %v653
    %v655 = vshll.u32 2475754826, %v649
    %v656 = vshrl.u32 2131351028, %v650
    %v657 = vor.u32 %v655, %v656
    %v658 = vshll.u32 2131351028, %v649
    %v659 = vshrl.u32 2102212464, %v650
    %v660 = vor.u32 %v658, %v659
    %v661 = vshll.u32 2102212464, %v649
    %v662 = vshrl.u32 920167782, %v650
    %v663 = vor.u32 %v661, %v662
    %v664 = vshll.u32 920167782, %v649
    %v665 = vshrl.u32 1326507024, %v650
    %v666 = vor.u32 %v664, %v665
    %vm667 = vcmp.lt.s32.totalorder %v648, 1
    %vm668 = vcmp.lt.s32.totalorder %v648, 2
    %vm669 = vcmp.lt.s32.totalorder %v648, 3
    %vm670 = vcmp.lt.s32.totalorder %v648, 4
    %v671 = vsel %vm667, %v651, %v654
    %v672 = vsel %vm670, %v660, 2102212464
    %v673 = vsel %vm669, %v657, %v672
    %v674 = vsel %vm668, %v671, %v673
    %v675 = vsel %vm667, %v654, %v657
    %v676 = vsel %vm670, %v663, 920167782
    %v677 = vsel %vm669, %v660, %v676
    %v678 = vsel %vm668, %v675, %v677
    %v679 = vsel %vm667, %v657, %v660
    %v680 = vsel %vm670, %v666, 1326507024
    %v681 = vsel %vm669, %v663, %v680
    %v682 = vsel %vm668, %v679, %v681
    %v683 = vshll.u32 %v643, 8
    %v684 = vmul.u32.u64.compose %v683, %v682
    %v685 = vextract.low.u32 %v684
    %v686 = vextract.high.u32 %v684
    %v687 = vmul.u32.u64.compose %v683, %v678
    %v688 = vextract.low.u32 %v687
    %v689 = vextract.high.u32 %v687
    %v690 = vmul.u32 %v683, %v674
    %v691 = vadd.s32 %v686, %v688
    %vm692 = vc.u32 %v686, %v688
    %v693 = vadd.s32 %v689, 1
    %v694 = vsel %vm692, %v693, %v689
    %v695 = vadd.s32 %v690, %v694
    %v696 = vadd.s32 %v695, 536870912
    %v697 = vshrl.u32 %v696, 30
    %v698 = vshll.u32 %v697, 30
    %v699 = vsub.s32 %v695, %v698
    %vm700 = vcmp.lt.s32.totalorder %v699, 0
    %v701 = vsub.s32 0, %v699
    %v702 = vsel %vm700, %v701, %v699
    %v703 = vclz %v702
    %v704 = vsub.s32 %v703, 2
    %vm705 = vcmp.gt.s32.totalorder 0, %v704
    %v706 = vsel %vm705, 0, %v704
    %v707 = vsub.s32 32, %v706
    %v708 = vshll.u32 %v699, %v706
    %v709 = vshrl.u32 %v691, %v707
    %v710 = vor.u32 %v708, %v709
    %v711 = vsub.s32 4294967266, %v706
    %v712 = vadd.s32 %v711, 127
    %v713 = vshll.u32 %v712, 23
    %v714 = vor.u32 4788187, %v713
    %v715 = vand.u32 2147483647, %v714
    %v717 = vcvt.s32.f32 %v710
    %v718 = vmul.f32 %v717, %v715
    %v719 = vxor.u32 %v718, 2147483648
    %v720 = vsel %vm637, %v719, %v718
    %v721 = vsub.s32 4, %v697
    %v722 = vsel %vm637, %v721, %v697
    %v723 = vsel %vm636, %v213, %v720
    %v724 = vsel %vm636, 0, %v722
    %v725 = vcosq.f32.pop %v723
    %v726 = vsinq.f32.pop %v723
    %vm727 = vweird.f32 %v213
    %v728 = vadd.s32 %v724, 3
    %v729 = vand.u32 %v728, 3
    %vm730 = vcmp.lt.s32.totalorder %v729, 2
    %vm731 = vcmp.eq.s32.totalorder %v729, 0
    %v732 = vxor.u32 %v726, 2147483648
    %v733 = vsel %vm731, %v725, %v732
    %vm734 = vcmp.eq.s32.totalorder %v729, 2
    %v735 = vxor.u32 %v725, 2147483648
    %v736 = vsel %vm734, %v735, %v726
    %v737 = vsel %vm730, %v733, %v736
    %v738 = vsel %vm727, nan, %v737
    %v739 = vand.u32 2147483647, %v214
    %vm740 = vcmp.le.f32.partialorder %v739, 0.7853982
    %vm741 = vcmp.lt.s32.totalorder %v214, 0
    %v742 = vand.u32 %v214, 2139095040
    %v743 = vshrl.u32 %v742, 23
    %v744 = vsub.s32 %v743, 127
    %v745 = vand.u32 2147483647, %v214
    %v746 = vand.u32 %v745, 8388607
    %v747 = vor.u32 %v746, 8388608
    %v748 = vsub.s32 0, %v747
    %v749 = vadd.s32 %v744, 1
    %vm750 = vcmp.gt.s32.totalorder %v749, 0
    %v751 = vsel %vm750, %v749, 0
    %v752 = vshrl.u32 %v751, 5
    %v753 = vand.u32 %v751, 31
    %v754 = vsub.s32 32, %v753
    %v755 = vshrl.u32 683565275, %v754
    %v756 = vshll.u32 683565275, %v753
    %v757 = vshrl.u32 2475754826, %v754
    %v758 = vor.u32 %v756, %v757
    %v759 = vshll.u32 2475754826, %v753
    %v760 = vshrl.u32 2131351028, %v754
    %v761 = vor.u32 %v759, %v760
    %v762 = vshll.u32 2131351028, %v753
    %v763 = vshrl.u32 2102212464, %v754
    %v764 = vor.u32 %v762, %v763
    %v765 = vshll.u32 2102212464, %v753
    %v766 = vshrl.u32 920167782, %v754
    %v767 = vor.u32 %v765, %v766
    %v768 = vshll.u32 920167782, %v753
    %v769 = vshrl.u32 1326507024, %v754
    %v770 = vor.u32 %v768, %v769
    %vm771 = vcmp.lt.s32.totalorder %v752, 1
    %vm772 = vcmp.lt.s32.totalorder %v752, 2
    %vm773 = vcmp.lt.s32.totalorder %v752, 3
    %vm774 = vcmp.lt.s32.totalorder %v752, 4
    %v775 = vsel %vm771, %v755, %v758
    %v776 = vsel %vm774, %v764, 2102212464
    %v777 = vsel %vm773, %v761, %v776
    %v778 = vsel %vm772, %v775, %v777
    %v779 = vsel %vm771, %v758, %v761
    %v780 = vsel %vm774, %v767, 920167782
    %v781 = vsel %vm773, %v764, %v780
    %v782 = vsel %vm772, %v779, %v781
    %v783 = vsel %vm771, %v761, %v764
    %v784 = vsel %vm774, %v770, 1326507024
    %v785 = vsel %vm773, %v767, %v784
    %v786 = vsel %vm772, %v783, %v785
    %v787 = vshll.u32 %v747, 8
    %v788 = vmul.u32.u64.compose %v787, %v786
    %v789 = vextract.low.u32 %v788
    %v790 = vextract.high.u32 %v788
    %v791 = vmul.u32.u64.compose %v787, %v782
    %v792 = vextract.low.u32 %v791
    %v793 = vextract.high.u32 %v791
    %v794 = vmul.u32 %v787, %v778
    %v795 = vadd.s32 %v790, %v792
    %vm796 = vc.u32 %v790, %v792
    %v797 = vadd.s32 %v793, 1
    %v798 = vsel %vm796, %v797, %v793
    %v799 = vadd.s32 %v794, %v798
    %v800 = vadd.s32 %v799, 536870912
    %v801 = vshrl.u32 %v800, 30
    %v802 = vshll.u32 %v801, 30
    %v803 = vsub.s32 %v799, %v802
    %vm804 = vcmp.lt.s32.totalorder %v803, 0
    %v805 = vsub.s32 0, %v803
    %v806 = vsel %vm804, %v805, %v803
    %v807 = vclz %v806
    %v808 = vsub.s32 %v807, 2
    %vm809 = vcmp.gt.s32.totalorder 0, %v808
    %v810 = vsel %vm809, 0, %v808
    %v811 = vsub.s32 32, %v810
    %v812 = vshll.u32 %v803, %v810
    %v813 = vshrl.u32 %v795, %v811
    %v814 = vor.u32 %v812, %v813
    %v815 = vsub.s32 4294967266, %v810
    %v816 = vadd.s32 %v815, 127
    %v817 = vshll.u32 %v816, 23
    %v818 = vor.u32 4788187, %v817
    %v819 = vand.u32 2147483647, %v818
    %v821 = vcvt.s32.f32 %v814
    %v822 = vmul.f32 %v821, %v819
    %v823 = vxor.u32 %v822, 2147483648
    %v824 = vsel %vm741, %v823, %v822
    %v825 = vsub.s32 4, %v801
    %v826 = vsel %vm741, %v825, %v801
    %v827 = vsel %vm740, %v214, %v824
    %v828 = vsel %vm740, 0, %v826
    %v829 = vcosq.f32.pop %v827
    %v830 = vsinq.f32.pop %v827
    %vm831 = vweird.f32 %v214
    %v832 = vadd.s32 %v828, 3
    %v833 = vand.u32 %v832, 3
    %vm834 = vcmp.lt.s32.totalorder %v833, 2
    %vm835 = vcmp.eq.s32.totalorder %v833, 0
    %v836 = vxor.u32 %v830, 2147483648
    %v837 = vsel %vm835, %v829, %v836
    %vm838 = vcmp.eq.s32.totalorder %v833, 2
    %v839 = vxor.u32 %v829, 2147483648
    %v840 = vsel %vm838, %v839, %v830
    %v841 = vsel %vm834, %v837, %v840
    %v842 = vsel %vm831, nan, %v841
    %v843 = vand.u32 2147483647, %v215
    %vm844 = vcmp.le.f32.partialorder %v843, 0.7853982
    %vm845 = vcmp.lt.s32.totalorder %v215, 0
    %v846 = vand.u32 %v215, 2139095040
    %v847 = vshrl.u32 %v846, 23
    %v848 = vsub.s32 %v847, 127
    %v849 = vand.u32 2147483647, %v215
    %v850 = vand.u32 %v849, 8388607
    %v851 = vor.u32 %v850, 8388608
    %v852 = vsub.s32 0, %v851
    %v853 = vadd.s32 %v848, 1
    %vm854 = vcmp.gt.s32.totalorder %v853, 0
    %v855 = vsel %vm854, %v853, 0
    %v856 = vshrl.u32 %v855, 5
    %v857 = vand.u32 %v855, 31
    %v858 = vsub.s32 32, %v857
    %v859 = vshrl.u32 683565275, %v858
    %v860 = vshll.u32 683565275, %v857
    %v861 = vshrl.u32 2475754826, %v858
    %v862 = vor.u32 %v860, %v861
    %v863 = vshll.u32 2475754826, %v857
    %v864 = vshrl.u32 2131351028, %v858
    %v865 = vor.u32 %v863, %v864
    %v866 = vshll.u32 2131351028, %v857
    %v867 = vshrl.u32 2102212464, %v858
    %v868 = vor.u32 %v866, %v867
    %v869 = vshll.u32 2102212464, %v857
    %v870 = vshrl.u32 920167782, %v858
    %v871 = vor.u32 %v869, %v870
    %v872 = vshll.u32 920167782, %v857
    %v873 = vshrl.u32 1326507024, %v858
    %v874 = vor.u32 %v872, %v873
    %vm875 = vcmp.lt.s32.totalorder %v856, 1
    %vm876 = vcmp.lt.s32.totalorder %v856, 2
    %vm877 = vcmp.lt.s32.totalorder %v856, 3
    %vm878 = vcmp.lt.s32.totalorder %v856, 4
    %v879 = vsel %vm875, %v859, %v862
    %v880 = vsel %vm878, %v868, 2102212464
    %v881 = vsel %vm877, %v865, %v880
    %v882 = vsel %vm876, %v879, %v881
    %v883 = vsel %vm875, %v862, %v865
    %v884 = vsel %vm878, %v871, 920167782
    %v885 = vsel %vm877, %v868, %v884
    %v886 = vsel %vm876, %v883, %v885
    %v887 = vsel %vm875, %v865, %v868
    %v888 = vsel %vm878, %v874, 1326507024
    %v889 = vsel %vm877, %v871, %v888
    %v890 = vsel %vm876, %v887, %v889
    %v891 = vshll.u32 %v851, 8
    %v892 = vmul.u32.u64.compose %v891, %v890
    %v893 = vextract.low.u32 %v892
    %v894 = vextract.high.u32 %v892
    %v895 = vmul.u32.u64.compose %v891, %v886
    %v896 = vextract.low.u32 %v895
    %v897 = vextract.high.u32 %v895
    %v898 = vmul.u32 %v891, %v882
    %v899 = vadd.s32 %v894, %v896
    %vm900 = vc.u32 %v894, %v896
    %v901 = vadd.s32 %v897, 1
    %v902 = vsel %vm900, %v901, %v897
    %v903 = vadd.s32 %v898, %v902
    %v904 = vadd.s32 %v903, 536870912
    %v905 = vshrl.u32 %v904, 30
    %v906 = vshll.u32 %v905, 30
    %v907 = vsub.s32 %v903, %v906
    %vm908 = vcmp.lt.s32.totalorder %v907, 0
    %v909 = vsub.s32 0, %v907
    %v910 = vsel %vm908, %v909, %v907
    %v911 = vclz %v910
    %v912 = vsub.s32 %v911, 2
    %vm913 = vcmp.gt.s32.totalorder 0, %v912
    %v914 = vsel %vm913, 0, %v912
    %v915 = vsub.s32 32, %v914
    %v916 = vshll.u32 %v907, %v914
    %v917 = vshrl.u32 %v899, %v915
    %v918 = vor.u32 %v916, %v917
    %v919 = vsub.s32 4294967266, %v914
    %v920 = vadd.s32 %v919, 127
    %v921 = vshll.u32 %v920, 23
    %v922 = vor.u32 4788187, %v921
    %v923 = vand.u32 2147483647, %v922
    %v925 = vcvt.s32.f32 %v918
    %v926 = vmul.f32 %v925, %v923
    %v927 = vxor.u32 %v926, 2147483648
    %v928 = vsel %vm845, %v927, %v926
    %v929 = vsub.s32 4, %v905
    %v930 = vsel %vm845, %v929, %v905
    %v931 = vsel %vm844, %v215, %v928
    %v932 = vsel %vm844, 0, %v930
    %v933 = vcosq.f32.pop %v931
    %v934 = vsinq.f32.pop %v931
    %vm935 = vweird.f32 %v215
    %v936 = vadd.s32 %v932, 3
    %v937 = vand.u32 %v936, 3
    %vm938 = vcmp.lt.s32.totalorder %v937, 2
    %vm939 = vcmp.eq.s32.totalorder %v937, 0
    %v940 = vxor.u32 %v934, 2147483648
    %v941 = vsel %vm939, %v933, %v940
    %vm942 = vcmp.eq.s32.totalorder %v937, 2
    %v943 = vxor.u32 %v933, 2147483648
    %v944 = vsel %vm942, %v943, %v934
    %v945 = vsel %vm938, %v941, %v944
    %v946 = vsel %vm935, nan, %v945
    %v947 = vand.u32 2147483647, %v216
    %vm948 = vcmp.le.f32.partialorder %v947, 0.7853982
    %vm949 = vcmp.lt.s32.totalorder %v216, 0
    %v950 = vand.u32 %v216, 2139095040
    %v951 = vshrl.u32 %v950, 23
    %v952 = vsub.s32 %v951, 127
    %v953 = vand.u32 2147483647, %v216
    %v954 = vand.u32 %v953, 8388607
    %v955 = vor.u32 %v954, 8388608
    %v956 = vsub.s32 0, %v955
    %v957 = vadd.s32 %v952, 1
    %vm958 = vcmp.gt.s32.totalorder %v957, 0
    %v959 = vsel %vm958, %v957, 0
    %v960 = vshrl.u32 %v959, 5
    %v961 = vand.u32 %v959, 31
    %v962 = vsub.s32 32, %v961
    %v963 = vshrl.u32 683565275, %v962
    %v964 = vshll.u32 683565275, %v961
    %v965 = vshrl.u32 2475754826, %v962
    %v966 = vor.u32 %v964, %v965
    %v967 = vshll.u32 2475754826, %v961
    %v968 = vshrl.u32 2131351028, %v962
    %v969 = vor.u32 %v967, %v968
    %v970 = vshll.u32 2131351028, %v961
    %v971 = vshrl.u32 2102212464, %v962
    %v972 = vor.u32 %v970, %v971
    %v973 = vshll.u32 2102212464, %v961
    %v974 = vshrl.u32 920167782, %v962
    %v975 = vor.u32 %v973, %v974
    %v976 = vshll.u32 920167782, %v961
    %v977 = vshrl.u32 1326507024, %v962
    %v978 = vor.u32 %v976, %v977
    %vm979 = vcmp.lt.s32.totalorder %v960, 1
    %vm980 = vcmp.lt.s32.totalorder %v960, 2
    %vm981 = vcmp.lt.s32.totalorder %v960, 3
    %vm982 = vcmp.lt.s32.totalorder %v960, 4
    %v983 = vsel %vm979, %v963, %v966
    %v984 = vsel %vm982, %v972, 2102212464
    %v985 = vsel %vm981, %v969, %v984
    %v986 = vsel %vm980, %v983, %v985
    %v987 = vsel %vm979, %v966, %v969
    %v988 = vsel %vm982, %v975, 920167782
    %v989 = vsel %vm981, %v972, %v988
    %v990 = vsel %vm980, %v987, %v989
    %v991 = vsel %vm979, %v969, %v972
    %v992 = vsel %vm982, %v978, 1326507024
    %v993 = vsel %vm981, %v975, %v992
    %v994 = vsel %vm980, %v991, %v993
    %v995 = vshll.u32 %v955, 8
    %v996 = vmul.u32.u64.compose %v995, %v994
    %v997 = vextract.low.u32 %v996
    %v998 = vextract.high.u32 %v996
    %v999 = vmul.u32.u64.compose %v995, %v990
    %v1000 = vextract.low.u32 %v999
    %v1001 = vextract.high.u32 %v999
    %v1002 = vmul.u32 %v995, %v986
    %v1003 = vadd.s32 %v998, %v1000
    %vm1004 = vc.u32 %v998, %v1000
    %v1005 = vadd.s32 %v1001, 1
    %v1006 = vsel %vm1004, %v1005, %v1001
    %v1007 = vadd.s32 %v1002, %v1006
    %v1008 = vadd.s32 %v1007, 536870912
    %v1009 = vshrl.u32 %v1008, 30
    %v1010 = vshll.u32 %v1009, 30
    %v1011 = vsub.s32 %v1007, %v1010
    %vm1012 = vcmp.lt.s32.totalorder %v1011, 0
    %v1013 = vsub.s32 0, %v1011
    %v1014 = vsel %vm1012, %v1013, %v1011
    %v1015 = vclz %v1014
    %v1016 = vsub.s32 %v1015, 2
    %vm1017 = vcmp.gt.s32.totalorder 0, %v1016
    %v1018 = vsel %vm1017, 0, %v1016
    %v1019 = vsub.s32 32, %v1018
    %v1020 = vshll.u32 %v1011, %v1018
    %v1021 = vshrl.u32 %v1003, %v1019
    %v1022 = vor.u32 %v1020, %v1021
    %v1023 = vsub.s32 4294967266, %v1018
    %v1024 = vadd.s32 %v1023, 127
    %v1025 = vshll.u32 %v1024, 23
    %v1026 = vor.u32 4788187, %v1025
    %v1027 = vand.u32 2147483647, %v1026
    %v1029 = vcvt.s32.f32 %v1022
    %v1030 = vmul.f32 %v1029, %v1027
    %v1031 = vxor.u32 %v1030, 2147483648
    %v1032 = vsel %vm949, %v1031, %v1030
    %v1033 = vsub.s32 4, %v1009
    %v1034 = vsel %vm949, %v1033, %v1009
    %v1035 = vsel %vm948, %v216, %v1032
    %v1036 = vsel %vm948, 0, %v1034
    %v1037 = vcosq.f32.pop %v1035
    %v1038 = vsinq.f32.pop %v1035
    %vm1039 = vweird.f32 %v216
    %v1040 = vadd.s32 %v1036, 3
    %v1041 = vand.u32 %v1040, 3
    %vm1042 = vcmp.lt.s32.totalorder %v1041, 2
    %vm1043 = vcmp.eq.s32.totalorder %v1041, 0
    %v1044 = vxor.u32 %v1038, 2147483648
    %v1045 = vsel %vm1043, %v1037, %v1044
    %vm1046 = vcmp.eq.s32.totalorder %v1041, 2
    %v1047 = vxor.u32 %v1037, 2147483648
    %v1048 = vsel %vm1046, %v1047, %v1038
    %v1049 = vsel %vm1042, %v1045, %v1048
    %v1050 = vsel %vm1039, nan, %v1049
    %v1051 = vand.u32 2147483647, %v217
    %vm1052 = vcmp.le.f32.partialorder %v1051, 0.7853982
    %vm1053 = vcmp.lt.s32.totalorder %v217, 0
    %v1054 = vand.u32 %v217, 2139095040
    %v1055 = vshrl.u32 %v1054, 23
    %v1056 = vsub.s32 %v1055, 127
    %v1057 = vand.u32 2147483647, %v217
    %v1058 = vand.u32 %v1057, 8388607
    %v1059 = vor.u32 %v1058, 8388608
    %v1060 = vsub.s32 0, %v1059
    %v1061 = vadd.s32 %v1056, 1
    %vm1062 = vcmp.gt.s32.totalorder %v1061, 0
    %v1063 = vsel %vm1062, %v1061, 0
    %v1064 = vshrl.u32 %v1063, 5
    %v1065 = vand.u32 %v1063, 31
    %v1066 = vsub.s32 32, %v1065
    %v1067 = vshrl.u32 683565275, %v1066
    %v1068 = vshll.u32 683565275, %v1065
    %v1069 = vshrl.u32 2475754826, %v1066
    %v1070 = vor.u32 %v1068, %v1069
    %v1071 = vshll.u32 2475754826, %v1065
    %v1072 = vshrl.u32 2131351028, %v1066
    %v1073 = vor.u32 %v1071, %v1072
    %v1074 = vshll.u32 2131351028, %v1065
    %v1075 = vshrl.u32 2102212464, %v1066
    %v1076 = vor.u32 %v1074, %v1075
    %v1077 = vshll.u32 2102212464, %v1065
    %v1078 = vshrl.u32 920167782, %v1066
    %v1079 = vor.u32 %v1077, %v1078
    %v1080 = vshll.u32 920167782, %v1065
    %v1081 = vshrl.u32 1326507024, %v1066
    %v1082 = vor.u32 %v1080, %v1081
    %vm1083 = vcmp.lt.s32.totalorder %v1064, 1
    %vm1084 = vcmp.lt.s32.totalorder %v1064, 2
    %vm1085 = vcmp.lt.s32.totalorder %v1064, 3
    %vm1086 = vcmp.lt.s32.totalorder %v1064, 4
    %v1087 = vsel %vm1083, %v1067, %v1070
    %v1088 = vsel %vm1086, %v1076, 2102212464
    %v1089 = vsel %vm1085, %v1073, %v1088
    %v1090 = vsel %vm1084, %v1087, %v1089
    %v1091 = vsel %vm1083, %v1070, %v1073
    %v1092 = vsel %vm1086, %v1079, 920167782
    %v1093 = vsel %vm1085, %v1076, %v1092
    %v1094 = vsel %vm1084, %v1091, %v1093
    %v1095 = vsel %vm1083, %v1073, %v1076
    %v1096 = vsel %vm1086, %v1082, 1326507024
    %v1097 = vsel %vm1085, %v1079, %v1096
    %v1098 = vsel %vm1084, %v1095, %v1097
    %v1099 = vshll.u32 %v1059, 8
    %v1100 = vmul.u32.u64.compose %v1099, %v1098
    %v1101 = vextract.low.u32 %v1100
    %v1102 = vextract.high.u32 %v1100
    %v1103 = vmul.u32.u64.compose %v1099, %v1094
    %v1104 = vextract.low.u32 %v1103
    %v1105 = vextract.high.u32 %v1103
    %v1106 = vmul.u32 %v1099, %v1090
    %v1107 = vadd.s32 %v1102, %v1104
    %vm1108 = vc.u32 %v1102, %v1104
    %v1109 = vadd.s32 %v1105, 1
    %v1110 = vsel %vm1108, %v1109, %v1105
    %v1111 = vadd.s32 %v1106, %v1110
    %v1112 = vadd.s32 %v1111, 536870912
    %v1113 = vshrl.u32 %v1112, 30
    %v1114 = vshll.u32 %v1113, 30
    %v1115 = vsub.s32 %v1111, %v1114
    %vm1116 = vcmp.lt.s32.totalorder %v1115, 0
    %v1117 = vsub.s32 0, %v1115
    %v1118 = vsel %vm1116, %v1117, %v1115
    %v1119 = vclz %v1118
    %v1120 = vsub.s32 %v1119, 2
    %vm1121 = vcmp.gt.s32.totalorder 0, %v1120
    %v1122 = vsel %vm1121, 0, %v1120
    %v1123 = vsub.s32 32, %v1122
    %v1124 = vshll.u32 %v1115, %v1122
    %v1125 = vshrl.u32 %v1107, %v1123
    %v1126 = vor.u32 %v1124, %v1125
    %v1127 = vsub.s32 4294967266, %v1122
    %v1128 = vadd.s32 %v1127, 127
    %v1129 = vshll.u32 %v1128, 23
    %v1130 = vor.u32 4788187, %v1129
    %v1131 = vand.u32 2147483647, %v1130
    %v1133 = vcvt.s32.f32 %v1126
    %v1134 = vmul.f32 %v1133, %v1131
    %v1135 = vxor.u32 %v1134, 2147483648
    %v1136 = vsel %vm1053, %v1135, %v1134
    %v1137 = vsub.s32 4, %v1113
    %v1138 = vsel %vm1053, %v1137, %v1113
    %v1139 = vsel %vm1052, %v217, %v1136
    %v1140 = vsel %vm1052, 0, %v1138
    %v1141 = vcosq.f32.pop %v1139
    %v1142 = vsinq.f32.pop %v1139
    %vm1143 = vweird.f32 %v217
    %v1144 = vadd.s32 %v1140, 3
    %v1145 = vand.u32 %v1144, 3
    %vm1146 = vcmp.lt.s32.totalorder %v1145, 2
    %vm1147 = vcmp.eq.s32.totalorder %v1145, 0
    %v1148 = vxor.u32 %v1142, 2147483648
    %v1149 = vsel %vm1147, %v1141, %v1148
    %vm1150 = vcmp.eq.s32.totalorder %v1145, 2
    %v1151 = vxor.u32 %v1141, 2147483648
    %v1152 = vsel %vm1150, %v1151, %v1142
    %v1153 = vsel %vm1146, %v1149, %v1152
    %v1154 = vsel %vm1143, nan, %v1153
    %v1155 = vand.u32 2147483647, %v218
    %vm1156 = vcmp.le.f32.partialorder %v1155, 0.7853982
    %vm1157 = vcmp.lt.s32.totalorder %v218, 0
    %v1158 = vand.u32 %v218, 2139095040
    %v1159 = vshrl.u32 %v1158, 23
    %v1160 = vsub.s32 %v1159, 127
    %v1161 = vand.u32 2147483647, %v218
    %v1162 = vand.u32 %v1161, 8388607
    %v1163 = vor.u32 %v1162, 8388608
    %v1164 = vsub.s32 0, %v1163
    %v1165 = vadd.s32 %v1160, 1
    %vm1166 = vcmp.gt.s32.totalorder %v1165, 0
    %v1167 = vsel %vm1166, %v1165, 0
    %v1168 = vshrl.u32 %v1167, 5
    %v1169 = vand.u32 %v1167, 31
    %v1170 = vsub.s32 32, %v1169
    %v1171 = vshrl.u32 683565275, %v1170
    %v1172 = vshll.u32 683565275, %v1169
    %v1173 = vshrl.u32 2475754826, %v1170
    %v1174 = vor.u32 %v1172, %v1173
    %v1175 = vshll.u32 2475754826, %v1169
    %v1176 = vshrl.u32 2131351028, %v1170
    %v1177 = vor.u32 %v1175, %v1176
    %v1178 = vshll.u32 2131351028, %v1169
    %v1179 = vshrl.u32 2102212464, %v1170
    %v1180 = vor.u32 %v1178, %v1179
    %v1181 = vshll.u32 2102212464, %v1169
    %v1182 = vshrl.u32 920167782, %v1170
    %v1183 = vor.u32 %v1181, %v1182
    %v1184 = vshll.u32 920167782, %v1169
    %v1185 = vshrl.u32 1326507024, %v1170
    %v1186 = vor.u32 %v1184, %v1185
    %vm1187 = vcmp.lt.s32.totalorder %v1168, 1
    %vm1188 = vcmp.lt.s32.totalorder %v1168, 2
    %vm1189 = vcmp.lt.s32.totalorder %v1168, 3
    %vm1190 = vcmp.lt.s32.totalorder %v1168, 4
    %v1191 = vsel %vm1187, %v1171, %v1174
    %v1192 = vsel %vm1190, %v1180, 2102212464
    %v1193 = vsel %vm1189, %v1177, %v1192
    %v1194 = vsel %vm1188, %v1191, %v1193
    %v1195 = vsel %vm1187, %v1174, %v1177
    %v1196 = vsel %vm1190, %v1183, 920167782
    %v1197 = vsel %vm1189, %v1180, %v1196
    %v1198 = vsel %vm1188, %v1195, %v1197
    %v1199 = vsel %vm1187, %v1177, %v1180
    %v1200 = vsel %vm1190, %v1186, 1326507024
    %v1201 = vsel %vm1189, %v1183, %v1200
    %v1202 = vsel %vm1188, %v1199, %v1201
    %v1203 = vshll.u32 %v1163, 8
    %v1204 = vmul.u32.u64.compose %v1203, %v1202
    %v1205 = vextract.low.u32 %v1204
    %v1206 = vextract.high.u32 %v1204
    %v1207 = vmul.u32.u64.compose %v1203, %v1198
    %v1208 = vextract.low.u32 %v1207
    %v1209 = vextract.high.u32 %v1207
    %v1210 = vmul.u32 %v1203, %v1194
    %v1211 = vadd.s32 %v1206, %v1208
    %vm1212 = vc.u32 %v1206, %v1208
    %v1213 = vadd.s32 %v1209, 1
    %v1214 = vsel %vm1212, %v1213, %v1209
    %v1215 = vadd.s32 %v1210, %v1214
    %v1216 = vadd.s32 %v1215, 536870912
    %v1217 = vshrl.u32 %v1216, 30
    %v1218 = vshll.u32 %v1217, 30
    %v1219 = vsub.s32 %v1215, %v1218
    %vm1220 = vcmp.lt.s32.totalorder %v1219, 0
    %v1221 = vsub.s32 0, %v1219
    %v1222 = vsel %vm1220, %v1221, %v1219
    %v1223 = vclz %v1222
    %v1224 = vsub.s32 %v1223, 2
    %vm1225 = vcmp.gt.s32.totalorder 0, %v1224
    %v1226 = vsel %vm1225, 0, %v1224
    %v1227 = vsub.s32 32, %v1226
    %v1228 = vshll.u32 %v1219, %v1226
    %v1229 = vshrl.u32 %v1211, %v1227
    %v1230 = vor.u32 %v1228, %v1229
    %v1231 = vsub.s32 4294967266, %v1226
    %v1232 = vadd.s32 %v1231, 127
    %v1233 = vshll.u32 %v1232, 23
    %v1234 = vor.u32 4788187, %v1233
    %v1235 = vand.u32 2147483647, %v1234
    %v1237 = vcvt.s32.f32 %v1230
    %v1238 = vmul.f32 %v1237, %v1235
    %v1239 = vxor.u32 %v1238, 2147483648
    %v1240 = vsel %vm1157, %v1239, %v1238
    %v1241 = vsub.s32 4, %v1217
    %v1242 = vsel %vm1157, %v1241, %v1217
    %v1243 = vsel %vm1156, %v218, %v1240
    %v1244 = vsel %vm1156, 0, %v1242
    %v1245 = vcosq.f32.pop %v1243
    %v1246 = vsinq.f32.pop %v1243
    %vm1247 = vweird.f32 %v218
    %v1248 = vadd.s32 %v1244, 3
    %v1249 = vand.u32 %v1248, 3
    %vm1250 = vcmp.lt.s32.totalorder %v1249, 2
    %vm1251 = vcmp.eq.s32.totalorder %v1249, 0
    %v1252 = vxor.u32 %v1246, 2147483648
    %v1253 = vsel %vm1251, %v1245, %v1252
    %vm1254 = vcmp.eq.s32.totalorder %v1249, 2
    %v1255 = vxor.u32 %v1245, 2147483648
    %v1256 = vsel %vm1254, %v1255, %v1246
    %v1257 = vsel %vm1250, %v1253, %v1256
    %v1258 = vsel %vm1247, nan, %v1257
    %v1259 = vsel %vm179, 1, 0
    %v1260 = vsel %vm180, 1, 0
    %v1261 = vsel %vm181, 1, 0
    %v1262 = vsel %vm182, 1, 0
    %v1263 = vsel %vm183, 1, 0
    %1264 = vset.pattern.permute.xlu0 0
    %1265 = vperm.xlu0 %1264, %v1259
    %v1266 = vpop.permute.xlu0 %1265
    %1267 = vset.pattern.permute.xlu0 0
    %1268 = vperm.xlu0 %1267, %v1260
    %v1269 = vpop.permute.xlu0 %1268
    %1270 = vset.pattern.permute.xlu0 0
    %1271 = vperm.xlu0 %1270, %v1261
    %v1272 = vpop.permute.xlu0 %1271
    %1273 = vset.pattern.permute.xlu0 0
    %1274 = vperm.xlu0 %1273, %v1262
    %v1275 = vpop.permute.xlu0 %1274
    %1276 = vset.pattern.permute.xlu0 0
    %1277 = vperm.xlu0 %1276, %v1263
    %v1278 = vpop.permute.xlu0 %1277
    %vm1279 = vcmp.eq.s32.totalorder %v1266, 1
    %vm1280 = vcmp.eq.s32.totalorder %v1269, 1
    %vm1281 = vcmp.eq.s32.totalorder %v1272, 1
    %vm1282 = vcmp.eq.s32.totalorder %v1275, 1
    %vm1283 = vcmp.eq.s32.totalorder %v1278, 1
    %v1284 = vsel %vm1279, %v141, %v322
    %v1285 = vsel %vm1279, %v143, %v426
    %v1286 = vsel %vm1280, %v147, %v530
    %v1287 = vsel %vm1280, %v149, %v634
    %v1288 = vsel %vm1281, %v153, %v738
    %v1289 = vsel %vm1281, %v155, %v842
    %v1290 = vsel %vm1282, %v159, %v946
    %v1291 = vsel %vm1282, %v161, %v1050
    %v1292 = vsel %vm1283, %v165, %v1154
    %v1293 = vsel %vm1283, %v167, %v1258
    %1294 = vst [vmem:[#allocation2] sm:$0xff] %v1284
    %1295 = vst [vmem:[#allocation2 + $0x8] sm:$0xff] %v1285
    %1296 = vst [vmem:[#allocation2 + $0x10] sm:$0xff] %v1286
    %1297 = vst [vmem:[#allocation2 + $0x18] sm:$0xff] %v1287
    %1298 = vst [vmem:[#allocation2 + $0x20] sm:$0xff] %v1288
    %1299 = vst [vmem:[#allocation2 + $0x28] sm:$0xff] %v1289
    %1300 = vst [vmem:[#allocation2 + $0x30] sm:$0xff] %v1290
    %1301 = vst [vmem:[#allocation2 + $0x38] sm:$0xff] %v1291
    %1302 = vst [vmem:[#allocation2 + $0x40] sm:$0x7f] %v1292
    %1303 = vst [vmem:[#allocation2 + $0x48] sm:$0x7f] %v1293
    %v1304 = vld [vmem:[%s4] sm:$0xff]
    %v1305 = vld [vmem:[%s4 + $0x8] sm:$0xff]
    %v1306 = vld [vmem:[%s4 + $0x10] sm:$0xff]
    %v1307 = vld [vmem:[%s4 + $0x18] sm:$0xff]
    %v1308 = vld [vmem:[%s4 + $0x20] sm:$0xff]
    %v1309 = vld [vmem:[%s4 + $0x28] sm:$0xff]
    %v1310 = vld [vmem:[%s4 + $0x30] sm:$0xff]
    %v1311 = vld [vmem:[%s4 + $0x38] sm:$0xff]
    %v1312 = vld [vmem:[%s5] sm:$0xff]
    %v1313 = vld [vmem:[%s5 + $0x8] sm:$0xff]
    %v1314 = vld [vmem:[%s5 + $0x10] sm:$0xff]
    %v1315 = vld [vmem:[%s5 + $0x18] sm:$0xff]
    %v1316 = vld [vmem:[%s5 + $0x20] sm:$0xff]
    %v1317 = vld [vmem:[%s5 + $0x28] sm:$0xff]
    %v1318 = vld [vmem:[%s5 + $0x30] sm:$0xff]
    %v1319 = vld [vmem:[%s5 + $0x38] sm:$0xff]
    %1321 = vset.pattern.permute.xlu0 0
    %1322 = vperm.xlu0 %1321, %v1312
    %v1323 = vpop.permute.xlu0 %1322
    %1326 = vset.pattern.permute.xlu0 0
    %1327 = vperm.xlu0 %1326, %v1313
    %v1328 = vpop.permute.xlu0 %1327
    %1331 = vset.pattern.permute.xlu0 0
    %1332 = vperm.xlu0 %1331, %v1314
    %v1333 = vpop.permute.xlu0 %1332
    %1336 = vset.pattern.permute.xlu0 0
    %1337 = vperm.xlu0 %1336, %v1315
    %v1338 = vpop.permute.xlu0 %1337
    %1341 = vset.pattern.permute.xlu0 0
    %1342 = vperm.xlu0 %1341, %v1316
    %v1343 = vpop.permute.xlu0 %1342
    %1346 = vset.pattern.permute.xlu0 0
    %1347 = vperm.xlu0 %1346, %v1317
    %v1348 = vpop.permute.xlu0 %1347
    %1351 = vset.pattern.permute.xlu0 0
    %1352 = vperm.xlu0 %1351, %v1318
    %v1353 = vpop.permute.xlu0 %1352
    %1356 = vset.pattern.permute.xlu0 0
    %1357 = vperm.xlu0 %1356, %v1319
    %v1358 = vpop.permute.xlu0 %1357
    %vm1360 = vcmask 318464
    %v1362 = vsel %vm1360, %v1304, 0
    %v1365 = vsel %vm1360, %v1305, 0
    %v1368 = vsel %vm1360, %v1306, 0
    %v1371 = vsel %vm1360, %v1307, 0
    %v1374 = vsel %vm1360, %v1308, 0
    %v1377 = vsel %vm1360, %v1309, 0
    %v1380 = vsel %vm1360, %v1310, 0
    %v1383 = vsel %vm1360, %v1311, 0
    %vm1385 = vcmask 1046528
    %v1387 = vsel %vm1385, %v1292, 0
    %v1390 = vsel %vm1385, %v1293, 0
    %1392 = vmatprep.subr.mxu0 0.0
    %1393 = vmatpush1.msra.mxu0 0.0
    %1394 = vmatprep.subr.mxu0 0.0
    %1395 = vmatpush1.msra.mxu0 0.0
    %1396 = vmatprep.subr.mxu0 0.0
    %1397 = vmatpush1.msra.mxu0 0.0
    %1398 = vmatprep.subr.mxu0 0.0
    %1399 = vmatpush1.msra.mxu0 0.0
    %1400 = vmatprep.subr.mxu0 0.0
    %1401 = vmatpush1.msra.mxu0 0.0
    %1402 = vmatprep.subr.mxu0 0.0
    %1403 = vmatpush1.msra.mxu0 0.0
    %1404 = vmatprep.subr.mxu0 0.0
    %1405 = vmatpush1.msra.mxu0 0.0
    %1406 = vmatprep.subr.mxu0 0.0
    %1407 = vmatpush1.msra.mxu0 0.0
    %1408 = vmatprep.subr.mxu0 0.0
    %1409 = vmatpush1.msra.mxu0 0.0
    %1410 = vmatprep.subr.mxu0 0.0
    %1411 = vmatpush1.msra.mxu0 0.0
    %1412 = vmatprep.subr.mxu0 0.0
    %1413 = vmatpush1.msra.mxu0 0.0
    %1414 = vmatprep.subr.mxu0 %v1390
    %1415 = vmatpush1.msra.mxu0 %v1387
    %1416 = vmatprep.subr.mxu0 %v1291
    %1417 = vmatpush1.msra.mxu0 %v1290
    %1418 = vmatprep.subr.mxu0 %v1289
    %1419 = vmatpush1.msra.mxu0 %v1288
    %1420 = vmatprep.subr.mxu0 %v1287
    %1421 = vmatpush1.msra.mxu0 %v1286
    %1422 = vmatprep.subr.mxu0 %v1285
    %1423 = vmatpush1.msra.mxu0 %v1284
    %1424 = vmatprep.subr.mxu0 0.0
    %1425 = vmatpush2.msra.mxu0 0.0
    %1426 = vmatprep.subr.mxu0 0.0
    %1427 = vmatpush2.msra.mxu0 0.0
    %1428 = vmatprep.subr.mxu0 0.0
    %1429 = vmatpush2.msra.mxu0 0.0
    %1430 = vmatprep.subr.mxu0 0.0
    %1431 = vmatpush2.msra.mxu0 0.0
    %1432 = vmatprep.subr.mxu0 0.0
    %1433 = vmatpush2.msra.mxu0 0.0
    %1434 = vmatprep.subr.mxu0 0.0
    %1435 = vmatpush2.msra.mxu0 0.0
    %1436 = vmatprep.subr.mxu0 0.0
    %1437 = vmatpush2.msra.mxu0 0.0
    %1438 = vmatprep.subr.mxu0 0.0
    %1439 = vmatpush2.msra.mxu0 0.0
    %1440 = vmatprep.subr.mxu0 0.0
    %1441 = vmatpush2.msra.mxu0 0.0
    %1442 = vmatprep.subr.mxu0 0.0
    %1443 = vmatpush2.msra.mxu0 0.0
    %1444 = vmatprep.subr.mxu0 0.0
    %1445 = vmatpush2.msra.mxu0 0.0
    %1446 = vmatprep.subr.mxu0 0.0
    %1447 = vmatpush2.msra.mxu0 0.0
    %1448 = vmatprep.subr.mxu0 0.0
    %1449 = vmatpush2.msra.mxu0 0.0
    %1450 = vmatprep.subr.mxu0 0.0
    %1451 = vmatpush2.msra.mxu0 0.0
    %1452 = vmatprep.subr.mxu0 0.0
    %1453 = vmatpush2.msra.mxu0 0.0
    %1454 = vmatprep.subr.mxu0 0.0
    %1455 = vmatpush2.msra.mxu0 0.0
    %1456 = vmatprep.mubr.f32.mxu0 0.0
    %1457 = vmatmul.mubr.f32.gmra.mxu0 %v1362
    %v1458 = vpop.f32.mrf.mxu0
    %v1459 = vadd.f32 %v1323, %v1458
    %v1460 = vpop.f32.mrf.mxu0
    %v1461 = vadd.f32 %v1323, %v1460
    %1462 = vmatprep.mubr.f32.mxu0 0.0
    %1463 = vmatmul.mubr.f32.gmra.mxu0 %v1365
    %v1464 = vpop.f32.mrf.mxu0
    %v1465 = vadd.f32 %v1328, %v1464
    %v1466 = vpop.f32.mrf.mxu0
    %v1467 = vadd.f32 %v1328, %v1466
    %1468 = vmatprep.mubr.f32.mxu0 0.0
    %1469 = vmatmul.mubr.f32.gmra.mxu0 %v1368
    %v1470 = vpop.f32.mrf.mxu0
    %v1471 = vadd.f32 %v1333, %v1470
    %v1472 = vpop.f32.mrf.mxu0
    %v1473 = vadd.f32 %v1333, %v1472
    %1474 = vmatprep.mubr.f32.mxu0 0.0
    %1475 = vmatmul.mubr.f32.gmra.mxu0 %v1371
    %v1476 = vpop.f32.mrf.mxu0
    %v1477 = vadd.f32 %v1338, %v1476
    %v1478 = vpop.f32.mrf.mxu0
    %v1479 = vadd.f32 %v1338, %v1478
    %1480 = vmatprep.mubr.f32.mxu0 0.0
    %1481 = vmatmul.mubr.f32.gmra.mxu0 %v1374
    %v1482 = vpop.f32.mrf.mxu0
    %v1483 = vadd.f32 %v1343, %v1482
    %v1484 = vpop.f32.mrf.mxu0
    %v1485 = vadd.f32 %v1343, %v1484
    %1486 = vmatprep.mubr.f32.mxu0 0.0
    %1487 = vmatmul.mubr.f32.gmra.mxu0 %v1377
    %v1488 = vpop.f32.mrf.mxu0
    %v1489 = vadd.f32 %v1348, %v1488
    %v1490 = vpop.f32.mrf.mxu0
    %v1491 = vadd.f32 %v1348, %v1490
    %1492 = vmatprep.mubr.f32.mxu0 0.0
    %1493 = vmatmul.mubr.f32.gmra.mxu0 %v1380
    %v1494 = vpop.f32.mrf.mxu0
    %v1495 = vadd.f32 %v1353, %v1494
    %v1496 = vpop.f32.mrf.mxu0
    %v1497 = vadd.f32 %v1353, %v1496
    %1498 = vmatprep.mubr.f32.mxu0 0.0
    %1499 = vmatmul.mubr.f32.gmra.mxu0 %v1383
    %v1500 = vpop.f32.mrf.mxu0
    %v1501 = vadd.f32 %v1358, %v1500
    %v1502 = vpop.f32.mrf.mxu0
    %v1503 = vadd.f32 %v1358, %v1502
    %1504 = vdwg.mxu0
    %v1505 = vmul.f32 %v1459, 100.0
    %v1506 = vmul.f32 %v1461, 100.0
    %v1507 = vmul.f32 %v1465, 100.0
    %v1508 = vmul.f32 %v1467, 100.0
    %v1509 = vmul.f32 %v1471, 100.0
    %v1510 = vmul.f32 %v1473, 100.0
    %v1511 = vmul.f32 %v1477, 100.0
    %v1512 = vmul.f32 %v1479, 100.0
    %v1513 = vmul.f32 %v1483, 100.0
    %v1514 = vmul.f32 %v1485, 100.0
    %v1515 = vmul.f32 %v1489, 100.0
    %v1516 = vmul.f32 %v1491, 100.0
    %v1517 = vmul.f32 %v1495, 100.0
    %v1518 = vmul.f32 %v1497, 100.0
    %v1519 = vmul.f32 %v1501, 100.0
    %v1520 = vmul.f32 %v1503, 100.0
    %vm1521 = vcmp.gt.f32.partialorder %v1505, 20.0
    %vm1522 = vcmp.gt.f32.partialorder %v1506, 20.0
    %vm1523 = vcmp.gt.f32.partialorder %v1507, 20.0
    %vm1524 = vcmp.gt.f32.partialorder %v1508, 20.0
    %vm1525 = vcmp.gt.f32.partialorder %v1509, 20.0
    %vm1526 = vcmp.gt.f32.partialorder %v1510, 20.0
    %vm1527 = vcmp.gt.f32.partialorder %v1511, 20.0
    %vm1528 = vcmp.gt.f32.partialorder %v1512, 20.0
    %vm1529 = vcmp.gt.f32.partialorder %v1513, 20.0
    %vm1530 = vcmp.gt.f32.partialorder %v1514, 20.0
    %vm1531 = vcmp.gt.f32.partialorder %v1515, 20.0
    %vm1532 = vcmp.gt.f32.partialorder %v1516, 20.0
    %vm1533 = vcmp.gt.f32.partialorder %v1517, 20.0
    %vm1534 = vcmp.gt.f32.partialorder %v1518, 20.0
    %vm1535 = vcmp.gt.f32.partialorder %v1519, 20.0
    %vm1536 = vcmp.gt.f32.partialorder %v1520, 20.0
    %v1537 = vmin.f32 %v1505, 20.0
    %v1538 = vmin.f32 %v1506, 20.0
    %v1539 = vmin.f32 %v1507, 20.0
    %v1540 = vmin.f32 %v1508, 20.0
    %v1541 = vmin.f32 %v1509, 20.0
    %v1542 = vmin.f32 %v1510, 20.0
    %v1543 = vmin.f32 %v1511, 20.0
    %v1544 = vmin.f32 %v1512, 20.0
    %v1545 = vmin.f32 %v1513, 20.0
    %v1546 = vmin.f32 %v1514, 20.0
    %v1547 = vmin.f32 %v1515, 20.0
    %v1548 = vmin.f32 %v1516, 20.0
    %v1549 = vmin.f32 %v1517, 20.0
    %v1550 = vmin.f32 %v1518, 20.0
    %v1551 = vmin.f32 %v1519, 20.0
    %v1552 = vmin.f32 %v1520, 20.0
    %v1553 = vmul.f32 %v1537, 1.442695
    %v1554 = vpow.pop %v1553
    %v1555 = vmul.f32 %v1538, 1.442695
    %v1556 = vpow.pop %v1555
    %v1557 = vmul.f32 %v1539, 1.442695
    %v1558 = vpow.pop %v1557
    %v1559 = vmul.f32 %v1540, 1.442695
    %v1560 = vpow.pop %v1559
    %v1561 = vmul.f32 %v1541, 1.442695
    %v1562 = vpow.pop %v1561
    %v1563 = vmul.f32 %v1542, 1.442695
    %v1564 = vpow.pop %v1563
    %v1565 = vmul.f32 %v1543, 1.442695
    %v1566 = vpow.pop %v1565
    %v1567 = vmul.f32 %v1544, 1.442695
    %v1568 = vpow.pop %v1567
    %v1569 = vmul.f32 %v1545, 1.442695
    %v1570 = vpow.pop %v1569
    %v1571 = vmul.f32 %v1546, 1.442695
    %v1572 = vpow.pop %v1571
    %v1573 = vmul.f32 %v1547, 1.442695
    %v1574 = vpow.pop %v1573
    %v1575 = vmul.f32 %v1548, 1.442695
    %v1576 = vpow.pop %v1575
    %v1577 = vmul.f32 %v1549, 1.442695
    %v1578 = vpow.pop %v1577
    %v1579 = vmul.f32 %v1550, 1.442695
    %v1580 = vpow.pop %v1579
    %v1581 = vmul.f32 %v1551, 1.442695
    %v1582 = vpow.pop %v1581
    %v1583 = vmul.f32 %v1552, 1.442695
    %v1584 = vpow.pop %v1583
    %v1585 = vadd.f32 %v1554, 1.0
    %v1586 = vlog2.pop %v1585
    %v1587 = vmul.f32 %v1586, 0.6931472
    %v1588 = vmul.f32 -0.5, %v1554
    %v1589 = vadd.f32 %v1588, 1.0
    %v1590 = vmul.f32 %v1589, %v1554
    %v1591 = vand.u32 2147483647, %v1554
    %vm1592 = vcmp.lt.f32.partialorder %v1591, 0.0004427343
    %v1593 = vsel %vm1592, %v1590, %v1587
    %v1594 = vadd.f32 %v1556, 1.0
    %v1595 = vlog2.pop %v1594
    %v1596 = vmul.f32 %v1595, 0.6931472
    %v1597 = vmul.f32 -0.5, %v1556
    %v1598 = vadd.f32 %v1597, 1.0
    %v1599 = vmul.f32 %v1598, %v1556
    %v1600 = vand.u32 2147483647, %v1556
    %vm1601 = vcmp.lt.f32.partialorder %v1600, 0.0004427343
    %v1602 = vsel %vm1601, %v1599, %v1596
    %v1603 = vadd.f32 %v1558, 1.0
    %v1604 = vlog2.pop %v1603
    %v1605 = vmul.f32 %v1604, 0.6931472
    %v1606 = vmul.f32 -0.5, %v1558
    %v1607 = vadd.f32 %v1606, 1.0
    %v1608 = vmul.f32 %v1607, %v1558
    %v1609 = vand.u32 2147483647, %v1558
    %vm1610 = vcmp.lt.f32.partialorder %v1609, 0.0004427343
    %v1611 = vsel %vm1610, %v1608, %v1605
    %v1612 = vadd.f32 %v1560, 1.0
    %v1613 = vlog2.pop %v1612
    %v1614 = vmul.f32 %v1613, 0.6931472
    %v1615 = vmul.f32 -0.5, %v1560
    %v1616 = vadd.f32 %v1615, 1.0
    %v1617 = vmul.f32 %v1616, %v1560
    %v1618 = vand.u32 2147483647, %v1560
    %vm1619 = vcmp.lt.f32.partialorder %v1618, 0.0004427343
    %v1620 = vsel %vm1619, %v1617, %v1614
    %v1621 = vadd.f32 %v1562, 1.0
    %v1622 = vlog2.pop %v1621
    %v1623 = vmul.f32 %v1622, 0.6931472
    %v1624 = vmul.f32 -0.5, %v1562
    %v1625 = vadd.f32 %v1624, 1.0
    %v1626 = vmul.f32 %v1625, %v1562
    %v1627 = vand.u32 2147483647, %v1562
    %vm1628 = vcmp.lt.f32.partialorder %v1627, 0.0004427343
    %v1629 = vsel %vm1628, %v1626, %v1623
    %v1630 = vadd.f32 %v1564, 1.0
    %v1631 = vlog2.pop %v1630
    %v1632 = vmul.f32 %v1631, 0.6931472
    %v1633 = vmul.f32 -0.5, %v1564
    %v1634 = vadd.f32 %v1633, 1.0
    %v1635 = vmul.f32 %v1634, %v1564
    %v1636 = vand.u32 2147483647, %v1564
    %vm1637 = vcmp.lt.f32.partialorder %v1636, 0.0004427343
    %v1638 = vsel %vm1637, %v1635, %v1632
    %v1639 = vadd.f32 %v1566, 1.0
    %v1640 = vlog2.pop %v1639
    %v1641 = vmul.f32 %v1640, 0.6931472
    %v1642 = vmul.f32 -0.5, %v1566
    %v1643 = vadd.f32 %v1642, 1.0
    %v1644 = vmul.f32 %v1643, %v1566
    %v1645 = vand.u32 2147483647, %v1566
    %vm1646 = vcmp.lt.f32.partialorder %v1645, 0.0004427343
    %v1647 = vsel %vm1646, %v1644, %v1641
    %v1648 = vadd.f32 %v1568, 1.0
    %v1649 = vlog2.pop %v1648
    %v1650 = vmul.f32 %v1649, 0.6931472
    %v1651 = vmul.f32 -0.5, %v1568
    %v1652 = vadd.f32 %v1651, 1.0
    %v1653 = vmul.f32 %v1652, %v1568
    %v1654 = vand.u32 2147483647, %v1568
    %vm1655 = vcmp.lt.f32.partialorder %v1654, 0.0004427343
    %v1656 = vsel %vm1655, %v1653, %v1650
    %v1657 = vadd.f32 %v1570, 1.0
    %v1658 = vlog2.pop %v1657
    %v1659 = vmul.f32 %v1658, 0.6931472
    %v1660 = vmul.f32 -0.5, %v1570
    %v1661 = vadd.f32 %v1660, 1.0
    %v1662 = vmul.f32 %v1661, %v1570
    %v1663 = vand.u32 2147483647, %v1570
    %vm1664 = vcmp.lt.f32.partialorder %v1663, 0.0004427343
    %v1665 = vsel %vm1664, %v1662, %v1659
    %v1666 = vadd.f32 %v1572, 1.0
    %v1667 = vlog2.pop %v1666
    %v1668 = vmul.f32 %v1667, 0.6931472
    %v1669 = vmul.f32 -0.5, %v1572
    %v1670 = vadd.f32 %v1669, 1.0
    %v1671 = vmul.f32 %v1670, %v1572
    %v1672 = vand.u32 2147483647, %v1572
    %vm1673 = vcmp.lt.f32.partialorder %v1672, 0.0004427343
    %v1674 = vsel %vm1673, %v1671, %v1668
    %v1675 = vadd.f32 %v1574, 1.0
    %v1676 = vlog2.pop %v1675
    %v1677 = vmul.f32 %v1676, 0.6931472
    %v1678 = vmul.f32 -0.5, %v1574
    %v1679 = vadd.f32 %v1678, 1.0
    %v1680 = vmul.f32 %v1679, %v1574
    %v1681 = vand.u32 2147483647, %v1574
    %vm1682 = vcmp.lt.f32.partialorder %v1681, 0.0004427343
    %v1683 = vsel %vm1682, %v1680, %v1677
    %v1684 = vadd.f32 %v1576, 1.0
    %v1685 = vlog2.pop %v1684
    %v1686 = vmul.f32 %v1685, 0.6931472
    %v1687 = vmul.f32 -0.5, %v1576
    %v1688 = vadd.f32 %v1687, 1.0
    %v1689 = vmul.f32 %v1688, %v1576
    %v1690 = vand.u32 2147483647, %v1576
    %vm1691 = vcmp.lt.f32.partialorder %v1690, 0.0004427343
    %v1692 = vsel %vm1691, %v1689, %v1686
    %v1693 = vadd.f32 %v1578, 1.0
    %v1694 = vlog2.pop %v1693
    %v1695 = vmul.f32 %v1694, 0.6931472
    %v1696 = vmul.f32 -0.5, %v1578
    %v1697 = vadd.f32 %v1696, 1.0
    %v1698 = vmul.f32 %v1697, %v1578
    %v1699 = vand.u32 2147483647, %v1578
    %vm1700 = vcmp.lt.f32.partialorder %v1699, 0.0004427343
    %v1701 = vsel %vm1700, %v1698, %v1695
    %v1702 = vadd.f32 %v1580, 1.0
    %v1703 = vlog2.pop %v1702
    %v1704 = vmul.f32 %v1703, 0.6931472
    %v1705 = vmul.f32 -0.5, %v1580
    %v1706 = vadd.f32 %v1705, 1.0
    %v1707 = vmul.f32 %v1706, %v1580
    %v1708 = vand.u32 2147483647, %v1580
    %vm1709 = vcmp.lt.f32.partialorder %v1708, 0.0004427343
    %v1710 = vsel %vm1709, %v1707, %v1704
    %v1711 = vadd.f32 %v1582, 1.0
    %v1712 = vlog2.pop %v1711
    %v1713 = vmul.f32 %v1712, 0.6931472
    %v1714 = vmul.f32 -0.5, %v1582
    %v1715 = vadd.f32 %v1714, 1.0
    %v1716 = vmul.f32 %v1715, %v1582
    %v1717 = vand.u32 2147483647, %v1582
    %vm1718 = vcmp.lt.f32.partialorder %v1717, 0.0004427343
    %v1719 = vsel %vm1718, %v1716, %v1713
    %v1720 = vadd.f32 %v1584, 1.0
    %v1721 = vlog2.pop %v1720
    %v1722 = vmul.f32 %v1721, 0.6931472
    %v1723 = vmul.f32 -0.5, %v1584
    %v1724 = vadd.f32 %v1723, 1.0
    %v1725 = vmul.f32 %v1724, %v1584
    %v1726 = vand.u32 2147483647, %v1584
    %vm1727 = vcmp.lt.f32.partialorder %v1726, 0.0004427343
    %v1728 = vsel %vm1727, %v1725, %v1722
    %v1729 = vmul.f32 %v1593, 0.01
    %v1730 = vmul.f32 %v1602, 0.01
    %v1731 = vmul.f32 %v1611, 0.01
    %v1732 = vmul.f32 %v1620, 0.01
    %v1733 = vmul.f32 %v1629, 0.01
    %v1734 = vmul.f32 %v1638, 0.01
    %v1735 = vmul.f32 %v1647, 0.01
    %v1736 = vmul.f32 %v1656, 0.01
    %v1737 = vmul.f32 %v1665, 0.01
    %v1738 = vmul.f32 %v1674, 0.01
    %v1739 = vmul.f32 %v1683, 0.01
    %v1740 = vmul.f32 %v1692, 0.01
    %v1741 = vmul.f32 %v1701, 0.01
    %v1742 = vmul.f32 %v1710, 0.01
    %v1743 = vmul.f32 %v1719, 0.01
    %v1744 = vmul.f32 %v1728, 0.01
    %v1745 = vsel %vm1521, %v1459, %v1729
    %v1746 = vsel %vm1522, %v1461, %v1730
    %v1747 = vsel %vm1523, %v1465, %v1731
    %v1748 = vsel %vm1524, %v1467, %v1732
    %v1749 = vsel %vm1525, %v1471, %v1733
    %v1750 = vsel %vm1526, %v1473, %v1734
    %v1751 = vsel %vm1527, %v1477, %v1735
    %v1752 = vsel %vm1528, %v1479, %v1736
    %v1753 = vsel %vm1529, %v1483, %v1737
    %v1754 = vsel %vm1530, %v1485, %v1738
    %v1755 = vsel %vm1531, %v1489, %v1739
    %v1756 = vsel %vm1532, %v1491, %v1740
    %v1757 = vsel %vm1533, %v1495, %v1741
    %v1758 = vsel %vm1534, %v1497, %v1742
    %v1759 = vsel %vm1535, %v1501, %v1743
    %v1760 = vsel %vm1536, %v1503, %v1744
    %v1761 = vld [vmem:[%s6] sm:$0xff]
    %v1762 = vld [vmem:[%s6 + $0x8] sm:$0xff]
    %v1763 = vld [vmem:[%s6 + $0x10] sm:$0xff]
    %v1764 = vld [vmem:[%s6 + $0x18] sm:$0x1]
    %v1765 = vld [vmem:[%s7] sm:$0xff]
    %v1766 = vld [vmem:[%s7 + $0x8] sm:$0xff]
    %v1767 = vld [vmem:[%s7 + $0x10] sm:$0xff]
    %v1768 = vld [vmem:[%s7 + $0x18] sm:$0x1]
    %1770 = vset.pattern.permute.xlu0 0
    %1771 = vperm.xlu0 %1770, %v1765
    %v1772 = vpop.permute.xlu0 %1771
    %1775 = vset.pattern.permute.xlu0 0
    %1776 = vperm.xlu0 %1775, %v1766
    %v1777 = vpop.permute.xlu0 %1776
    %1780 = vset.pattern.permute.xlu0 0
    %1781 = vperm.xlu0 %1780, %v1767
    %v1782 = vpop.permute.xlu0 %1781
    %1785 = vset.pattern.permute.xlu0 0
    %1786 = vperm.xlu0 %1785, %v1768
    %v1787 = vpop.permute.xlu0 %1786
    %vm1789 = vcmask 523264
    %v1791 = vsel %vm1789, %v1761, 0
    %v1794 = vsel %vm1789, %v1762, 0
    %v1797 = vsel %vm1789, %v1763, 0
    %v1800 = vsel %vm1789, %v1764, 0
    %1802 = vmatprep.subr.mxu0 0.0
    %1803 = vmatpush1.msra.mxu0 0.0
    %1804 = vmatprep.subr.mxu0 0.0
    %1805 = vmatpush1.msra.mxu0 0.0
    %1806 = vmatprep.subr.mxu0 0.0
    %1807 = vmatpush1.msra.mxu0 0.0
    %1808 = vmatprep.subr.mxu0 0.0
    %1809 = vmatpush1.msra.mxu0 0.0
    %1810 = vmatprep.subr.mxu0 0.0
    %1811 = vmatpush1.msra.mxu0 0.0
    %1812 = vmatprep.subr.mxu0 0.0
    %1813 = vmatpush1.msra.mxu0 0.0
    %1814 = vmatprep.subr.mxu0 0.0
    %1815 = vmatpush1.msra.mxu0 0.0
    %1816 = vmatprep.subr.mxu0 0.0
    %1817 = vmatpush1.msra.mxu0 0.0
    %1818 = vmatprep.subr.mxu0 %v1760
    %1819 = vmatpush1.msra.mxu0 %v1759
    %1820 = vmatprep.subr.mxu0 %v1758
    %1821 = vmatpush1.msra.mxu0 %v1757
    %1822 = vmatprep.subr.mxu0 %v1756
    %1823 = vmatpush1.msra.mxu0 %v1755
    %1824 = vmatprep.subr.mxu0 %v1754
    %1825 = vmatpush1.msra.mxu0 %v1753
    %1826 = vmatprep.subr.mxu0 %v1752
    %1827 = vmatpush1.msra.mxu0 %v1751
    %1828 = vmatprep.subr.mxu0 %v1750
    %1829 = vmatpush1.msra.mxu0 %v1749
    %1830 = vmatprep.subr.mxu0 %v1748
    %1831 = vmatpush1.msra.mxu0 %v1747
    %1832 = vmatprep.subr.mxu0 %v1746
    %1833 = vmatpush1.msra.mxu0 %v1745
    %1834 = vmatprep.subr.mxu0 0.0
    %1835 = vmatpush2.msra.mxu0 0.0
    %1836 = vmatprep.subr.mxu0 0.0
    %1837 = vmatpush2.msra.mxu0 0.0
    %1838 = vmatprep.subr.mxu0 0.0
    %1839 = vmatpush2.msra.mxu0 0.0
    %1840 = vmatprep.subr.mxu0 0.0
    %1841 = vmatpush2.msra.mxu0 0.0
    %1842 = vmatprep.subr.mxu0 0.0
    %1843 = vmatpush2.msra.mxu0 0.0
    %1844 = vmatprep.subr.mxu0 0.0
    %1845 = vmatpush2.msra.mxu0 0.0
    %1846 = vmatprep.subr.mxu0 0.0
    %1847 = vmatpush2.msra.mxu0 0.0
    %1848 = vmatprep.subr.mxu0 0.0
    %1849 = vmatpush2.msra.mxu0 0.0
    %1850 = vmatprep.subr.mxu0 0.0
    %1851 = vmatpush2.msra.mxu0 0.0
    %1852 = vmatprep.subr.mxu0 0.0
    %1853 = vmatpush2.msra.mxu0 0.0
    %1854 = vmatprep.subr.mxu0 0.0
    %1855 = vmatpush2.msra.mxu0 0.0
    %1856 = vmatprep.subr.mxu0 0.0
    %1857 = vmatpush2.msra.mxu0 0.0
    %1858 = vmatprep.subr.mxu0 0.0
    %1859 = vmatpush2.msra.mxu0 0.0
    %1860 = vmatprep.subr.mxu0 0.0
    %1861 = vmatpush2.msra.mxu0 0.0
    %1862 = vmatprep.subr.mxu0 0.0
    %1863 = vmatpush2.msra.mxu0 0.0
    %1864 = vmatprep.subr.mxu0 0.0
    %1865 = vmatpush2.msra.mxu0 0.0
    %1866 = vmatprep.mubr.f32.mxu0 0.0
    %1867 = vmatmul.mubr.f32.gmra.mxu0 %v1791
    %v1868 = vpop.f32.mrf.mxu0
    %v1869 = vadd.f32 %v1772, %v1868
    %v1870 = vpop.f32.mrf.mxu0
    %v1871 = vadd.f32 %v1772, %v1870
    %1872 = vmatprep.mubr.f32.mxu0 0.0
    %1873 = vmatmul.mubr.f32.gmra.mxu0 %v1794
    %v1874 = vpop.f32.mrf.mxu0
    %v1875 = vadd.f32 %v1777, %v1874
    %v1876 = vpop.f32.mrf.mxu0
    %v1877 = vadd.f32 %v1777, %v1876
    %1878 = vmatprep.mubr.f32.mxu0 0.0
    %1879 = vmatmul.mubr.f32.gmra.mxu0 %v1797
    %v1880 = vpop.f32.mrf.mxu0
    %v1881 = vadd.f32 %v1782, %v1880
    %v1882 = vpop.f32.mrf.mxu0
    %v1883 = vadd.f32 %v1782, %v1882
    %1884 = vmatprep.mubr.f32.mxu0 0.0
    %1885 = vmatmul.mubr.f32.gmra.mxu0 %v1800
    %v1886 = vpop.f32.mrf.mxu0
    %v1887 = vadd.f32 %v1787, %v1886
    %v1888 = vpop.f32.mrf.mxu0
    %v1889 = vadd.f32 %v1787, %v1888
    %1890 = vdwg.mxu0
    %v1891 = vmul.f32 %v1869, 100.0
    %v1892 = vmul.f32 %v1871, 100.0
    %v1893 = vmul.f32 %v1875, 100.0
    %v1894 = vmul.f32 %v1877, 100.0
    %v1895 = vmul.f32 %v1881, 100.0
    %v1896 = vmul.f32 %v1883, 100.0
    %v1897 = vmul.f32 %v1887, 100.0
    %v1898 = vmul.f32 %v1889, 100.0
    %vm1899 = vcmp.gt.f32.partialorder %v1891, 20.0
    %vm1900 = vcmp.gt.f32.partialorder %v1892, 20.0
    %vm1901 = vcmp.gt.f32.partialorder %v1893, 20.0
    %vm1902 = vcmp.gt.f32.partialorder %v1894, 20.0
    %vm1903 = vcmp.gt.f32.partialorder %v1895, 20.0
    %vm1904 = vcmp.gt.f32.partialorder %v1896, 20.0
    %vm1905 = vcmp.gt.f32.partialorder %v1897, 20.0
    %vm1906 = vcmp.gt.f32.partialorder %v1898, 20.0
    %v1907 = vmin.f32 %v1891, 20.0
    %v1908 = vmin.f32 %v1892, 20.0
    %v1909 = vmin.f32 %v1893, 20.0
    %v1910 = vmin.f32 %v1894, 20.0
    %v1911 = vmin.f32 %v1895, 20.0
    %v1912 = vmin.f32 %v1896, 20.0
    %v1913 = vmin.f32 %v1897, 20.0
    %v1914 = vmin.f32 %v1898, 20.0
    %v1915 = vmul.f32 %v1907, 1.442695
    %v1916 = vpow.pop %v1915
    %v1917 = vmul.f32 %v1908, 1.442695
    %v1918 = vpow.pop %v1917
    %v1919 = vmul.f32 %v1909, 1.442695
    %v1920 = vpow.pop %v1919
    %v1921 = vmul.f32 %v1910, 1.442695
    %v1922 = vpow.pop %v1921
    %v1923 = vmul.f32 %v1911, 1.442695
    %v1924 = vpow.pop %v1923
    %v1925 = vmul.f32 %v1912, 1.442695
    %v1926 = vpow.pop %v1925
    %v1927 = vmul.f32 %v1913, 1.442695
    %v1928 = vpow.pop %v1927
    %v1929 = vmul.f32 %v1914, 1.442695
    %v1930 = vpow.pop %v1929
    %v1931 = vadd.f32 %v1916, 1.0
    %v1932 = vlog2.pop %v1931
    %v1933 = vmul.f32 %v1932, 0.6931472
    %v1934 = vmul.f32 -0.5, %v1916
    %v1935 = vadd.f32 %v1934, 1.0
    %v1936 = vmul.f32 %v1935, %v1916
    %v1937 = vand.u32 2147483647, %v1916
    %vm1938 = vcmp.lt.f32.partialorder %v1937, 0.0004427343
    %v1939 = vsel %vm1938, %v1936, %v1933
    %v1940 = vadd.f32 %v1918, 1.0
    %v1941 = vlog2.pop %v1940
    %v1942 = vmul.f32 %v1941, 0.6931472
    %v1943 = vmul.f32 -0.5, %v1918
    %v1944 = vadd.f32 %v1943, 1.0
    %v1945 = vmul.f32 %v1944, %v1918
    %v1946 = vand.u32 2147483647, %v1918
    %vm1947 = vcmp.lt.f32.partialorder %v1946, 0.0004427343
    %v1948 = vsel %vm1947, %v1945, %v1942
    %v1949 = vadd.f32 %v1920, 1.0
    %v1950 = vlog2.pop %v1949
    %v1951 = vmul.f32 %v1950, 0.6931472
    %v1952 = vmul.f32 -0.5, %v1920
    %v1953 = vadd.f32 %v1952, 1.0
    %v1954 = vmul.f32 %v1953, %v1920
    %v1955 = vand.u32 2147483647, %v1920
    %vm1956 = vcmp.lt.f32.partialorder %v1955, 0.0004427343
    %v1957 = vsel %vm1956, %v1954, %v1951
    %v1958 = vadd.f32 %v1922, 1.0
    %v1959 = vlog2.pop %v1958
    %v1960 = vmul.f32 %v1959, 0.6931472
    %v1961 = vmul.f32 -0.5, %v1922
    %v1962 = vadd.f32 %v1961, 1.0
    %v1963 = vmul.f32 %v1962, %v1922
    %v1964 = vand.u32 2147483647, %v1922
    %vm1965 = vcmp.lt.f32.partialorder %v1964, 0.0004427343
    %v1966 = vsel %vm1965, %v1963, %v1960
    %v1967 = vadd.f32 %v1924, 1.0
    %v1968 = vlog2.pop %v1967
    %v1969 = vmul.f32 %v1968, 0.6931472
    %v1970 = vmul.f32 -0.5, %v1924
    %v1971 = vadd.f32 %v1970, 1.0
    %v1972 = vmul.f32 %v1971, %v1924
    %v1973 = vand.u32 2147483647, %v1924
    %vm1974 = vcmp.lt.f32.partialorder %v1973, 0.0004427343
    %v1975 = vsel %vm1974, %v1972, %v1969
    %v1976 = vadd.f32 %v1926, 1.0
    %v1977 = vlog2.pop %v1976
    %v1978 = vmul.f32 %v1977, 0.6931472
    %v1979 = vmul.f32 -0.5, %v1926
    %v1980 = vadd.f32 %v1979, 1.0
    %v1981 = vmul.f32 %v1980, %v1926
    %v1982 = vand.u32 2147483647, %v1926
    %vm1983 = vcmp.lt.f32.partialorder %v1982, 0.0004427343
    %v1984 = vsel %vm1983, %v1981, %v1978
    %v1985 = vadd.f32 %v1928, 1.0
    %v1986 = vlog2.pop %v1985
    %v1987 = vmul.f32 %v1986, 0.6931472
    %v1988 = vmul.f32 -0.5, %v1928
    %v1989 = vadd.f32 %v1988, 1.0
    %v1990 = vmul.f32 %v1989, %v1928
    %v1991 = vand.u32 2147483647, %v1928
    %vm1992 = vcmp.lt.f32.partialorder %v1991, 0.0004427343
    %v1993 = vsel %vm1992, %v1990, %v1987
    %v1994 = vadd.f32 %v1930, 1.0
    %v1995 = vlog2.pop %v1994
    %v1996 = vmul.f32 %v1995, 0.6931472
    %v1997 = vmul.f32 -0.5, %v1930
    %v1998 = vadd.f32 %v1997, 1.0
    %v1999 = vmul.f32 %v1998, %v1930
    %v2000 = vand.u32 2147483647, %v1930
    %vm2001 = vcmp.lt.f32.partialorder %v2000, 0.0004427343
    %v2002 = vsel %vm2001, %v1999, %v1996
    %v2003 = vmul.f32 %v1939, 0.01
    %v2004 = vmul.f32 %v1948, 0.01
    %v2005 = vmul.f32 %v1957, 0.01
    %v2006 = vmul.f32 %v1966, 0.01
    %v2007 = vmul.f32 %v1975, 0.01
    %v2008 = vmul.f32 %v1984, 0.01
    %v2009 = vmul.f32 %v1993, 0.01
    %v2010 = vmul.f32 %v2002, 0.01
    %v2011 = vsel %vm1899, %v1869, %v2003
    %v2012 = vsel %vm1900, %v1871, %v2004
    %v2013 = vsel %vm1901, %v1875, %v2005
    %v2014 = vsel %vm1902, %v1877, %v2006
    %v2015 = vsel %vm1903, %v1881, %v2007
    %v2016 = vsel %vm1904, %v1883, %v2008
    %v2017 = vsel %vm1905, %v1887, %v2009
    %v2018 = vsel %vm1906, %v1889, %v2010
    %v2019 = vld [vmem:[%s8] sm:$0xff]
    %v2020 = vld [vmem:[%s8 + $0x8] sm:$0xff]
    %v2021 = vld [vmem:[%s8 + $0x10] sm:$0xff]
    %v2022 = vld [vmem:[%s8 + $0x18] sm:$0xff]
    %v2023 = vld [vmem:[%s8 + $0x20] sm:$0xff]
    %v2024 = vld [vmem:[%s8 + $0x28] sm:$0xff]
    %v2025 = vld [vmem:[%s8 + $0x30] sm:$0xff]
    %v2026 = vld [vmem:[%s8 + $0x38] sm:$0xff]
    %v2027 = vld [vmem:[%s9] sm:$0xff]
    %v2028 = vld [vmem:[%s9 + $0x8] sm:$0xff]
    %v2029 = vld [vmem:[%s9 + $0x10] sm:$0xff]
    %v2030 = vld [vmem:[%s9 + $0x18] sm:$0xff]
    %v2031 = vld [vmem:[%s9 + $0x20] sm:$0xff]
    %v2032 = vld [vmem:[%s9 + $0x28] sm:$0xff]
    %v2033 = vld [vmem:[%s9 + $0x30] sm:$0xff]
    %v2034 = vld [vmem:[%s9 + $0x38] sm:$0xff]
    %v2035 = vld [vmem:[%s10] sm:$0xff]
    %v2036 = vld [vmem:[%s10 + $0x8] sm:$0xff]
    %v2037 = vld [vmem:[%s10 + $0x10] sm:$0xff]
    %v2038 = vld [vmem:[%s10 + $0x18] sm:$0xff]
    %v2039 = vld [vmem:[%s10 + $0x20] sm:$0xff]
    %v2040 = vld [vmem:[%s10 + $0x28] sm:$0xff]
    %v2041 = vld [vmem:[%s10 + $0x30] sm:$0xff]
    %v2042 = vld [vmem:[%s10 + $0x38] sm:$0xff]
    %v2043 = vld [vmem:[#allocation2] sm:$0xff]
    %v2044 = vld [vmem:[#allocation2 + $0x8] sm:$0xff]
    %v2045 = vld [vmem:[#allocation2 + $0x10] sm:$0xff]
    %v2046 = vld [vmem:[#allocation2 + $0x18] sm:$0xff]
    %v2047 = vld [vmem:[#allocation2 + $0x20] sm:$0xff]
    %v2048 = vld [vmem:[#allocation2 + $0x28] sm:$0xff]
    %v2049 = vld [vmem:[#allocation2 + $0x30] sm:$0xff]
    %v2050 = vld [vmem:[#allocation2 + $0x38] sm:$0xff]
    %v2051 = vld [vmem:[#allocation2 + $0x40] sm:$0x7f]
    %v2052 = vld [vmem:[#allocation2 + $0x48] sm:$0x7f]
    %v2054 = vsel %vm1360, %v2027, 0
    %v2057 = vsel %vm1360, %v2028, 0
    %v2060 = vsel %vm1360, %v2029, 0
    %v2063 = vsel %vm1360, %v2030, 0
    %v2066 = vsel %vm1360, %v2031, 0
    %v2069 = vsel %vm1360, %v2032, 0
    %v2072 = vsel %vm1360, %v2033, 0
    %v2075 = vsel %vm1360, %v2034, 0
    %v2078 = vsel %vm1385, %v2051, 0
    %v2081 = vsel %vm1385, %v2052, 0
    %2083 = vmatprep.subr.mxu0 0.0
    %2084 = vmatpush1.msra.mxu0 0.0
    %2085 = vmatprep.subr.mxu0 0.0
    %2086 = vmatpush1.msra.mxu0 0.0
    %2087 = vmatprep.subr.mxu0 0.0
    %2088 = vmatpush1.msra.mxu0 0.0
    %2089 = vmatprep.subr.mxu0 0.0
    %2090 = vmatpush1.msra.mxu0 0.0
    %2091 = vmatprep.subr.mxu0 0.0
    %2092 = vmatpush1.msra.mxu0 0.0
    %2093 = vmatprep.subr.mxu0 0.0
    %2094 = vmatpush1.msra.mxu0 0.0
    %2095 = vmatprep.subr.mxu0 0.0
    %2096 = vmatpush1.msra.mxu0 0.0
    %2097 = vmatprep.subr.mxu0 0.0
    %2098 = vmatpush1.msra.mxu0 0.0
    %2099 = vmatprep.subr.mxu0 0.0
    %2100 = vmatpush1.msra.mxu0 0.0
    %2101 = vmatprep.subr.mxu0 0.0
    %2102 = vmatpush1.msra.mxu0 0.0
    %2103 = vmatprep.subr.mxu0 0.0
    %2104 = vmatpush1.msra.mxu0 0.0
    %2105 = vmatprep.subr.mxu0 %v2081
    %2106 = vmatpush1.msra.mxu0 %v2078
    %2107 = vmatprep.subr.mxu0 %v2050
    %2108 = vmatpush1.msra.mxu0 %v2049
    %2109 = vmatprep.subr.mxu0 %v2048
    %2110 = vmatpush1.msra.mxu0 %v2047
    %2111 = vmatprep.subr.mxu0 %v2046
    %2112 = vmatpush1.msra.mxu0 %v2045
    %2113 = vmatprep.subr.mxu0 %v2044
    %2114 = vmatpush1.msra.mxu0 %v2043
    %2115 = vmatprep.subr.mxu0 0.0
    %2116 = vmatpush2.msra.mxu0 0.0
    %2117 = vmatprep.subr.mxu0 0.0
    %2118 = vmatpush2.msra.mxu0 0.0
    %2119 = vmatprep.subr.mxu0 0.0
    %2120 = vmatpush2.msra.mxu0 0.0
    %2121 = vmatprep.subr.mxu0 0.0
    %2122 = vmatpush2.msra.mxu0 0.0
    %2123 = vmatprep.subr.mxu0 0.0
    %2124 = vmatpush2.msra.mxu0 0.0
    %2125 = vmatprep.subr.mxu0 0.0
    %2126 = vmatpush2.msra.mxu0 0.0
    %2127 = vmatprep.subr.mxu0 0.0
    %2128 = vmatpush2.msra.mxu0 0.0
    %2129 = vmatprep.subr.mxu0 0.0
    %2130 = vmatpush2.msra.mxu0 0.0
    %2131 = vmatprep.subr.mxu0 0.0
    %2132 = vmatpush2.msra.mxu0 0.0
    %2133 = vmatprep.subr.mxu0 0.0
    %2134 = vmatpush2.msra.mxu0 0.0
    %2135 = vmatprep.subr.mxu0 0.0
    %2136 = vmatpush2.msra.mxu0 0.0
    %2137 = vmatprep.subr.mxu0 0.0
    %2138 = vmatpush2.msra.mxu0 0.0
    %2139 = vmatprep.subr.mxu0 0.0
    %2140 = vmatpush2.msra.mxu0 0.0
    %2141 = vmatprep.subr.mxu0 0.0
    %2142 = vmatpush2.msra.mxu0 0.0
    %2143 = vmatprep.subr.mxu0 0.0
    %2144 = vmatpush2.msra.mxu0 0.0
    %2145 = vmatprep.subr.mxu0 0.0
    %2146 = vmatpush2.msra.mxu0 0.0
    %2147 = vmatprep.mubr.f32.mxu0 0.0
    %2148 = vmatmul.mubr.f32.gmra.mxu0 %v2054
    %v2149 = vpop.f32.mrf.mxu0
    %v2150 = vadd.f32 0.0, %v2149
    %v2151 = vpop.f32.mrf.mxu0
    %v2152 = vadd.f32 0.0, %v2151
    %2153 = vmatprep.mubr.f32.mxu0 0.0
    %2154 = vmatmul.mubr.f32.gmra.mxu0 %v2057
    %v2155 = vpop.f32.mrf.mxu0
    %v2156 = vadd.f32 0.0, %v2155
    %v2157 = vpop.f32.mrf.mxu0
    %v2158 = vadd.f32 0.0, %v2157
    %2159 = vmatprep.mubr.f32.mxu0 0.0
    %2160 = vmatmul.mubr.f32.gmra.mxu0 %v2060
    %v2161 = vpop.f32.mrf.mxu0
    %v2162 = vadd.f32 0.0, %v2161
    %v2163 = vpop.f32.mrf.mxu0
    %v2164 = vadd.f32 0.0, %v2163
    %2165 = vmatprep.mubr.f32.mxu0 0.0
    %2166 = vmatmul.mubr.f32.gmra.mxu0 %v2063
    %v2167 = vpop.f32.mrf.mxu0
    %v2168 = vadd.f32 0.0, %v2167
    %v2169 = vpop.f32.mrf.mxu0
    %v2170 = vadd.f32 0.0, %v2169
    %2171 = vmatprep.mubr.f32.mxu0 0.0
    %2172 = vmatmul.mubr.f32.gmra.mxu0 %v2066
    %v2173 = vpop.f32.mrf.mxu0
    %v2174 = vadd.f32 0.0, %v2173
    %v2175 = vpop.f32.mrf.mxu0
    %v2176 = vadd.f32 0.0, %v2175
    %2177 = vmatprep.mubr.f32.mxu0 0.0
    %2178 = vmatmul.mubr.f32.gmra.mxu0 %v2069
    %v2179 = vpop.f32.mrf.mxu0
    %v2180 = vadd.f32 0.0, %v2179
    %v2181 = vpop.f32.mrf.mxu0
    %v2182 = vadd.f32 0.0, %v2181
    %2183 = vmatprep.mubr.f32.mxu0 0.0
    %2184 = vmatmul.mubr.f32.gmra.mxu0 %v2072
    %v2185 = vpop.f32.mrf.mxu0
    %v2186 = vadd.f32 0.0, %v2185
    %v2187 = vpop.f32.mrf.mxu0
    %v2188 = vadd.f32 0.0, %v2187
    %2189 = vmatprep.mubr.f32.mxu0 0.0
    %2190 = vmatmul.mubr.f32.gmra.mxu0 %v2075
    %v2191 = vpop.f32.mrf.mxu0
    %v2192 = vadd.f32 0.0, %v2191
    %v2193 = vpop.f32.mrf.mxu0
    %v2194 = vadd.f32 0.0, %v2193
    %2195 = vdwg.mxu0
    %vm2196 = vcmask 203776
    %v2198 = vsel %vm2196, %v2019, 0
    %v2201 = vsel %vm2196, %v2020, 0
    %v2204 = vsel %vm2196, %v2021, 0
    %v2207 = vsel %vm2196, %v2022, 0
    %v2210 = vsel %vm2196, %v2023, 0
    %v2213 = vsel %vm2196, %v2024, 0
    %v2216 = vsel %vm2196, %v2025, 0
    %v2219 = vsel %vm2196, %v2026, 0
    %vm2221 = vcmask 1040384
    %v2223 = vsel %vm2221, %v2017, 0
    %v2226 = vsel %vm2221, %v2018, 0
    %2228 = vmatprep.subr.mxu0 0.0
    %2229 = vmatpush1.msra.mxu0 0.0
    %2230 = vmatprep.subr.mxu0 0.0
    %2231 = vmatpush1.msra.mxu0 0.0
    %2232 = vmatprep.subr.mxu0 0.0
    %2233 = vmatpush1.msra.mxu0 0.0
    %2234 = vmatprep.subr.mxu0 0.0
    %2235 = vmatpush1.msra.mxu0 0.0
    %2236 = vmatprep.subr.mxu0 0.0
    %2237 = vmatpush1.msra.mxu0 0.0
    %2238 = vmatprep.subr.mxu0 0.0
    %2239 = vmatpush1.msra.mxu0 0.0
    %2240 = vmatprep.subr.mxu0 0.0
    %2241 = vmatpush1.msra.mxu0 0.0
    %2242 = vmatprep.subr.mxu0 0.0
    %2243 = vmatpush1.msra.mxu0 0.0
    %2244 = vmatprep.subr.mxu0 0.0
    %2245 = vmatpush1.msra.mxu0 0.0
    %2246 = vmatprep.subr.mxu0 0.0
    %2247 = vmatpush1.msra.mxu0 0.0
    %2248 = vmatprep.subr.mxu0 0.0
    %2249 = vmatpush1.msra.mxu0 0.0
    %2250 = vmatprep.subr.mxu0 0.0
    %2251 = vmatpush1.msra.mxu0 0.0
    %2252 = vmatprep.subr.mxu0 %v2226
    %2253 = vmatpush1.msra.mxu0 %v2223
    %2254 = vmatprep.subr.mxu0 %v2016
    %2255 = vmatpush1.msra.mxu0 %v2015
    %2256 = vmatprep.subr.mxu0 %v2014
    %2257 = vmatpush1.msra.mxu0 %v2013
    %2258 = vmatprep.subr.mxu0 %v2012
    %2259 = vmatpush1.msra.mxu0 %v2011
    %2260 = vmatprep.subr.mxu0 0.0
    %2261 = vmatpush2.msra.mxu0 0.0
    %2262 = vmatprep.subr.mxu0 0.0
    %2263 = vmatpush2.msra.mxu0 0.0
    %2264 = vmatprep.subr.mxu0 0.0
    %2265 = vmatpush2.msra.mxu0 0.0
    %2266 = vmatprep.subr.mxu0 0.0
    %2267 = vmatpush2.msra.mxu0 0.0
    %2268 = vmatprep.subr.mxu0 0.0
    %2269 = vmatpush2.msra.mxu0 0.0
    %2270 = vmatprep.subr.mxu0 0.0
    %2271 = vmatpush2.msra.mxu0 0.0
    %2272 = vmatprep.subr.mxu0 0.0
    %2273 = vmatpush2.msra.mxu0 0.0
    %2274 = vmatprep.subr.mxu0 0.0
    %2275 = vmatpush2.msra.mxu0 0.0
    %2276 = vmatprep.subr.mxu0 0.0
    %2277 = vmatpush2.msra.mxu0 0.0
    %2278 = vmatprep.subr.mxu0 0.0
    %2279 = vmatpush2.msra.mxu0 0.0
    %2280 = vmatprep.subr.mxu0 0.0
    %2281 = vmatpush2.msra.mxu0 0.0
    %2282 = vmatprep.subr.mxu0 0.0
    %2283 = vmatpush2.msra.mxu0 0.0
    %2284 = vmatprep.subr.mxu0 0.0
    %2285 = vmatpush2.msra.mxu0 0.0
    %2286 = vmatprep.subr.mxu0 0.0
    %2287 = vmatpush2.msra.mxu0 0.0
    %2288 = vmatprep.subr.mxu0 0.0
    %2289 = vmatpush2.msra.mxu0 0.0
    %2290 = vmatprep.subr.mxu0 0.0
    %2291 = vmatpush2.msra.mxu0 0.0
    %2292 = vmatprep.mubr.f32.mxu0 0.0
    %2293 = vmatmul.mubr.f32.gmra.mxu0 %v2198
    %v2294 = vpop.f32.mrf.mxu0
    %v2295 = vadd.f32 %v2150, %v2294
    %v2296 = vpop.f32.mrf.mxu0
    %v2297 = vadd.f32 %v2152, %v2296
    %2298 = vmatprep.mubr.f32.mxu0 0.0
    %2299 = vmatmul.mubr.f32.gmra.mxu0 %v2201
    %v2300 = vpop.f32.mrf.mxu0
    %v2301 = vadd.f32 %v2156, %v2300
    %v2302 = vpop.f32.mrf.mxu0
    %v2303 = vadd.f32 %v2158, %v2302
    %2304 = vmatprep.mubr.f32.mxu0 0.0
    %2305 = vmatmul.mubr.f32.gmra.mxu0 %v2204
    %v2306 = vpop.f32.mrf.mxu0
    %v2307 = vadd.f32 %v2162, %v2306
    %v2308 = vpop.f32.mrf.mxu0
    %v2309 = vadd.f32 %v2164, %v2308
    %2310 = vmatprep.mubr.f32.mxu0 0.0
    %2311 = vmatmul.mubr.f32.gmra.mxu0 %v2207
    %v2312 = vpop.f32.mrf.mxu0
    %v2313 = vadd.f32 %v2168, %v2312
    %v2314 = vpop.f32.mrf.mxu0
    %v2315 = vadd.f32 %v2170, %v2314
    %2316 = vmatprep.mubr.f32.mxu0 0.0
    %2317 = vmatmul.mubr.f32.gmra.mxu0 %v2210
    %v2318 = vpop.f32.mrf.mxu0
    %v2319 = vadd.f32 %v2174, %v2318
    %v2320 = vpop.f32.mrf.mxu0
    %v2321 = vadd.f32 %v2176, %v2320
    %2322 = vmatprep.mubr.f32.mxu0 0.0
    %2323 = vmatmul.mubr.f32.gmra.mxu0 %v2213
    %v2324 = vpop.f32.mrf.mxu0
    %v2325 = vadd.f32 %v2180, %v2324
    %v2326 = vpop.f32.mrf.mxu0
    %v2327 = vadd.f32 %v2182, %v2326
    %2328 = vmatprep.mubr.f32.mxu0 0.0
    %2329 = vmatmul.mubr.f32.gmra.mxu0 %v2216
    %v2330 = vpop.f32.mrf.mxu0
    %v2331 = vadd.f32 %v2186, %v2330
    %v2332 = vpop.f32.mrf.mxu0
    %v2333 = vadd.f32 %v2188, %v2332
    %2334 = vmatprep.mubr.f32.mxu0 0.0
    %2335 = vmatmul.mubr.f32.gmra.mxu0 %v2219
    %v2336 = vpop.f32.mrf.mxu0
    %v2337 = vadd.f32 %v2192, %v2336
    %v2338 = vpop.f32.mrf.mxu0
    %v2339 = vadd.f32 %v2194, %v2338
    %2340 = vdwg.mxu0
    %2342 = vset.pattern.permute.xlu0 0
    %2343 = vperm.xlu0 %2342, %v2035
    %v2344 = vpop.permute.xlu0 %2343
    %2347 = vset.pattern.permute.xlu0 0
    %2348 = vperm.xlu0 %2347, %v2036
    %v2349 = vpop.permute.xlu0 %2348
    %2352 = vset.pattern.permute.xlu0 0
    %2353 = vperm.xlu0 %2352, %v2037
    %v2354 = vpop.permute.xlu0 %2353
    %2357 = vset.pattern.permute.xlu0 0
    %2358 = vperm.xlu0 %2357, %v2038
    %v2359 = vpop.permute.xlu0 %2358
    %2362 = vset.pattern.permute.xlu0 0
    %2363 = vperm.xlu0 %2362, %v2039
    %v2364 = vpop.permute.xlu0 %2363
    %2367 = vset.pattern.permute.xlu0 0
    %2368 = vperm.xlu0 %2367, %v2040
    %v2369 = vpop.permute.xlu0 %2368
    %2372 = vset.pattern.permute.xlu0 0
    %2373 = vperm.xlu0 %2372, %v2041
    %v2374 = vpop.permute.xlu0 %2373
    %2377 = vset.pattern.permute.xlu0 0
    %2378 = vperm.xlu0 %2377, %v2042
    %v2379 = vpop.permute.xlu0 %2378
    %v2381 = vadd.f32 %v2295, %v2344
    %v2382 = vadd.f32 %v2297, %v2344
    %v2383 = vadd.f32 %v2301, %v2349
    %v2384 = vadd.f32 %v2303, %v2349
    %v2385 = vadd.f32 %v2307, %v2354
    %v2386 = vadd.f32 %v2309, %v2354
    %v2387 = vadd.f32 %v2313, %v2359
    %v2388 = vadd.f32 %v2315, %v2359
    %v2389 = vadd.f32 %v2319, %v2364
    %v2390 = vadd.f32 %v2321, %v2364
    %v2391 = vadd.f32 %v2325, %v2369
    %v2392 = vadd.f32 %v2327, %v2369
    %v2393 = vadd.f32 %v2331, %v2374
    %v2394 = vadd.f32 %v2333, %v2374
    %v2395 = vadd.f32 %v2337, %v2379
    %v2396 = vadd.f32 %v2339, %v2379
    %v2397 = vmul.f32 %v2381, 100.0
    %v2398 = vmul.f32 %v2382, 100.0
    %v2399 = vmul.f32 %v2383, 100.0
    %v2400 = vmul.f32 %v2384, 100.0
    %v2401 = vmul.f32 %v2385, 100.0
    %v2402 = vmul.f32 %v2386, 100.0
    %v2403 = vmul.f32 %v2387, 100.0
    %v2404 = vmul.f32 %v2388, 100.0
    %v2405 = vmul.f32 %v2389, 100.0
    %v2406 = vmul.f32 %v2390, 100.0
    %v2407 = vmul.f32 %v2391, 100.0
    %v2408 = vmul.f32 %v2392, 100.0
    %v2409 = vmul.f32 %v2393, 100.0
    %v2410 = vmul.f32 %v2394, 100.0
    %v2411 = vmul.f32 %v2395, 100.0
    %v2412 = vmul.f32 %v2396, 100.0
    %vm2413 = vcmp.gt.f32.partialorder %v2397, 20.0
    %vm2414 = vcmp.gt.f32.partialorder %v2398, 20.0
    %vm2415 = vcmp.gt.f32.partialorder %v2399, 20.0
    %vm2416 = vcmp.gt.f32.partialorder %v2400, 20.0
    %vm2417 = vcmp.gt.f32.partialorder %v2401, 20.0
    %vm2418 = vcmp.gt.f32.partialorder %v2402, 20.0
    %vm2419 = vcmp.gt.f32.partialorder %v2403, 20.0
    %vm2420 = vcmp.gt.f32.partialorder %v2404, 20.0
    %vm2421 = vcmp.gt.f32.partialorder %v2405, 20.0
    %vm2422 = vcmp.gt.f32.partialorder %v2406, 20.0
    %vm2423 = vcmp.gt.f32.partialorder %v2407, 20.0
    %vm2424 = vcmp.gt.f32.partialorder %v2408, 20.0
    %vm2425 = vcmp.gt.f32.partialorder %v2409, 20.0
    %vm2426 = vcmp.gt.f32.partialorder %v2410, 20.0
    %vm2427 = vcmp.gt.f32.partialorder %v2411, 20.0
    %vm2428 = vcmp.gt.f32.partialorder %v2412, 20.0
    %v2429 = vmin.f32 %v2397, 20.0
    %v2430 = vmin.f32 %v2398, 20.0
    %v2431 = vmin.f32 %v2399, 20.0
    %v2432 = vmin.f32 %v2400, 20.0
    %v2433 = vmin.f32 %v2401, 20.0
    %v2434 = vmin.f32 %v2402, 20.0
    %v2435 = vmin.f32 %v2403, 20.0
    %v2436 = vmin.f32 %v2404, 20.0
    %v2437 = vmin.f32 %v2405, 20.0
    %v2438 = vmin.f32 %v2406, 20.0
    %v2439 = vmin.f32 %v2407, 20.0
    %v2440 = vmin.f32 %v2408, 20.0
    %v2441 = vmin.f32 %v2409, 20.0
    %v2442 = vmin.f32 %v2410, 20.0
    %v2443 = vmin.f32 %v2411, 20.0
    %v2444 = vmin.f32 %v2412, 20.0
    %v2445 = vmul.f32 %v2429, 1.442695
    %v2446 = vpow.pop %v2445
    %v2447 = vmul.f32 %v2430, 1.442695
    %v2448 = vpow.pop %v2447
    %v2449 = vmul.f32 %v2431, 1.442695
    %v2450 = vpow.pop %v2449
    %v2451 = vmul.f32 %v2432, 1.442695
    %v2452 = vpow.pop %v2451
    %v2453 = vmul.f32 %v2433, 1.442695
    %v2454 = vpow.pop %v2453
    %v2455 = vmul.f32 %v2434, 1.442695
    %v2456 = vpow.pop %v2455
    %v2457 = vmul.f32 %v2435, 1.442695
    %v2458 = vpow.pop %v2457
    %v2459 = vmul.f32 %v2436, 1.442695
    %v2460 = vpow.pop %v2459
    %v2461 = vmul.f32 %v2437, 1.442695
    %v2462 = vpow.pop %v2461
    %v2463 = vmul.f32 %v2438, 1.442695
    %v2464 = vpow.pop %v2463
    %v2465 = vmul.f32 %v2439, 1.442695
    %v2466 = vpow.pop %v2465
    %v2467 = vmul.f32 %v2440, 1.442695
    %v2468 = vpow.pop %v2467
    %v2469 = vmul.f32 %v2441, 1.442695
    %v2470 = vpow.pop %v2469
    %v2471 = vmul.f32 %v2442, 1.442695
    %v2472 = vpow.pop %v2471
    %v2473 = vmul.f32 %v2443, 1.442695
    %v2474 = vpow.pop %v2473
    %v2475 = vmul.f32 %v2444, 1.442695
    %v2476 = vpow.pop %v2475
    %v2477 = vadd.f32 %v2446, 1.0
    %v2478 = vlog2.pop %v2477
    %v2479 = vmul.f32 %v2478, 0.6931472
    %v2480 = vmul.f32 -0.5, %v2446
    %v2481 = vadd.f32 %v2480, 1.0
    %v2482 = vmul.f32 %v2481, %v2446
    %v2483 = vand.u32 2147483647, %v2446
    %vm2484 = vcmp.lt.f32.partialorder %v2483, 0.0004427343
    %v2485 = vsel %vm2484, %v2482, %v2479
    %v2486 = vadd.f32 %v2448, 1.0
    %v2487 = vlog2.pop %v2486
    %v2488 = vmul.f32 %v2487, 0.6931472
    %v2489 = vmul.f32 -0.5, %v2448
    %v2490 = vadd.f32 %v2489, 1.0
    %v2491 = vmul.f32 %v2490, %v2448
    %v2492 = vand.u32 2147483647, %v2448
    %vm2493 = vcmp.lt.f32.partialorder %v2492, 0.0004427343
    %v2494 = vsel %vm2493, %v2491, %v2488
    %v2495 = vadd.f32 %v2450, 1.0
    %v2496 = vlog2.pop %v2495
    %v2497 = vmul.f32 %v2496, 0.6931472
    %v2498 = vmul.f32 -0.5, %v2450
    %v2499 = vadd.f32 %v2498, 1.0
    %v2500 = vmul.f32 %v2499, %v2450
    %v2501 = vand.u32 2147483647, %v2450
    %vm2502 = vcmp.lt.f32.partialorder %v2501, 0.0004427343
    %v2503 = vsel %vm2502, %v2500, %v2497
    %v2504 = vadd.f32 %v2452, 1.0
    %v2505 = vlog2.pop %v2504
    %v2506 = vmul.f32 %v2505, 0.6931472
    %v2507 = vmul.f32 -0.5, %v2452
    %v2508 = vadd.f32 %v2507, 1.0
    %v2509 = vmul.f32 %v2508, %v2452
    %v2510 = vand.u32 2147483647, %v2452
    %vm2511 = vcmp.lt.f32.partialorder %v2510, 0.0004427343
    %v2512 = vsel %vm2511, %v2509, %v2506
    %v2513 = vadd.f32 %v2454, 1.0
    %v2514 = vlog2.pop %v2513
    %v2515 = vmul.f32 %v2514, 0.6931472
    %v2516 = vmul.f32 -0.5, %v2454
    %v2517 = vadd.f32 %v2516, 1.0
    %v2518 = vmul.f32 %v2517, %v2454
    %v2519 = vand.u32 2147483647, %v2454
    %vm2520 = vcmp.lt.f32.partialorder %v2519, 0.0004427343
    %v2521 = vsel %vm2520, %v2518, %v2515
    %v2522 = vadd.f32 %v2456, 1.0
    %v2523 = vlog2.pop %v2522
    %v2524 = vmul.f32 %v2523, 0.6931472
    %v2525 = vmul.f32 -0.5, %v2456
    %v2526 = vadd.f32 %v2525, 1.0
    %v2527 = vmul.f32 %v2526, %v2456
    %v2528 = vand.u32 2147483647, %v2456
    %vm2529 = vcmp.lt.f32.partialorder %v2528, 0.0004427343
    %v2530 = vsel %vm2529, %v2527, %v2524
    %v2531 = vadd.f32 %v2458, 1.0
    %v2532 = vlog2.pop %v2531
    %v2533 = vmul.f32 %v2532, 0.6931472
    %v2534 = vmul.f32 -0.5, %v2458
    %v2535 = vadd.f32 %v2534, 1.0
    %v2536 = vmul.f32 %v2535, %v2458
    %v2537 = vand.u32 2147483647, %v2458
    %vm2538 = vcmp.lt.f32.partialorder %v2537, 0.0004427343
    %v2539 = vsel %vm2538, %v2536, %v2533
    %v2540 = vadd.f32 %v2460, 1.0
    %v2541 = vlog2.pop %v2540
    %v2542 = vmul.f32 %v2541, 0.6931472
    %v2543 = vmul.f32 -0.5, %v2460
    %v2544 = vadd.f32 %v2543, 1.0
    %v2545 = vmul.f32 %v2544, %v2460
    %v2546 = vand.u32 2147483647, %v2460
    %vm2547 = vcmp.lt.f32.partialorder %v2546, 0.0004427343
    %v2548 = vsel %vm2547, %v2545, %v2542
    %v2549 = vadd.f32 %v2462, 1.0
    %v2550 = vlog2.pop %v2549
    %v2551 = vmul.f32 %v2550, 0.6931472
    %v2552 = vmul.f32 -0.5, %v2462
    %v2553 = vadd.f32 %v2552, 1.0
    %v2554 = vmul.f32 %v2553, %v2462
    %v2555 = vand.u32 2147483647, %v2462
    %vm2556 = vcmp.lt.f32.partialorder %v2555, 0.0004427343
    %v2557 = vsel %vm2556, %v2554, %v2551
    %v2558 = vadd.f32 %v2464, 1.0
    %v2559 = vlog2.pop %v2558
    %v2560 = vmul.f32 %v2559, 0.6931472
    %v2561 = vmul.f32 -0.5, %v2464
    %v2562 = vadd.f32 %v2561, 1.0
    %v2563 = vmul.f32 %v2562, %v2464
    %v2564 = vand.u32 2147483647, %v2464
    %vm2565 = vcmp.lt.f32.partialorder %v2564, 0.0004427343
    %v2566 = vsel %vm2565, %v2563, %v2560
    %v2567 = vadd.f32 %v2466, 1.0
    %v2568 = vlog2.pop %v2567
    %v2569 = vmul.f32 %v2568, 0.6931472
    %v2570 = vmul.f32 -0.5, %v2466
    %v2571 = vadd.f32 %v2570, 1.0
    %v2572 = vmul.f32 %v2571, %v2466
    %v2573 = vand.u32 2147483647, %v2466
    %vm2574 = vcmp.lt.f32.partialorder %v2573, 0.0004427343
    %v2575 = vsel %vm2574, %v2572, %v2569
    %v2576 = vadd.f32 %v2468, 1.0
    %v2577 = vlog2.pop %v2576
    %v2578 = vmul.f32 %v2577, 0.6931472
    %v2579 = vmul.f32 -0.5, %v2468
    %v2580 = vadd.f32 %v2579, 1.0
    %v2581 = vmul.f32 %v2580, %v2468
    %v2582 = vand.u32 2147483647, %v2468
    %vm2583 = vcmp.lt.f32.partialorder %v2582, 0.0004427343
    %v2584 = vsel %vm2583, %v2581, %v2578
    %v2585 = vadd.f32 %v2470, 1.0
    %v2586 = vlog2.pop %v2585
    %v2587 = vmul.f32 %v2586, 0.6931472
    %v2588 = vmul.f32 -0.5, %v2470
    %v2589 = vadd.f32 %v2588, 1.0
    %v2590 = vmul.f32 %v2589, %v2470
    %v2591 = vand.u32 2147483647, %v2470
    %vm2592 = vcmp.lt.f32.partialorder %v2591, 0.0004427343
    %v2593 = vsel %vm2592, %v2590, %v2587
    %v2594 = vadd.f32 %v2472, 1.0
    %v2595 = vlog2.pop %v2594
    %v2596 = vmul.f32 %v2595, 0.6931472
    %v2597 = vmul.f32 -0.5, %v2472
    %v2598 = vadd.f32 %v2597, 1.0
    %v2599 = vmul.f32 %v2598, %v2472
    %v2600 = vand.u32 2147483647, %v2472
    %vm2601 = vcmp.lt.f32.partialorder %v2600, 0.0004427343
    %v2602 = vsel %vm2601, %v2599, %v2596
    %v2603 = vadd.f32 %v2474, 1.0
    %v2604 = vlog2.pop %v2603
    %v2605 = vmul.f32 %v2604, 0.6931472
    %v2606 = vmul.f32 -0.5, %v2474
    %v2607 = vadd.f32 %v2606, 1.0
    %v2608 = vmul.f32 %v2607, %v2474
    %v2609 = vand.u32 2147483647, %v2474
    %vm2610 = vcmp.lt.f32.partialorder %v2609, 0.0004427343
    %v2611 = vsel %vm2610, %v2608, %v2605
    %v2612 = vadd.f32 %v2476, 1.0
    %v2613 = vlog2.pop %v2612
    %v2614 = vmul.f32 %v2613, 0.6931472
    %v2615 = vmul.f32 -0.5, %v2476
    %v2616 = vadd.f32 %v2615, 1.0
    %v2617 = vmul.f32 %v2616, %v2476
    %v2618 = vand.u32 2147483647, %v2476
    %vm2619 = vcmp.lt.f32.partialorder %v2618, 0.0004427343
    %v2620 = vsel %vm2619, %v2617, %v2614
    %v2621 = vmul.f32 %v2485, 0.01
    %v2622 = vmul.f32 %v2494, 0.01
    %v2623 = vmul.f32 %v2503, 0.01
    %v2624 = vmul.f32 %v2512, 0.01
    %v2625 = vmul.f32 %v2521, 0.01
    %v2626 = vmul.f32 %v2530, 0.01
    %v2627 = vmul.f32 %v2539, 0.01
    %v2628 = vmul.f32 %v2548, 0.01
    %v2629 = vmul.f32 %v2557, 0.01
    %v2630 = vmul.f32 %v2566, 0.01
    %v2631 = vmul.f32 %v2575, 0.01
    %v2632 = vmul.f32 %v2584, 0.01
    %v2633 = vmul.f32 %v2593, 0.01
    %v2634 = vmul.f32 %v2602, 0.01
    %v2635 = vmul.f32 %v2611, 0.01
    %v2636 = vmul.f32 %v2620, 0.01
    %v2637 = vsel %vm2413, %v2381, %v2621
    %v2638 = vsel %vm2414, %v2382, %v2622
    %v2639 = vsel %vm2415, %v2383, %v2623
    %v2640 = vsel %vm2416, %v2384, %v2624
    %v2641 = vsel %vm2417, %v2385, %v2625
    %v2642 = vsel %vm2418, %v2386, %v2626
    %v2643 = vsel %vm2419, %v2387, %v2627
    %v2644 = vsel %vm2420, %v2388, %v2628
    %v2645 = vsel %vm2421, %v2389, %v2629
    %v2646 = vsel %vm2422, %v2390, %v2630
    %v2647 = vsel %vm2423, %v2391, %v2631
    %v2648 = vsel %vm2424, %v2392, %v2632
    %v2649 = vsel %vm2425, %v2393, %v2633
    %v2650 = vsel %vm2426, %v2394, %v2634
    %v2651 = vsel %vm2427, %v2395, %v2635
    %v2652 = vsel %vm2428, %v2396, %v2636
    %v2653 = vld [vmem:[%s11] sm:$0xff]
    %v2654 = vld [vmem:[%s11 + $0x8] sm:$0xff]
    %v2655 = vld [vmem:[%s11 + $0x10] sm:$0xff]
    %v2656 = vld [vmem:[%s11 + $0x18] sm:$0xff]
    %v2657 = vld [vmem:[%s11 + $0x20] sm:$0xff]
    %v2658 = vld [vmem:[%s11 + $0x28] sm:$0xff]
    %v2659 = vld [vmem:[%s11 + $0x30] sm:$0xff]
    %v2660 = vld [vmem:[%s11 + $0x38] sm:$0xff]
    %v2661 = vld [vmem:[%s12] sm:$0xff]
    %v2662 = vld [vmem:[%s12 + $0x8] sm:$0xff]
    %v2663 = vld [vmem:[%s12 + $0x10] sm:$0xff]
    %v2664 = vld [vmem:[%s12 + $0x18] sm:$0xff]
    %v2665 = vld [vmem:[%s12 + $0x20] sm:$0xff]
    %v2666 = vld [vmem:[%s12 + $0x28] sm:$0xff]
    %v2667 = vld [vmem:[%s12 + $0x30] sm:$0xff]
    %v2668 = vld [vmem:[%s12 + $0x38] sm:$0xff]
    %2670 = vset.pattern.permute.xlu0 0
    %2671 = vperm.xlu0 %2670, %v2661
    %v2672 = vpop.permute.xlu0 %2671
    %2675 = vset.pattern.permute.xlu0 0
    %2676 = vperm.xlu0 %2675, %v2662
    %v2677 = vpop.permute.xlu0 %2676
    %2680 = vset.pattern.permute.xlu0 0
    %2681 = vperm.xlu0 %2680, %v2663
    %v2682 = vpop.permute.xlu0 %2681
    %2685 = vset.pattern.permute.xlu0 0
    %2686 = vperm.xlu0 %2685, %v2664
    %v2687 = vpop.permute.xlu0 %2686
    %2690 = vset.pattern.permute.xlu0 0
    %2691 = vperm.xlu0 %2690, %v2665
    %v2692 = vpop.permute.xlu0 %2691
    %2695 = vset.pattern.permute.xlu0 0
    %2696 = vperm.xlu0 %2695, %v2666
    %v2697 = vpop.permute.xlu0 %2696
    %2700 = vset.pattern.permute.xlu0 0
    %2701 = vperm.xlu0 %2700, %v2667
    %v2702 = vpop.permute.xlu0 %2701
    %2705 = vset.pattern.permute.xlu0 0
    %2706 = vperm.xlu0 %2705, %v2668
    %v2707 = vpop.permute.xlu0 %2706
    %v2710 = vsel %vm1789, %v2653, 0
    %v2713 = vsel %vm1789, %v2654, 0
    %v2716 = vsel %vm1789, %v2655, 0
    %v2719 = vsel %vm1789, %v2656, 0
    %v2722 = vsel %vm1789, %v2657, 0
    %v2725 = vsel %vm1789, %v2658, 0
    %v2728 = vsel %vm1789, %v2659, 0
    %v2731 = vsel %vm1789, %v2660, 0
    %2733 = vmatprep.subr.mxu0 0.0
    %2734 = vmatpush1.msra.mxu0 0.0
    %2735 = vmatprep.subr.mxu0 0.0
    %2736 = vmatpush1.msra.mxu0 0.0
    %2737 = vmatprep.subr.mxu0 0.0
    %2738 = vmatpush1.msra.mxu0 0.0
    %2739 = vmatprep.subr.mxu0 0.0
    %2740 = vmatpush1.msra.mxu0 0.0
    %2741 = vmatprep.subr.mxu0 0.0
    %2742 = vmatpush1.msra.mxu0 0.0
    %2743 = vmatprep.subr.mxu0 0.0
    %2744 = vmatpush1.msra.mxu0 0.0
    %2745 = vmatprep.subr.mxu0 0.0
    %2746 = vmatpush1.msra.mxu0 0.0
    %2747 = vmatprep.subr.mxu0 0.0
    %2748 = vmatpush1.msra.mxu0 0.0
    %2749 = vmatprep.subr.mxu0 %v2652
    %2750 = vmatpush1.msra.mxu0 %v2651
    %2751 = vmatprep.subr.mxu0 %v2650
    %2752 = vmatpush1.msra.mxu0 %v2649
    %2753 = vmatprep.subr.mxu0 %v2648
    %2754 = vmatpush1.msra.mxu0 %v2647
    %2755 = vmatprep.subr.mxu0 %v2646
    %2756 = vmatpush1.msra.mxu0 %v2645
    %2757 = vmatprep.subr.mxu0 %v2644
    %2758 = vmatpush1.msra.mxu0 %v2643
    %2759 = vmatprep.subr.mxu0 %v2642
    %2760 = vmatpush1.msra.mxu0 %v2641
    %2761 = vmatprep.subr.mxu0 %v2640
    %2762 = vmatpush1.msra.mxu0 %v2639
    %2763 = vmatprep.subr.mxu0 %v2638
    %2764 = vmatpush1.msra.mxu0 %v2637
    %2765 = vmatprep.subr.mxu0 0.0
    %2766 = vmatpush2.msra.mxu0 0.0
    %2767 = vmatprep.subr.mxu0 0.0
    %2768 = vmatpush2.msra.mxu0 0.0
    %2769 = vmatprep.subr.mxu0 0.0
    %2770 = vmatpush2.msra.mxu0 0.0
    %2771 = vmatprep.subr.mxu0 0.0
    %2772 = vmatpush2.msra.mxu0 0.0
    %2773 = vmatprep.subr.mxu0 0.0
    %2774 = vmatpush2.msra.mxu0 0.0
    %2775 = vmatprep.subr.mxu0 0.0
    %2776 = vmatpush2.msra.mxu0 0.0
    %2777 = vmatprep.subr.mxu0 0.0
    %2778 = vmatpush2.msra.mxu0 0.0
    %2779 = vmatprep.subr.mxu0 0.0
    %2780 = vmatpush2.msra.mxu0 0.0
    %2781 = vmatprep.subr.mxu0 0.0
    %2782 = vmatpush2.msra.mxu0 0.0
    %2783 = vmatprep.subr.mxu0 0.0
    %2784 = vmatpush2.msra.mxu0 0.0
    %2785 = vmatprep.subr.mxu0 0.0
    %2786 = vmatpush2.msra.mxu0 0.0
    %2787 = vmatprep.subr.mxu0 0.0
    %2788 = vmatpush2.msra.mxu0 0.0
    %2789 = vmatprep.subr.mxu0 0.0
    %2790 = vmatpush2.msra.mxu0 0.0
    %2791 = vmatprep.subr.mxu0 0.0
    %2792 = vmatpush2.msra.mxu0 0.0
    %2793 = vmatprep.subr.mxu0 0.0
    %2794 = vmatpush2.msra.mxu0 0.0
    %2795 = vmatprep.subr.mxu0 0.0
    %2796 = vmatpush2.msra.mxu0 0.0
    %2797 = vmatprep.mubr.f32.mxu0 0.0
    %2798 = vmatmul.mubr.f32.gmra.mxu0 %v2710
    %v2799 = vpop.f32.mrf.mxu0
    %v2800 = vadd.f32 %v2672, %v2799
    %v2801 = vpop.f32.mrf.mxu0
    %v2802 = vadd.f32 %v2672, %v2801
    %2803 = vmatprep.mubr.f32.mxu0 0.0
    %2804 = vmatmul.mubr.f32.gmra.mxu0 %v2713
    %v2805 = vpop.f32.mrf.mxu0
    %v2806 = vadd.f32 %v2677, %v2805
    %v2807 = vpop.f32.mrf.mxu0
    %v2808 = vadd.f32 %v2677, %v2807
    %2809 = vmatprep.mubr.f32.mxu0 0.0
    %2810 = vmatmul.mubr.f32.gmra.mxu0 %v2716
    %v2811 = vpop.f32.mrf.mxu0
    %v2812 = vadd.f32 %v2682, %v2811
    %v2813 = vpop.f32.mrf.mxu0
    %v2814 = vadd.f32 %v2682, %v2813
    %2815 = vmatprep.mubr.f32.mxu0 0.0
    %2816 = vmatmul.mubr.f32.gmra.mxu0 %v2719
    %v2817 = vpop.f32.mrf.mxu0
    %v2818 = vadd.f32 %v2687, %v2817
    %v2819 = vpop.f32.mrf.mxu0
    %v2820 = vadd.f32 %v2687, %v2819
    %2821 = vmatprep.mubr.f32.mxu0 0.0
    %2822 = vmatmul.mubr.f32.gmra.mxu0 %v2722
    %v2823 = vpop.f32.mrf.mxu0
    %v2824 = vadd.f32 %v2692, %v2823
    %v2825 = vpop.f32.mrf.mxu0
    %v2826 = vadd.f32 %v2692, %v2825
    %2827 = vmatprep.mubr.f32.mxu0 0.0
    %2828 = vmatmul.mubr.f32.gmra.mxu0 %v2725
    %v2829 = vpop.f32.mrf.mxu0
    %v2830 = vadd.f32 %v2697, %v2829
    %v2831 = vpop.f32.mrf.mxu0
    %v2832 = vadd.f32 %v2697, %v2831
    %2833 = vmatprep.mubr.f32.mxu0 0.0
    %2834 = vmatmul.mubr.f32.gmra.mxu0 %v2728
    %v2835 = vpop.f32.mrf.mxu0
    %v2836 = vadd.f32 %v2702, %v2835
    %v2837 = vpop.f32.mrf.mxu0
    %v2838 = vadd.f32 %v2702, %v2837
    %2839 = vmatprep.mubr.f32.mxu0 0.0
    %2840 = vmatmul.mubr.f32.gmra.mxu0 %v2731
    %v2841 = vpop.f32.mrf.mxu0
    %v2842 = vadd.f32 %v2707, %v2841
    %v2843 = vpop.f32.mrf.mxu0
    %v2844 = vadd.f32 %v2707, %v2843
    %2845 = vdwg.mxu0
    %v2846 = vmul.f32 %v2800, 100.0
    %v2847 = vmul.f32 %v2802, 100.0
    %v2848 = vmul.f32 %v2806, 100.0
    %v2849 = vmul.f32 %v2808, 100.0
    %v2850 = vmul.f32 %v2812, 100.0
    %v2851 = vmul.f32 %v2814, 100.0
    %v2852 = vmul.f32 %v2818, 100.0
    %v2853 = vmul.f32 %v2820, 100.0
    %v2854 = vmul.f32 %v2824, 100.0
    %v2855 = vmul.f32 %v2826, 100.0
    %v2856 = vmul.f32 %v2830, 100.0
    %v2857 = vmul.f32 %v2832, 100.0
    %v2858 = vmul.f32 %v2836, 100.0
    %v2859 = vmul.f32 %v2838, 100.0
    %v2860 = vmul.f32 %v2842, 100.0
    %v2861 = vmul.f32 %v2844, 100.0
    %vm2862 = vcmp.gt.f32.partialorder %v2846, 20.0
    %vm2863 = vcmp.gt.f32.partialorder %v2847, 20.0
    %vm2864 = vcmp.gt.f32.partialorder %v2848, 20.0
    %vm2865 = vcmp.gt.f32.partialorder %v2849, 20.0
    %vm2866 = vcmp.gt.f32.partialorder %v2850, 20.0
    %vm2867 = vcmp.gt.f32.partialorder %v2851, 20.0
    %vm2868 = vcmp.gt.f32.partialorder %v2852, 20.0
    %vm2869 = vcmp.gt.f32.partialorder %v2853, 20.0
    %vm2870 = vcmp.gt.f32.partialorder %v2854, 20.0
    %vm2871 = vcmp.gt.f32.partialorder %v2855, 20.0
    %vm2872 = vcmp.gt.f32.partialorder %v2856, 20.0
    %vm2873 = vcmp.gt.f32.partialorder %v2857, 20.0
    %vm2874 = vcmp.gt.f32.partialorder %v2858, 20.0
    %vm2875 = vcmp.gt.f32.partialorder %v2859, 20.0
    %vm2876 = vcmp.gt.f32.partialorder %v2860, 20.0
    %vm2877 = vcmp.gt.f32.partialorder %v2861, 20.0
    %v2878 = vmin.f32 %v2846, 20.0
    %v2879 = vmin.f32 %v2847, 20.0
    %v2880 = vmin.f32 %v2848, 20.0
    %v2881 = vmin.f32 %v2849, 20.0
    %v2882 = vmin.f32 %v2850, 20.0
    %v2883 = vmin.f32 %v2851, 20.0
    %v2884 = vmin.f32 %v2852, 20.0
    %v2885 = vmin.f32 %v2853, 20.0
    %v2886 = vmin.f32 %v2854, 20.0
    %v2887 = vmin.f32 %v2855, 20.0
    %v2888 = vmin.f32 %v2856, 20.0
    %v2889 = vmin.f32 %v2857, 20.0
    %v2890 = vmin.f32 %v2858, 20.0
    %v2891 = vmin.f32 %v2859, 20.0
    %v2892 = vmin.f32 %v2860, 20.0
    %v2893 = vmin.f32 %v2861, 20.0
    %v2894 = vmul.f32 %v2878, 1.442695
    %v2895 = vpow.pop %v2894
    %v2896 = vmul.f32 %v2879, 1.442695
    %v2897 = vpow.pop %v2896
    %v2898 = vmul.f32 %v2880, 1.442695
    %v2899 = vpow.pop %v2898
    %v2900 = vmul.f32 %v2881, 1.442695
    %v2901 = vpow.pop %v2900
    %v2902 = vmul.f32 %v2882, 1.442695
    %v2903 = vpow.pop %v2902
    %v2904 = vmul.f32 %v2883, 1.442695
    %v2905 = vpow.pop %v2904
    %v2906 = vmul.f32 %v2884, 1.442695
    %v2907 = vpow.pop %v2906
    %v2908 = vmul.f32 %v2885, 1.442695
    %v2909 = vpow.pop %v2908
    %v2910 = vmul.f32 %v2886, 1.442695
    %v2911 = vpow.pop %v2910
    %v2912 = vmul.f32 %v2887, 1.442695
    %v2913 = vpow.pop %v2912
    %v2914 = vmul.f32 %v2888, 1.442695
    %v2915 = vpow.pop %v2914
    %v2916 = vmul.f32 %v2889, 1.442695
    %v2917 = vpow.pop %v2916
    %v2918 = vmul.f32 %v2890, 1.442695
    %v2919 = vpow.pop %v2918
    %v2920 = vmul.f32 %v2891, 1.442695
    %v2921 = vpow.pop %v2920
    %v2922 = vmul.f32 %v2892, 1.442695
    %v2923 = vpow.pop %v2922
    %v2924 = vmul.f32 %v2893, 1.442695
    %v2925 = vpow.pop %v2924
    %v2926 = vadd.f32 %v2895, 1.0
    %v2927 = vlog2.pop %v2926
    %v2928 = vmul.f32 %v2927, 0.6931472
    %v2929 = vmul.f32 -0.5, %v2895
    %v2930 = vadd.f32 %v2929, 1.0
    %v2931 = vmul.f32 %v2930, %v2895
    %v2932 = vand.u32 2147483647, %v2895
    %vm2933 = vcmp.lt.f32.partialorder %v2932, 0.0004427343
    %v2934 = vsel %vm2933, %v2931, %v2928
    %v2935 = vadd.f32 %v2897, 1.0
    %v2936 = vlog2.pop %v2935
    %v2937 = vmul.f32 %v2936, 0.6931472
    %v2938 = vmul.f32 -0.5, %v2897
    %v2939 = vadd.f32 %v2938, 1.0
    %v2940 = vmul.f32 %v2939, %v2897
    %v2941 = vand.u32 2147483647, %v2897
    %vm2942 = vcmp.lt.f32.partialorder %v2941, 0.0004427343
    %v2943 = vsel %vm2942, %v2940, %v2937
    %v2944 = vadd.f32 %v2899, 1.0
    %v2945 = vlog2.pop %v2944
    %v2946 = vmul.f32 %v2945, 0.6931472
    %v2947 = vmul.f32 -0.5, %v2899
    %v2948 = vadd.f32 %v2947, 1.0
    %v2949 = vmul.f32 %v2948, %v2899
    %v2950 = vand.u32 2147483647, %v2899
    %vm2951 = vcmp.lt.f32.partialorder %v2950, 0.0004427343
    %v2952 = vsel %vm2951, %v2949, %v2946
    %v2953 = vadd.f32 %v2901, 1.0
    %v2954 = vlog2.pop %v2953
    %v2955 = vmul.f32 %v2954, 0.6931472
    %v2956 = vmul.f32 -0.5, %v2901
    %v2957 = vadd.f32 %v2956, 1.0
    %v2958 = vmul.f32 %v2957, %v2901
    %v2959 = vand.u32 2147483647, %v2901
    %vm2960 = vcmp.lt.f32.partialorder %v2959, 0.0004427343
    %v2961 = vsel %vm2960, %v2958, %v2955
    %v2962 = vadd.f32 %v2903, 1.0
    %v2963 = vlog2.pop %v2962
    %v2964 = vmul.f32 %v2963, 0.6931472
    %v2965 = vmul.f32 -0.5, %v2903
    %v2966 = vadd.f32 %v2965, 1.0
    %v2967 = vmul.f32 %v2966, %v2903
    %v2968 = vand.u32 2147483647, %v2903
    %vm2969 = vcmp.lt.f32.partialorder %v2968, 0.0004427343
    %v2970 = vsel %vm2969, %v2967, %v2964
    %v2971 = vadd.f32 %v2905, 1.0
    %v2972 = vlog2.pop %v2971
    %v2973 = vmul.f32 %v2972, 0.6931472
    %v2974 = vmul.f32 -0.5, %v2905
    %v2975 = vadd.f32 %v2974, 1.0
    %v2976 = vmul.f32 %v2975, %v2905
    %v2977 = vand.u32 2147483647, %v2905
    %vm2978 = vcmp.lt.f32.partialorder %v2977, 0.0004427343
    %v2979 = vsel %vm2978, %v2976, %v2973
    %v2980 = vadd.f32 %v2907, 1.0
    %v2981 = vlog2.pop %v2980
    %v2982 = vmul.f32 %v2981, 0.6931472
    %v2983 = vmul.f32 -0.5, %v2907
    %v2984 = vadd.f32 %v2983, 1.0
    %v2985 = vmul.f32 %v2984, %v2907
    %v2986 = vand.u32 2147483647, %v2907
    %vm2987 = vcmp.lt.f32.partialorder %v2986, 0.0004427343
    %v2988 = vsel %vm2987, %v2985, %v2982
    %v2989 = vadd.f32 %v2909, 1.0
    %v2990 = vlog2.pop %v2989
    %v2991 = vmul.f32 %v2990, 0.6931472
    %v2992 = vmul.f32 -0.5, %v2909
    %v2993 = vadd.f32 %v2992, 1.0
    %v2994 = vmul.f32 %v2993, %v2909
    %v2995 = vand.u32 2147483647, %v2909
    %vm2996 = vcmp.lt.f32.partialorder %v2995, 0.0004427343
    %v2997 = vsel %vm2996, %v2994, %v2991
    %v2998 = vadd.f32 %v2911, 1.0
    %v2999 = vlog2.pop %v2998
    %v3000 = vmul.f32 %v2999, 0.6931472
    %v3001 = vmul.f32 -0.5, %v2911
    %v3002 = vadd.f32 %v3001, 1.0
    %v3003 = vmul.f32 %v3002, %v2911
    %v3004 = vand.u32 2147483647, %v2911
    %vm3005 = vcmp.lt.f32.partialorder %v3004, 0.0004427343
    %v3006 = vsel %vm3005, %v3003, %v3000
    %v3007 = vadd.f32 %v2913, 1.0
    %v3008 = vlog2.pop %v3007
    %v3009 = vmul.f32 %v3008, 0.6931472
    %v3010 = vmul.f32 -0.5, %v2913
    %v3011 = vadd.f32 %v3010, 1.0
    %v3012 = vmul.f32 %v3011, %v2913
    %v3013 = vand.u32 2147483647, %v2913
    %vm3014 = vcmp.lt.f32.partialorder %v3013, 0.0004427343
    %v3015 = vsel %vm3014, %v3012, %v3009
    %v3016 = vadd.f32 %v2915, 1.0
    %v3017 = vlog2.pop %v3016
    %v3018 = vmul.f32 %v3017, 0.6931472
    %v3019 = vmul.f32 -0.5, %v2915
    %v3020 = vadd.f32 %v3019, 1.0
    %v3021 = vmul.f32 %v3020, %v2915
    %v3022 = vand.u32 2147483647, %v2915
    %vm3023 = vcmp.lt.f32.partialorder %v3022, 0.0004427343
    %v3024 = vsel %vm3023, %v3021, %v3018
    %v3025 = vadd.f32 %v2917, 1.0
    %v3026 = vlog2.pop %v3025
    %v3027 = vmul.f32 %v3026, 0.6931472
    %v3028 = vmul.f32 -0.5, %v2917
    %v3029 = vadd.f32 %v3028, 1.0
    %v3030 = vmul.f32 %v3029, %v2917
    %v3031 = vand.u32 2147483647, %v2917
    %vm3032 = vcmp.lt.f32.partialorder %v3031, 0.0004427343
    %v3033 = vsel %vm3032, %v3030, %v3027
    %v3034 = vadd.f32 %v2919, 1.0
    %v3035 = vlog2.pop %v3034
    %v3036 = vmul.f32 %v3035, 0.6931472
    %v3037 = vmul.f32 -0.5, %v2919
    %v3038 = vadd.f32 %v3037, 1.0
    %v3039 = vmul.f32 %v3038, %v2919
    %v3040 = vand.u32 2147483647, %v2919
    %vm3041 = vcmp.lt.f32.partialorder %v3040, 0.0004427343
    %v3042 = vsel %vm3041, %v3039, %v3036
    %v3043 = vadd.f32 %v2921, 1.0
    %v3044 = vlog2.pop %v3043
    %v3045 = vmul.f32 %v3044, 0.6931472
    %v3046 = vmul.f32 -0.5, %v2921
    %v3047 = vadd.f32 %v3046, 1.0
    %v3048 = vmul.f32 %v3047, %v2921
    %v3049 = vand.u32 2147483647, %v2921
    %vm3050 = vcmp.lt.f32.partialorder %v3049, 0.0004427343
    %v3051 = vsel %vm3050, %v3048, %v3045
    %v3052 = vadd.f32 %v2923, 1.0
    %v3053 = vlog2.pop %v3052
    %v3054 = vmul.f32 %v3053, 0.6931472
    %v3055 = vmul.f32 -0.5, %v2923
    %v3056 = vadd.f32 %v3055, 1.0
    %v3057 = vmul.f32 %v3056, %v2923
    %v3058 = vand.u32 2147483647, %v2923
    %vm3059 = vcmp.lt.f32.partialorder %v3058, 0.0004427343
    %v3060 = vsel %vm3059, %v3057, %v3054
    %v3061 = vadd.f32 %v2925, 1.0
    %v3062 = vlog2.pop %v3061
    %v3063 = vmul.f32 %v3062, 0.6931472
    %v3064 = vmul.f32 -0.5, %v2925
    %v3065 = vadd.f32 %v3064, 1.0
    %v3066 = vmul.f32 %v3065, %v2925
    %v3067 = vand.u32 2147483647, %v2925
    %vm3068 = vcmp.lt.f32.partialorder %v3067, 0.0004427343
    %v3069 = vsel %vm3068, %v3066, %v3063
    %v3070 = vmul.f32 %v2934, 0.01
    %v3071 = vmul.f32 %v2943, 0.01
    %v3072 = vmul.f32 %v2952, 0.01
    %v3073 = vmul.f32 %v2961, 0.01
    %v3074 = vmul.f32 %v2970, 0.01
    %v3075 = vmul.f32 %v2979, 0.01
    %v3076 = vmul.f32 %v2988, 0.01
    %v3077 = vmul.f32 %v2997, 0.01
    %v3078 = vmul.f32 %v3006, 0.01
    %v3079 = vmul.f32 %v3015, 0.01
    %v3080 = vmul.f32 %v3024, 0.01
    %v3081 = vmul.f32 %v3033, 0.01
    %v3082 = vmul.f32 %v3042, 0.01
    %v3083 = vmul.f32 %v3051, 0.01
    %v3084 = vmul.f32 %v3060, 0.01
    %v3085 = vmul.f32 %v3069, 0.01
    %v3086 = vsel %vm2862, %v2800, %v3070
    %v3087 = vsel %vm2863, %v2802, %v3071
    %v3088 = vsel %vm2864, %v2806, %v3072
    %v3089 = vsel %vm2865, %v2808, %v3073
    %v3090 = vsel %vm2866, %v2812, %v3074
    %v3091 = vsel %vm2867, %v2814, %v3075
    %v3092 = vsel %vm2868, %v2818, %v3076
    %v3093 = vsel %vm2869, %v2820, %v3077
    %v3094 = vsel %vm2870, %v2824, %v3078
    %v3095 = vsel %vm2871, %v2826, %v3079
    %v3096 = vsel %vm2872, %v2830, %v3080
    %v3097 = vsel %vm2873, %v2832, %v3081
    %v3098 = vsel %vm2874, %v2836, %v3082
    %v3099 = vsel %vm2875, %v2838, %v3083
    %v3100 = vsel %vm2876, %v2842, %v3084
    %v3101 = vsel %vm2877, %v2844, %v3085
    %v3102 = vld [vmem:[%s13] sm:$0xff]
    %v3103 = vld [vmem:[%s13 + $0x8] sm:$0xff]
    %v3104 = vld [vmem:[%s13 + $0x10] sm:$0xff]
    %v3105 = vld [vmem:[%s13 + $0x18] sm:$0xff]
    %v3106 = vld [vmem:[%s13 + $0x20] sm:$0x1]
    %v3107 = vld [vmem:[%s14] sm:$0xff]
    %v3108 = vld [vmem:[%s14 + $0x8] sm:$0xff]
    %v3109 = vld [vmem:[%s14 + $0x10] sm:$0xff]
    %v3110 = vld [vmem:[%s14 + $0x18] sm:$0xff]
    %v3111 = vld [vmem:[%s14 + $0x20] sm:$0x1]
    %3113 = vset.pattern.permute.xlu0 0
    %3114 = vperm.xlu0 %3113, %v3107
    %v3115 = vpop.permute.xlu0 %3114
    %3118 = vset.pattern.permute.xlu0 0
    %3119 = vperm.xlu0 %3118, %v3108
    %v3120 = vpop.permute.xlu0 %3119
    %3123 = vset.pattern.permute.xlu0 0
    %3124 = vperm.xlu0 %3123, %v3109
    %v3125 = vpop.permute.xlu0 %3124
    %3128 = vset.pattern.permute.xlu0 0
    %3129 = vperm.xlu0 %3128, %v3110
    %v3130 = vpop.permute.xlu0 %3129
    %3133 = vset.pattern.permute.xlu0 0
    %3134 = vperm.xlu0 %3133, %v3111
    %v3135 = vpop.permute.xlu0 %3134
    %v3138 = vsel %vm1789, %v3102, 0
    %v3141 = vsel %vm1789, %v3103, 0
    %v3144 = vsel %vm1789, %v3104, 0
    %v3147 = vsel %vm1789, %v3105, 0
    %v3150 = vsel %vm1789, %v3106, 0
    %3152 = vmatprep.subr.mxu0 0.0
    %3153 = vmatpush1.msra.mxu0 0.0
    %3154 = vmatprep.subr.mxu0 0.0
    %3155 = vmatpush1.msra.mxu0 0.0
    %3156 = vmatprep.subr.mxu0 0.0
    %3157 = vmatpush1.msra.mxu0 0.0
    %3158 = vmatprep.subr.mxu0 0.0
    %3159 = vmatpush1.msra.mxu0 0.0
    %3160 = vmatprep.subr.mxu0 0.0
    %3161 = vmatpush1.msra.mxu0 0.0
    %3162 = vmatprep.subr.mxu0 0.0
    %3163 = vmatpush1.msra.mxu0 0.0
    %3164 = vmatprep.subr.mxu0 0.0
    %3165 = vmatpush1.msra.mxu0 0.0
    %3166 = vmatprep.subr.mxu0 0.0
    %3167 = vmatpush1.msra.mxu0 0.0
    %3168 = vmatprep.subr.mxu0 %v3101
    %3169 = vmatpush1.msra.mxu0 %v3100
    %3170 = vmatprep.subr.mxu0 %v3099
    %3171 = vmatpush1.msra.mxu0 %v3098
    %3172 = vmatprep.subr.mxu0 %v3097
    %3173 = vmatpush1.msra.mxu0 %v3096
    %3174 = vmatprep.subr.mxu0 %v3095
    %3175 = vmatpush1.msra.mxu0 %v3094
    %3176 = vmatprep.subr.mxu0 %v3093
    %3177 = vmatpush1.msra.mxu0 %v3092
    %3178 = vmatprep.subr.mxu0 %v3091
    %3179 = vmatpush1.msra.mxu0 %v3090
    %3180 = vmatprep.subr.mxu0 %v3089
    %3181 = vmatpush1.msra.mxu0 %v3088
    %3182 = vmatprep.subr.mxu0 %v3087
    %3183 = vmatpush1.msra.mxu0 %v3086
    %3184 = vmatprep.subr.mxu0 0.0
    %3185 = vmatpush2.msra.mxu0 0.0
    %3186 = vmatprep.subr.mxu0 0.0
    %3187 = vmatpush2.msra.mxu0 0.0
    %3188 = vmatprep.subr.mxu0 0.0
    %3189 = vmatpush2.msra.mxu0 0.0
    %3190 = vmatprep.subr.mxu0 0.0
    %3191 = vmatpush2.msra.mxu0 0.0
    %3192 = vmatprep.subr.mxu0 0.0
    %3193 = vmatpush2.msra.mxu0 0.0
    %3194 = vmatprep.subr.mxu0 0.0
    %3195 = vmatpush2.msra.mxu0 0.0
    %3196 = vmatprep.subr.mxu0 0.0
    %3197 = vmatpush2.msra.mxu0 0.0
    %3198 = vmatprep.subr.mxu0 0.0
    %3199 = vmatpush2.msra.mxu0 0.0
    %3200 = vmatprep.subr.mxu0 0.0
    %3201 = vmatpush2.msra.mxu0 0.0
    %3202 = vmatprep.subr.mxu0 0.0
    %3203 = vmatpush2.msra.mxu0 0.0
    %3204 = vmatprep.subr.mxu0 0.0
    %3205 = vmatpush2.msra.mxu0 0.0
    %3206 = vmatprep.subr.mxu0 0.0
    %3207 = vmatpush2.msra.mxu0 0.0
    %3208 = vmatprep.subr.mxu0 0.0
    %3209 = vmatpush2.msra.mxu0 0.0
    %3210 = vmatprep.subr.mxu0 0.0
    %3211 = vmatpush2.msra.mxu0 0.0
    %3212 = vmatprep.subr.mxu0 0.0
    %3213 = vmatpush2.msra.mxu0 0.0
    %3214 = vmatprep.subr.mxu0 0.0
    %3215 = vmatpush2.msra.mxu0 0.0
    %3216 = vmatprep.mubr.f32.mxu0 0.0
    %3217 = vmatmul.mubr.f32.gmra.mxu0 %v3138
    %v3218 = vpop.f32.mrf.mxu0
    %v3219 = vadd.f32 %v3115, %v3218
    %v3220 = vpop.f32.mrf.mxu0
    %v3221 = vadd.f32 %v3115, %v3220
    %3222 = vmatprep.mubr.f32.mxu0 0.0
    %3223 = vmatmul.mubr.f32.gmra.mxu0 %v3141
    %v3224 = vpop.f32.mrf.mxu0
    %v3225 = vadd.f32 %v3120, %v3224
    %v3226 = vpop.f32.mrf.mxu0
    %v3227 = vadd.f32 %v3120, %v3226
    %3228 = vmatprep.mubr.f32.mxu0 0.0
    %3229 = vmatmul.mubr.f32.gmra.mxu0 %v3144
    %v3230 = vpop.f32.mrf.mxu0
    %v3231 = vadd.f32 %v3125, %v3230
    %v3232 = vpop.f32.mrf.mxu0
    %v3233 = vadd.f32 %v3125, %v3232
    %3234 = vmatprep.mubr.f32.mxu0 0.0
    %3235 = vmatmul.mubr.f32.gmra.mxu0 %v3147
    %v3236 = vpop.f32.mrf.mxu0
    %v3237 = vadd.f32 %v3130, %v3236
    %v3238 = vpop.f32.mrf.mxu0
    %v3239 = vadd.f32 %v3130, %v3238
    %3240 = vmatprep.mubr.f32.mxu0 0.0
    %3241 = vmatmul.mubr.f32.gmra.mxu0 %v3150
    %v3242 = vpop.f32.mrf.mxu0
    %v3243 = vadd.f32 %v3135, %v3242
    %v3244 = vpop.f32.mrf.mxu0
    %v3245 = vadd.f32 %v3135, %v3244
    %3246 = vdwg.mxu0
    %3247 = vst [vmem:[#allocation3] sm:$0xff] %v3219
    %3248 = vst [vmem:[#allocation3 + $0x8] sm:$0xff] %v3221
    %3249 = vst [vmem:[#allocation3 + $0x10] sm:$0xff] %v3225
    %3250 = vst [vmem:[#allocation3 + $0x18] sm:$0xff] %v3227
    %3251 = vst [vmem:[#allocation3 + $0x20] sm:$0xff] %v3231
    %3252 = vst [vmem:[#allocation3 + $0x28] sm:$0xff] %v3233
    %3253 = vst [vmem:[#allocation3 + $0x30] sm:$0xff] %v3237
    %3254 = vst [vmem:[#allocation3 + $0x38] sm:$0xff] %v3239
    %3255 = vst [vmem:[#allocation3 + $0x40] sm:$0x1] %v3243
    %3256 = vst [vmem:[#allocation3 + $0x48] sm:$0x1] %v3245
    // Predicated region
    $region62: #{tpu_custom_call.1} parent=1 // pred_check
      _
    $region63: #{tpu_custom_call.1} parent=1 // pred_check_branch
      %3258 = sbr.rel (0) target = $region65
    $region64: #{tpu_custom_call.1} parent=1 // pred_region
      %s3260 = ssub.s32 1280, 1280
      %3261 = vsyncadd [#allocation4], %s3260
      %s3262 = sshll.u32 [#allocation3], 4
      %s3263 = int_to_ptr.vmem [resolvable:$true] %s3262
      %3268 = dma.vmem_to_hbm [thread:$0]  %s3263, 1280, %s15, [#allocation4], 256, 256, 16
    $region65: #{tpu_custom_call.1} parent=1 // pred_fallthru
      _
    // Predicated region
    $region66: #{tpu_custom_call.1} parent=1 // pred_check
      _
    $region67: #{tpu_custom_call.1} parent=1 // pred_check_branch
      %3270 = sbr.rel (0) target = $region69
    $region68: #{tpu_custom_call.1} parent=1 // pred_region
      %3271 = dma.done [#allocation4], 1280
    $region69: #{tpu_custom_call.1} parent=1 // pred_fallthru
      _
    %3272 = vsyncpa [#allocation4], 1

</llo_original>
